<compile_context>
chip_gen: v7x
topology: tpu7x:2x2x1
jax: 0.10.0
libtpu: 0.0.40
codegen_flags: <defaults>
</compile_context>

<pallas_src>
import jax
import jax.numpy as jnp
from jax.experimental import pallas as pl
from jax.experimental.pallas import tpu as pltpu

# ----------------------- config (small, shape-consistent) -----------------------
VOCAB = 256
HIDDEN = 64
N_LAYERS = 2
N_HEADS = 4
HEAD_DIM = HIDDEN // N_HEADS
INTER = 128
N_EXPERTS = 4
TOP_K = 2
MOE_LAYERS = {1}          # layer 1 gets a MoE FFN, layer 0 keeps dense SwiGLU
RMS_EPS = 1e-6
ROPE_THETA = 10000.0

_BF16 = jnp.bfloat16


# ------------------------------ in-kernel helpers --------------------------------
def _rms(x, w):
    """RMSNorm of a (M, H) block with a (1, H) weight, computed in f32."""
    x = x.astype(jnp.float32)
    var = jnp.mean(x * x, axis=-1, keepdims=True)
    return x * jax.lax.rsqrt(var + RMS_EPS) * w


def _token_tile(M):
    """Prefer token tiles that are multiples of 16 (bf16 sublane packing) and
    give >= 2 grid steps (both v7x TensorCores busy); otherwise full extent."""
    for t in (256, 128, 64, 32, 16):
        if M % t == 0 and M // t >= 2:
            return t
    return M


# ------------------------------- Pallas kernels ----------------------------------
def _qkv_rope_kernel(x_ref, nw_ref, wqkv_ref, cos_ref, sin_ref, o_ref):
    """Fused attn_norm + concatenated QKV projection + head-batched RoPE.
    1/sqrt(HEAD_DIM) is folded into the q-lane cos/sin tables."""
    h = _rms(x_ref[...], nw_ref[...]).astype(_BF16)                    # cast once
    qkv = jnp.dot(h, wqkv_ref[...].astype(_BF16),
                  preferred_element_type=jnp.float32)                  # (tm, 3H)
    h2 = 2 * HIDDEN
    half = HEAD_DIM // 2
    qk = qkv[:, :h2]                                                   # (tm, 128)
    v = qkv[:, h2:]                                                    # (tm, 64)
    # rotate-half within each HEAD_DIM segment: two lane rolls + select (XLU).
    roll_fwd = pltpu.roll(qk, half, 1)          # out[l] = qk[l - half]
    roll_bwd = pltpu.roll(qk, h2 - half, 1)     # out[l] = qk[l + half]
    lane = jax.lax.broadcasted_iota(jnp.int32, qk.shape, 1)
    rot = jnp.where((lane % HEAD_DIM) < half, -roll_bwd, roll_fwd)
    roped = qk * cos_ref[...] + rot * sin_ref[...]
    o_ref[:, :h2] = roped.astype(o_ref.dtype)
    o_ref[:, h2:] = v.astype(o_ref.dtype)


def fused_norm_qkv_rope(x, norm_w, wqkv, cos_full, sin_full):
    M, H = x.shape
    N3 = wqkv.shape[1]
    tm = _token_tile(M)
    return pl.pallas_call(
        _qkv_rope_kernel,
        out_shape=jax.ShapeDtypeStruct((M, N3), _BF16),
        grid=(M // tm,),
        in_specs=[pl.BlockSpec((tm, H), lambda i: (i, 0)),
                  pl.BlockSpec((1, H), lambda i: (0, 0)),
                  pl.BlockSpec((H, N3), lambda i: (0, 0)),
                  pl.BlockSpec((tm, 2 * H), lambda i: (i, 0)),
                  pl.BlockSpec((tm, 2 * H), lambda i: (i, 0))],
        out_specs=pl.BlockSpec((tm, N3), lambda i: (i, 0)),
        compiler_params=pltpu.CompilerParams(dimension_semantics=("parallel",)),
    )(x, norm_w.reshape(1, H), wqkv, cos_full, sin_full)


def _attn_kernel(x_ref, q_ref, k_ref, v_ref, wo_ref, o_ref):
    """Head-batched causal attention + wo projection + residual add (per batch
    row).  Q is already RoPE'd and pre-scaled; K is RoPE'd."""
    x = x_ref[0].astype(jnp.float32)            # (S, H) residual
    q = q_ref[0]                                # (NH, S, D) bf16
    k = k_ref[0]
    v = v_ref[0]
    # scores: batched over heads.
    s = jax.lax.dot_general(q, k, (((2,), (2,)), ((0,), (0,))),
                            preferred_element_type=jnp.float32)        # (NH, S, S)
    row = jax.lax.broadcasted_iota(jnp.int32, s.shape, 1)
    col = jax.lax.broadcasted_iota(jnp.int32, s.shape, 2)
    s = jnp.where(col <= row, s, jnp.float32(-1e30))
    m = jnp.max(s, axis=-1, keepdims=True)
    p = jnp.exp(s - m)
    p = p / jnp.sum(p, axis=-1, keepdims=True)
    pv = jax.lax.dot_general(p.astype(_BF16), v, (((2,), (1,)), ((0,), (0,))),
                             preferred_element_type=jnp.float32)       # (NH, S, D)
    oh = jax.lax.dot_general(pv.astype(_BF16), wo_ref[...].astype(_BF16),
                             (((2,), (1,)), ((0,), (0,))),
                             preferred_element_type=jnp.float32)       # (NH, S, H)
    o_ref[0] = (x + jnp.sum(oh, axis=0)).astype(o_ref.dtype)


def attention_block(x, q3, k3, v3, wo_heads):
    """x: (B,S,H) bf16 residual; q3/k3/v3: (B,NH,S,D) bf16. Returns x + attn@wo."""
    B, S, H = x.shape
    return pl.pallas_call(
        _attn_kernel,
        out_shape=jax.ShapeDtypeStruct((B, S, H), _BF16),
        grid=(B,),
        in_specs=[pl.BlockSpec((1, S, H), lambda b: (b, 0, 0)),
                  pl.BlockSpec((1, N_HEADS, S, HEAD_DIM), lambda b: (b, 0, 0, 0)),
                  pl.BlockSpec((1, N_HEADS, S, HEAD_DIM), lambda b: (b, 0, 0, 0)),
                  pl.BlockSpec((1, N_HEADS, S, HEAD_DIM), lambda b: (b, 0, 0, 0)),
                  pl.BlockSpec((N_HEADS, HEAD_DIM, H), lambda b: (0, 0, 0))],
        out_specs=pl.BlockSpec((1, S, H), lambda b: (b, 0, 0)),
        compiler_params=pltpu.CompilerParams(dimension_semantics=("parallel",)),
    )(x, q3, k3, v3, wo_heads)


def _dense_ffn_kernel(x_ref, nw_ref, wgu_ref, wd_ref, o_ref):
    """Fused mlp_norm + SwiGLU (single concatenated gate|up matmul) + residual."""
    x = x_ref[...].astype(jnp.float32)
    h = _rms(x, nw_ref[...]).astype(_BF16)                             # cast once
    gu = jnp.dot(h, wgu_ref[...].astype(_BF16),
                 preferred_element_type=jnp.float32)                   # (tm, 2I)
    g = gu[:, :INTER]
    u = gu[:, INTER:]
    act = (g * jax.lax.logistic(g) * u).astype(_BF16)
    out = x + jnp.dot(act, wd_ref[...].astype(_BF16),
                      preferred_element_type=jnp.float32)
    o_ref[...] = out.astype(o_ref.dtype)


def dense_ffn(x, norm_w, wgu, wd):
    M, H = x.shape
    I2 = wgu.shape[1]
    tm = _token_tile(M)
    return pl.pallas_call(
        _dense_ffn_kernel,
        out_shape=jax.ShapeDtypeStruct((M, H), _BF16),
        grid=(M // tm,),
        in_specs=[pl.BlockSpec((tm, H), lambda i: (i, 0)),
                  pl.BlockSpec((1, H), lambda i: (0, 0)),
                  pl.BlockSpec((H, I2), lambda i: (0, 0)),
                  pl.BlockSpec((INTER, H), lambda i: (0, 0))],
        out_specs=pl.BlockSpec((tm, H), lambda i: (i, 0)),
        compiler_params=pltpu.CompilerParams(dimension_semantics=("parallel",)),
    )(x, norm_w.reshape(1, H), wgu, wd)


def _moe_kernel(flags_ref, x_ref, nw_ref, wgu_ref, wd_ref, comb_ref, o_ref,
                h_scr, acc_scr):
    """One expert per grid step on the last ('arbitrary') axis.  RMSNorm + bf16
    cast hoisted to e==0 VMEM scratch; f32 accumulator; experts with no routed
    tokens in this tile (flag==0) skip all matmuls."""
    i = pl.program_id(0)
    e = pl.program_id(1)

    @pl.when(e == 0)
    def _():
        x = x_ref[...].astype(jnp.float32)
        acc_scr[...] = x                                  # residual init
        h_scr[...] = _rms(x, nw_ref[...]).astype(_BF16)   # hoisted norm + cast

    @pl.when(flags_ref[i, e] != 0)
    def _():
        gu = jnp.dot(h_scr[...], wgu_ref[0].astype(_BF16),
                     preferred_element_type=jnp.float32)              # (tm, 2I)
        g = gu[:, :INTER]
        u = gu[:, INTER:]
        act = (g * jax.lax.logistic(g) * u).astype(_BF16)
        out_e = jnp.dot(act, wd_ref[0].astype(_BF16),
                        preferred_element_type=jnp.float32)
        acc_scr[...] += comb_ref[0] * out_e

    @pl.when(e == pl.num_programs(1) - 1)
    def _():
        o_ref[...] = acc_scr[...].astype(o_ref.dtype)


def moe_ffn_experts(x, norm_w, wgu, wd, combine):
    """x: (M, H) bf16; combine: (M, E) routing weights. Returns x + MoE(norm(x))."""
    M, H = x.shape
    E = wgu.shape[0]
    I2 = wgu.shape[2]
    tm = _token_tile(M)
    nt = M // tm
    comb = combine.T.reshape(E, M, 1).astype(jnp.float32)
    # per-(tile, expert) "any routed token" flags -> SMEM via scalar prefetch.
    flags = (combine.reshape(nt, tm, E) != 0).any(axis=1).astype(jnp.int32)
    grid_spec = pltpu.PrefetchScalarGridSpec(
        num_scalar_prefetch=1,
        grid=(nt, E),
        in_specs=[pl.BlockSpec((tm, H), lambda i, e, f: (i, 0)),
                  pl.BlockSpec((1, H), lambda i, e, f: (0, 0)),
                  pl.BlockSpec((1, H, I2), lambda i, e, f: (e, 0, 0)),
                  pl.BlockSpec((1, INTER, H), lambda i, e, f: (e, 0, 0)),
                  pl.BlockSpec((1, tm, 1), lambda i, e, f: (e, i, 0))],
        out_specs=pl.BlockSpec((tm, H), lambda i, e, f: (i, 0)),
        scratch_shapes=[pltpu.VMEM((tm, H), _BF16),
                        pltpu.VMEM((tm, H), jnp.float32)])
    return pl.pallas_call(
        _moe_kernel,
        out_shape=jax.ShapeDtypeStruct((M, H), _BF16),
        grid_spec=grid_spec,
        compiler_params=pltpu.CompilerParams(
            dimension_semantics=("parallel", "arbitrary"),
            # TODO(synk): at production INTER, re-derive the expert tile for
            # v7x's 64 MiB VMEM (expert weights are double-buffered over e).
            vmem_limit_bytes=64 * 1024 * 1024),
    )(flags, x, norm_w.reshape(1, H), wgu, wd, comb)


def _final_kernel(x_ref, nw_ref, w_ref, h_ref, logits_ref):
    """Fused final_norm + lm_head.  Emits normed hidden states and logits."""
    h = _rms(x_ref[...], nw_ref[...])
    h_ref[...] = h.astype(h_ref.dtype)
    logits_ref[...] = jnp.dot(h.astype(_BF16), w_ref[...].astype(_BF16),
                              preferred_element_type=jnp.float32
                              ).astype(logits_ref.dtype)


def final_norm_lm_head(x, norm_w, lm_head_w):
    M, H = x.shape
    V = lm_head_w.shape[1]
    tm = _token_tile(M)
    return pl.pallas_call(
        _final_kernel,
        out_shape=(jax.ShapeDtypeStruct((M, H), jnp.float32),
                   jax.ShapeDtypeStruct((M, V), jnp.float32)),
        grid=(M // tm,),
        in_specs=[pl.BlockSpec((tm, H), lambda i: (i, 0)),
                  pl.BlockSpec((1, H), lambda i: (0, 0)),
                  pl.BlockSpec((H, V), lambda i: (0, 0))],
        out_specs=(pl.BlockSpec((tm, H), lambda i: (i, 0)),
                   pl.BlockSpec((tm, V), lambda i: (i, 0))),
        compiler_params=pltpu.CompilerParams(dimension_semantics=("parallel",)),
    )(x, norm_w.reshape(1, H), lm_head_w)
    # TODO(synk): at real vocab sizes, tile lm_head over vocab and fuse the
    # shifted online log-softmax/NLL into the kernel instead of f32 logits.


# --------------------------------- model glue ------------------------------------
def _rms_jax(x, w):
    var = jnp.mean(x * x, axis=-1, keepdims=True)
    return x * jax.lax.rsqrt(var + RMS_EPS) * w


def rope_qk_tables(S):
    """cos/sin tables tiled per head to (S, 2H) for the joint Q|K lanes, with
    the 1/sqrt(HEAD_DIM) attention scale folded into the Q half."""
    inv_freq = 1.0 / (ROPE_THETA ** (jnp.arange(0, HEAD_DIM, 2, dtype=jnp.float32)
                                     / HEAD_DIM))
    t = jnp.arange(S, dtype=jnp.float32)
    freqs = jnp.outer(t, inv_freq)                        # (S, D/2)
    emb = jnp.concatenate([freqs, freqs], axis=-1)        # (S, D)
    cos, sin = jnp.cos(emb), jnp.sin(emb)
    scale = 1.0 / (HEAD_DIM ** 0.5)
    cos_qk = jnp.concatenate([jnp.tile(cos * scale, (1, N_HEADS)),
                              jnp.tile(cos, (1, N_HEADS))], axis=-1)   # (S, 2H)
    sin_qk = jnp.concatenate([jnp.tile(sin * scale, (1, N_HEADS)),
                              jnp.tile(sin, (1, N_HEADS))], axis=-1)
    return cos_qk, sin_qk


def moe_block(x, norm_w, p):
    """Router (tiny, plain JAX) + single fused expert kernel (dropless top-k via
    zero combine weights, flag-gated per tile) + load-balance aux loss."""
    h = _rms_jax(x.astype(jnp.float32), norm_w)
    logits = jnp.dot(h, p['router'])                      # (N, E) — lane width 4, keep in JAX
    gates = jax.nn.softmax(logits, axis=-1)
    topv, topi = jax.lax.top_k(gates, TOP_K)
    topw = topv / jnp.sum(topv, axis=-1, keepdims=True)
    onehot = jax.nn.one_hot(topi, N_EXPERTS, dtype=jnp.float32)        # (N, k, E)
    combine = jnp.einsum('nk,nke->ne', topw, onehot)                   # (N, E)

    out = moe_ffn_experts(x, norm_w, p['wgu'], p['wd'], combine)

    frac = jnp.mean(jnp.sum(onehot, axis=1), axis=0)
    prob = jnp.mean(gates, axis=0)
    aux = N_EXPERTS * jnp.sum(frac * prob)
    return out, {'load_balancing_loss': aux}
    # TODO(synk): token-grouped dispatch (capacity/dropping) of the reference MoE
    # is not modeled; routing is dense dropless top-k with combine weights.


def llama_layer(x, p, cos_full, sin_full, B, S, is_moe):
    M = B * S
    # --- self-attention sublayer: fused norm+QKV+RoPE, head-batched attn+wo+res ---
    qkv = fused_norm_qkv_rope(x, p['attn_norm'], p['wqkv'], cos_full, sin_full)
    qkv4 = qkv.reshape(B, S, 3, N_HEADS, HEAD_DIM)
    q3 = jnp.transpose(qkv4[:, :, 0], (0, 2, 1, 3))       # (B, NH, S, D) bf16
    k3 = jnp.transpose(qkv4[:, :, 1], (0, 2, 1, 3))
    v3 = jnp.transpose(qkv4[:, :, 2], (0, 2, 1, 3))
    wo_heads = p['wo'].reshape(N_HEADS, HEAD_DIM, HIDDEN)
    x = attention_block(x.reshape(B, S, HIDDEN), q3, k3, v3,
                        wo_heads).reshape(M, HIDDEN)

    # --- FFN sublayer (dense SwiGLU or MoE), norm + residual fused in-kernel ---
    if is_moe:
        x, aux = moe_block(x, p['mlp_norm'], p['moe'])
    else:
        x = dense_ffn(x, p['mlp_norm'], p['wgu'], p['wd'])
        aux = {}
    return x, aux


def forward(params, input_ids, labels=None):
    B, S = input_ids.shape
    M = B * S
    # residual stream carried in bf16 between kernels; f32 math inside kernels.
    x = params['embed'][input_ids].reshape(M, HIDDEN).astype(_BF16)
    cos_qk, sin_qk = rope_qk_tables(S)
    cos_full = jnp.tile(cos_qk, (B, 1))                   # (M, 2H)
    sin_full = jnp.tile(sin_qk, (B, 1))

    aux_losses = {}
    for i, p in enumerate(params['layers']):
        x, aux = llama_layer(x, p, cos_full, sin_full, B, S, i in MOE_LAYERS)
        for name, val in aux.items():
            aux_losses[f'layer_{i}_{name}'] = val

    hidden, logits = final_norm_lm_head(x, params['final_norm'], params['lm_head'])
    logits = logits.reshape(B, S, VOCAB)

    loss = None
    if labels is not None:
        shift_logits = logits[:, :-1, :].reshape(-1, VOCAB)
        shift_labels = labels[:, 1:].reshape(-1)
        logp = jax.nn.log_softmax(shift_logits, axis=-1)
        nll = -jnp.take_along_axis(logp, shift_labels[:, None], axis=-1)[:, 0]
        loss = jnp.mean(nll)   # mean-reduction CrossEntropyLoss on shifted tokens

    hidden_states = hidden.reshape(B, S, HIDDEN)
    return {'loss': loss, 'logits': logits,
            'hidden_states': hidden_states, 'aux_losses': aux_losses}


forward_jit = jax.jit(forward)


# ----------------------------- deterministic init --------------------------------
def init_params(key):
    keys = iter(jax.random.split(key, 64))

    def nrm(shape, scale=0.02):
        return scale * jax.random.normal(next(keys), shape, dtype=jnp.float32)

    params = {
        'embed': nrm((VOCAB, HIDDEN)),
        'final_norm': jnp.ones((HIDDEN,), jnp.float32),
        'lm_head': nrm((HIDDEN, VOCAB)),   # y = x @ lm_head (bias=False)
        'layers': [],
    }
    for i in range(N_LAYERS):
        p = {
            'attn_norm': jnp.ones((HIDDEN,), jnp.float32),
            'mlp_norm': jnp.ones((HIDDEN,), jnp.float32),
            'wqkv': nrm((HIDDEN, 3 * HIDDEN)),   # concatenated [wq | wk | wv]
            'wo': nrm((HIDDEN, HIDDEN)),
        }
        if i in MOE_LAYERS:
            p['moe'] = {
                'router': nrm((HIDDEN, N_EXPERTS)),
                'wgu': nrm((N_EXPERTS, HIDDEN, 2 * INTER)),   # [gate | up]
                'wd': nrm((N_EXPERTS, INTER, HIDDEN)),
            }
        else:
            p['wgu'] = nrm((HIDDEN, 2 * INTER))               # [gate | up]
            p['wd'] = nrm((INTER, HIDDEN))
        params['layers'].append(p)
    return params


# ------------------------------------ main ----------------------------------------
if __name__ == "__main__":
    key = jax.random.PRNGKey(0)
    pkey, dkey = jax.random.split(key)
    params = init_params(pkey)

    B, S = 2, 8
    input_ids = jax.random.randint(dkey, (B, S), 0, VOCAB, dtype=jnp.int32)
    labels = input_ids  # next-token prediction on the same sequence

    out = forward_jit(params, input_ids, labels)
    jax.block_until_ready(out['logits'])
    jax.block_until_ready(out['loss'])
    for v in out['aux_losses'].values():
        jax.block_until_ready(v)

    assert out['logits'].shape == (B, S, VOCAB)
    assert out['hidden_states'].shape == (B, S, HIDDEN)
    assert bool(jnp.isfinite(out['loss']))
    for v in out['aux_losses'].values():
        assert bool(jnp.isfinite(v))
    print("KERNEL_OK")
</pallas_src>

<mosaic_0001>
module attributes {stable_mosaic.version = 11 : i64} {
  func.func @_qkv_rope_kernel(%arg0: i32, %arg1: memref<16x64xbf16, #tpu.memory_space<vmem>>, %arg2: memref<1x64xf32, #tpu.memory_space<vmem>>, %arg3: memref<64x192xf32, #tpu.memory_space<vmem>>, %arg4: memref<16x128xf32, #tpu.memory_space<vmem>>, %arg5: memref<16x128xf32, #tpu.memory_space<vmem>>, %arg6: memref<16x192xbf16, #tpu.memory_space<vmem>>) attributes {dimension_semantics = [#tpu.dimension_semantics<parallel>], iteration_bounds = array<i64: 1>, scalar_prefetch = 0 : i64, scratch_operands = 0 : i64, tpu.core_type = #tpu.core_type<tc>, window_params = [{transform_indices = @transform_0, window_bounds = array<i64: 16, 64>}, {pipeline_mode = #tpu.pipeline_mode<synchronous>, transform_indices = @transform_1, window_bounds = array<i64: 1, 64>}, {pipeline_mode = #tpu.pipeline_mode<synchronous>, transform_indices = @transform_2, window_bounds = array<i64: 64, 192>}, {transform_indices = @transform_3, window_bounds = array<i64: 16, 128>}, {transform_indices = @transform_4, window_bounds = array<i64: 16, 128>}, {transform_indices = @transform_5, window_bounds = array<i64: 16, 192>}]} {
    %c0 = arith.constant 0 : index
    %c0_0 = arith.constant 0 : index
    %0 = vector.load %arg1[%c0, %c0_0] : memref<16x64xbf16, #tpu.memory_space<vmem>>, vector<16x64xbf16>
    %c0_1 = arith.constant 0 : index
    %c0_2 = arith.constant 0 : index
    %1 = vector.load %arg2[%c0_1, %c0_2] : memref<1x64xf32, #tpu.memory_space<vmem>>, vector<1x64xf32>
    %2 = arith.extf %0 : vector<16x64xbf16> to vector<16x64xf32>
    %3 = arith.mulf %2, %2 : vector<16x64xf32>
    %cst = arith.constant dense<0.000000e+00> : vector<16xf32>
    %4 = vector.multi_reduction <add>, %3, %cst [1] : vector<16x64xf32> to vector<16xf32>
    %5 = vector.shape_cast %4 : vector<16xf32> to vector<16x1xf32>
    %cst_3 = arith.constant 6.400000e+01 : f32
    %6 = vector.broadcast %cst_3 : f32 to vector<16x1xf32>
    %7 = arith.divf %5, %6 : vector<16x1xf32>
    %cst_4 = arith.constant 9.99999997E-7 : f32
    %8 = vector.broadcast %cst_4 : f32 to vector<16x1xf32>
    %9 = arith.addf %7, %8 : vector<16x1xf32>
    %10 = math.rsqrt %9 : vector<16x1xf32>
    %11 = vector.broadcast %10 : vector<16x1xf32> to vector<16x64xf32>
    %12 = arith.mulf %2, %11 : vector<16x64xf32>
    %13 = vector.broadcast %1 : vector<1x64xf32> to vector<16x64xf32>
    %14 = arith.mulf %12, %13 : vector<16x64xf32>
    %15 = arith.truncf %14 : vector<16x64xf32> to vector<16x64xbf16>
    %c0_5 = arith.constant 0 : index
    %c0_6 = arith.constant 0 : index
    %16 = vector.load %arg3[%c0_5, %c0_6] : memref<64x192xf32, #tpu.memory_space<vmem>>, vector<64x192xf32>
    %17 = arith.truncf %16 : vector<64x192xf32> to vector<64x192xbf16>
    %cst_7 = arith.constant dense<0.000000e+00> : vector<16x192xf32>
    %18 = tpu.matmul %15, %17, %cst_7 {dimension_numbers = #tpu.dot_dimension_numbers<[1], [0], [0], [1], [0, 0, 1, 1], [], []>} : vector<16x64xbf16>, vector<64x192xbf16>, vector<16x192xf32> -> vector<16x192xf32>
    %19 = vector.extract_strided_slice %18 {offsets = [0, 0], sizes = [16, 128], strides = [1, 1]} : vector<16x192xf32> to vector<16x128xf32>
    %20 = vector.extract_strided_slice %18 {offsets = [0, 128], sizes = [16, 64], strides = [1, 1]} : vector<16x192xf32> to vector<16x64xf32>
    %c8_i32 = arith.constant 8 : i32
    %21 = tpu.dynamic_rotate %19 by %c8_i32 dim 1 : vector<16x128xf32>, i32 -> vector<16x128xf32>
    %c120_i32 = arith.constant 120 : i32
    %22 = tpu.dynamic_rotate %19 by %c120_i32 dim 1 : vector<16x128xf32>, i32 -> vector<16x128xf32>
    %23 = tpu.iota {dimensions = array<i32: 1>} : vector<16x128xi32>
    %c16_i32 = arith.constant 16 : i32
    %c0_i32 = arith.constant 0 : i32
    %24 = arith.cmpi eq, %c16_i32, %c0_i32 : i32
    %c1_i32 = arith.constant 1 : i32
    %25 = arith.select %24, %c1_i32, %c16_i32 : i32
    %26 = vector.broadcast %25 : i32 to vector<16x128xi32>
    %27 = arith.remsi %23, %26 : vector<16x128xi32>
    %c0_i32_8 = arith.constant 0 : i32
    %28 = vector.broadcast %c0_i32_8 : i32 to vector<16x128xi32>
    %29 = arith.cmpi ne, %27, %28 : vector<16x128xi32>
    %c0_i32_9 = arith.constant 0 : i32
    %30 = vector.broadcast %c0_i32_9 : i32 to vector<16x128xi32>
    %31 = arith.cmpi slt, %27, %30 : vector<16x128xi32>
    %c0_i32_10 = arith.constant 0 : i32
    %32 = arith.cmpi slt, %25, %c0_i32_10 : i32
    %33 = vector.broadcast %32 : i1 to vector<16x128xi1>
    %34 = vector.broadcast %33 : vector<16x128xi1> to vector<16x128xi1>
    %35 = arith.xori %31, %34 : vector<16x128xi1>
    %36 = arith.andi %35, %29 : vector<16x128xi1>
    %37 = vector.broadcast %25 : i32 to vector<16x128xi32>
    %38 = arith.addi %27, %37 : vector<16x128xi32>
    %39 = arith.select %36, %38, %27 : vector<16x128xi1>, vector<16x128xi32>
    %c8_i32_11 = arith.constant 8 : i32
    %40 = vector.broadcast %c8_i32_11 : i32 to vector<16x128xi32>
    %41 = arith.cmpi slt, %39, %40 : vector<16x128xi32>
    %cst_12 = arith.constant 0.000000e+00 : f32
    %42 = vector.broadcast %cst_12 : f32 to vector<16x128xf32>
    %43 = arith.subf %42, %22 : vector<16x128xf32>
    %44 = arith.select %41, %43, %21 : vector<16x128xi1>, vector<16x128xf32>
    %c0_13 = arith.constant 0 : index
    %c0_14 = arith.constant 0 : index
    %45 = vector.load %arg4[%c0_13, %c0_14] : memref<16x128xf32, #tpu.memory_space<vmem>>, vector<16x128xf32>
    %46 = arith.mulf %19, %45 : vector<16x128xf32>
    %c0_15 = arith.constant 0 : index
    %c0_16 = arith.constant 0 : index
    %47 = vector.load %arg5[%c0_15, %c0_16] : memref<16x128xf32, #tpu.memory_space<vmem>>, vector<16x128xf32>
    %48 = arith.mulf %44, %47 : vector<16x128xf32>
    %49 = arith.addf %46, %48 : vector<16x128xf32>
    %50 = arith.truncf %49 : vector<16x128xf32> to vector<16x128xbf16>
    %c0_17 = arith.constant 0 : index
    %c0_18 = arith.constant 0 : index
    %51 = vector.load %arg6[%c0_17, %c0_18] : memref<16x192xbf16, #tpu.memory_space<vmem>>, vector<16x128xbf16>
    tpu.vector_store %arg6[%c0_17, %c0_18], %50 {strides = array<i32>} : memref<16x192xbf16, #tpu.memory_space<vmem>>, vector<16x128xbf16>,
    %52 = arith.truncf %20 : vector<16x64xf32> to vector<16x64xbf16>
    %c0_19 = arith.constant 0 : index
    %c128 = arith.constant 128 : index
    %53 = vector.load %arg6[%c0_19, %c128] : memref<16x192xbf16, #tpu.memory_space<vmem>>, vector<16x64xbf16>
    tpu.vector_store %arg6[%c0_19, %c128], %52 {strides = array<i32>} : memref<16x192xbf16, #tpu.memory_space<vmem>>, vector<16x64xbf16>,
    return
  }
  func.func @transform_0(%arg0: i32) -> (i32, i32) {
    %c0_i32 = arith.constant 0 : i32
    %c0_i32_0 = arith.constant 0 : i32
    return %arg0, %c0_i32 : i32, i32
  }
  func.func @transform_1(%arg0: i32) -> (i32, i32) {
    %c0_i32 = arith.constant 0 : i32
    %c0_i32_0 = arith.constant 0 : i32
    %c0_i32_1 = arith.constant 0 : i32
    return %c0_i32, %c0_i32_0 : i32, i32
  }
  func.func @transform_2(%arg0: i32) -> (i32, i32) {
    %c0_i32 = arith.constant 0 : i32
    %c0_i32_0 = arith.constant 0 : i32
    %c0_i32_1 = arith.constant 0 : i32
    return %c0_i32, %c0_i32_0 : i32, i32
  }
  func.func @transform_3(%arg0: i32) -> (i32, i32) {
    %c0_i32 = arith.constant 0 : i32
    %c0_i32_0 = arith.constant 0 : i32
    return %arg0, %c0_i32 : i32, i32
  }
  func.func @transform_4(%arg0: i32) -> (i32, i32) {
    %c0_i32 = arith.constant 0 : i32
    %c0_i32_0 = arith.constant 0 : i32
    return %arg0, %c0_i32 : i32, i32
  }
  func.func @transform_5(%arg0: i32) -> (i32, i32) {
    %c0_i32 = arith.constant 0 : i32
    %c0_i32_0 = arith.constant 0 : i32
    return %arg0, %c0_i32 : i32, i32
  }
}

module attributes {stable_mosaic.version = 11 : i64} {
  func.func @_attn_kernel(%arg0: i32, %arg1: memref<1x8x64xbf16, #tpu.memory_space<vmem>>, %arg2: memref<1x4x8x16xbf16, #tpu.memory_space<vmem>>, %arg3: memref<1x4x8x16xbf16, #tpu.memory_space<vmem>>, %arg4: memref<1x4x8x16xbf16, #tpu.memory_space<vmem>>, %arg5: memref<4x16x64xf32, #tpu.memory_space<vmem>>, %arg6: memref<1x8x64xbf16, #tpu.memory_space<vmem>>) attributes {dimension_semantics = [#tpu.dimension_semantics<parallel>], iteration_bounds = array<i64: 2>, scalar_prefetch = 0 : i64, scratch_operands = 0 : i64, tpu.core_type = #tpu.core_type<tc>, window_params = [{transform_indices = @transform_0, window_bounds = array<i64: 1, 8, 64>}, {transform_indices = @transform_1, window_bounds = array<i64: 1, 4, 8, 16>}, {transform_indices = @transform_2, window_bounds = array<i64: 1, 4, 8, 16>}, {transform_indices = @transform_3, window_bounds = array<i64: 1, 4, 8, 16>}, {pipeline_mode = #tpu.pipeline_mode<synchronous>, transform_indices = @transform_4, window_bounds = array<i64: 4, 16, 64>}, {transform_indices = @transform_5, window_bounds = array<i64: 1, 8, 64>}]} {
    %c0 = arith.constant 0 : index
    %c0_0 = arith.constant 0 : index
    %c0_1 = arith.constant 0 : index
    %0 = vector.load %arg1[%c0, %c0_0, %c0_1] : memref<1x8x64xbf16, #tpu.memory_space<vmem>>, vector<1x8x64xbf16>
    %1 = vector.shape_cast %0 : vector<1x8x64xbf16> to vector<8x64xbf16>
    %2 = arith.extf %1 : vector<8x64xbf16> to vector<8x64xf32>
    %c0_2 = arith.constant 0 : index
    %c0_3 = arith.constant 0 : index
    %c0_4 = arith.constant 0 : index
    %c0_5 = arith.constant 0 : index
    %3 = vector.load %arg2[%c0_2, %c0_3, %c0_4, %c0_5] : memref<1x4x8x16xbf16, #tpu.memory_space<vmem>>, vector<1x4x8x16xbf16>
    %4 = vector.shape_cast %3 : vector<1x4x8x16xbf16> to vector<4x8x16xbf16>
    %c0_6 = arith.constant 0 : index
    %c0_7 = arith.constant 0 : index
    %c0_8 = arith.constant 0 : index
    %c0_9 = arith.constant 0 : index
    %5 = vector.load %arg3[%c0_6, %c0_7, %c0_8, %c0_9] : memref<1x4x8x16xbf16, #tpu.memory_space<vmem>>, vector<1x4x8x16xbf16>
    %6 = vector.shape_cast %5 : vector<1x4x8x16xbf16> to vector<4x8x16xbf16>
    %c0_10 = arith.constant 0 : index
    %c0_11 = arith.constant 0 : index
    %c0_12 = arith.constant 0 : index
    %c0_13 = arith.constant 0 : index
    %7 = vector.load %arg4[%c0_10, %c0_11, %c0_12, %c0_13] : memref<1x4x8x16xbf16, #tpu.memory_space<vmem>>, vector<1x4x8x16xbf16>
    %8 = vector.shape_cast %7 : vector<1x4x8x16xbf16> to vector<4x8x16xbf16>
    %cst = arith.constant dense<0.000000e+00> : vector<4x8x8xf32>
    %9 = tpu.matmul %4, %6, %cst {dimension_numbers = #tpu.dot_dimension_numbers<[2], [2], [1], [1], [0, 0, 0, 1, 1, 1], [0], [0]>} : vector<4x8x16xbf16>, vector<4x8x16xbf16>, vector<4x8x8xf32> -> vector<4x8x8xf32>
    %10 = tpu.iota {dimensions = array<i32: 1>} : vector<4x8x8xi32>
    %11 = tpu.iota {dimensions = array<i32: 2>} : vector<4x8x8xi32>
    %12 = arith.cmpi sle, %11, %10 : vector<4x8x8xi32>
    %cst_14 = arith.constant -1.000000e+30 : f32
    %13 = vector.broadcast %cst_14 : f32 to vector<4x8x8xf32>
    %14 = arith.select %12, %9, %13 : vector<4x8x8xi1>, vector<4x8x8xf32>
    %cst_15 = arith.constant dense<0xFF800000> : vector<4x8xf32>
    %15 = vector.multi_reduction <maximumf>, %14, %cst_15 [2] : vector<4x8x8xf32> to vector<4x8xf32>
    %16 = vector.shape_cast %15 : vector<4x8xf32> to vector<4x8x1xf32>
    %17 = vector.broadcast %16 : vector<4x8x1xf32> to vector<4x8x8xf32>
    %18 = arith.subf %14, %17 : vector<4x8x8xf32>
    %19 = math.exp %18 : vector<4x8x8xf32>
    %cst_16 = arith.constant dense<0.000000e+00> : vector<4x8xf32>
    %20 = vector.multi_reduction <add>, %19, %cst_16 [2] : vector<4x8x8xf32> to vector<4x8xf32>
    %21 = vector.shape_cast %20 : vector<4x8xf32> to vector<4x8x1xf32>
    %22 = vector.broadcast %21 : vector<4x8x1xf32> to vector<4x8x8xf32>
    %23 = arith.divf %19, %22 : vector<4x8x8xf32>
    %24 = arith.truncf %23 : vector<4x8x8xf32> to vector<4x8x8xbf16>
    %cst_17 = arith.constant dense<0.000000e+00> : vector<4x8x16xf32>
    %25 = tpu.matmul %24, %8, %cst_17 {dimension_numbers = #tpu.dot_dimension_numbers<[2], [1], [1], [2], [0, 0, 0, 1, 1, 2], [0], [0]>} : vector<4x8x8xbf16>, vector<4x8x16xbf16>, vector<4x8x16xf32> -> vector<4x8x16xf32>
    %26 = arith.truncf %25 : vector<4x8x16xf32> to vector<4x8x16xbf16>
    %c0_18 = arith.constant 0 : index
    %c0_19 = arith.constant 0 : index
    %c0_20 = arith.constant 0 : index
    %27 = vector.load %arg5[%c0_18, %c0_19, %c0_20] : memref<4x16x64xf32, #tpu.memory_space<vmem>>, vector<4x16x64xf32>
    %28 = arith.truncf %27 : vector<4x16x64xf32> to vector<4x16x64xbf16>
    %cst_21 = arith.constant dense<0.000000e+00> : vector<4x8x64xf32>
    %29 = tpu.matmul %26, %28, %cst_21 {dimension_numbers = #tpu.dot_dimension_numbers<[2], [1], [1], [2], [0, 0, 0, 1, 1, 2], [0], [0]>} : vector<4x8x16xbf16>, vector<4x16x64xbf16>, vector<4x8x64xf32> -> vector<4x8x64xf32>
    %cst_22 = arith.constant dense<0.000000e+00> : vector<8x64xf32>
    %30 = vector.multi_reduction <add>, %29, %cst_22 [0] : vector<4x8x64xf32> to vector<8x64xf32>
    %31 = arith.addf %2, %30 : vector<8x64xf32>
    %32 = arith.truncf %31 : vector<8x64xf32> to vector<8x64xbf16>
    %c0_23 = arith.constant 0 : index
    %c0_24 = arith.constant 0 : index
    %c0_25 = arith.constant 0 : index
    %33 = vector.load %arg6[%c0_23, %c0_24, %c0_25] : memref<1x8x64xbf16, #tpu.memory_space<vmem>>, vector<1x8x64xbf16>
    %34 = vector.shape_cast %33 : vector<1x8x64xbf16> to vector<8x64xbf16>
    %35 = vector.shape_cast %32 : vector<8x64xbf16> to vector<1x8x64xbf16>
    tpu.vector_store %arg6[%c0_23, %c0_24, %c0_25], %35 {strides = array<i32>} : memref<1x8x64xbf16, #tpu.memory_space<vmem>>, vector<1x8x64xbf16>,
    return
  }
  func.func @transform_0(%arg0: i32) -> (i32, i32, i32) {
    %c0_i32 = arith.constant 0 : i32
    %c0_i32_0 = arith.constant 0 : i32
    %c0_i32_1 = arith.constant 0 : i32
    return %arg0, %c0_i32, %c0_i32_0 : i32, i32, i32
  }
  func.func @transform_1(%arg0: i32) -> (i32, i32, i32, i32) {
    %c0_i32 = arith.constant 0 : i32
    %c0_i32_0 = arith.constant 0 : i32
    %c0_i32_1 = arith.constant 0 : i32
    %c0_i32_2 = arith.constant 0 : i32
    return %arg0, %c0_i32, %c0_i32_0, %c0_i32_1 : i32, i32, i32, i32
  }
  func.func @transform_2(%arg0: i32) -> (i32, i32, i32, i32) {
    %c0_i32 = arith.constant 0 : i32
    %c0_i32_0 = arith.constant 0 : i32
    %c0_i32_1 = arith.constant 0 : i32
    %c0_i32_2 = arith.constant 0 : i32
    return %arg0, %c0_i32, %c0_i32_0, %c0_i32_1 : i32, i32, i32, i32
  }
  func.func @transform_3(%arg0: i32) -> (i32, i32, i32, i32) {
    %c0_i32 = arith.constant 0 : i32
    %c0_i32_0 = arith.constant 0 : i32
    %c0_i32_1 = arith.constant 0 : i32
    %c0_i32_2 = arith.constant 0 : i32
    return %arg0, %c0_i32, %c0_i32_0, %c0_i32_1 : i32, i32, i32, i32
  }
  func.func @transform_4(%arg0: i32) -> (i32, i32, i32) {
    %c0_i32 = arith.constant 0 : i32
    %c0_i32_0 = arith.constant 0 : i32
    %c0_i32_1 = arith.constant 0 : i32
    %c0_i32_2 = arith.constant 0 : i32
    return %c0_i32, %c0_i32_0, %c0_i32_1 : i32, i32, i32
  }
  func.func @transform_5(%arg0: i32) -> (i32, i32, i32) {
    %c0_i32 = arith.constant 0 : i32
    %c0_i32_0 = arith.constant 0 : i32
    %c0_i32_1 = arith.constant 0 : i32
    return %arg0, %c0_i32, %c0_i32_0 : i32, i32, i32
  }
}

module attributes {stable_mosaic.version = 11 : i64} {
  func.func @_dense_ffn_kernel(%arg0: i32, %arg1: memref<16x64xbf16, #tpu.memory_space<vmem>>, %arg2: memref<1x64xf32, #tpu.memory_space<vmem>>, %arg3: memref<64x256xf32, #tpu.memory_space<vmem>>, %arg4: memref<128x64xf32, #tpu.memory_space<vmem>>, %arg5: memref<16x64xbf16, #tpu.memory_space<vmem>>) attributes {dimension_semantics = [#tpu.dimension_semantics<parallel>], iteration_bounds = array<i64: 1>, scalar_prefetch = 0 : i64, scratch_operands = 0 : i64, tpu.core_type = #tpu.core_type<tc>, window_params = [{transform_indices = @transform_0, window_bounds = array<i64: 16, 64>}, {pipeline_mode = #tpu.pipeline_mode<synchronous>, transform_indices = @transform_1, window_bounds = array<i64: 1, 64>}, {pipeline_mode = #tpu.pipeline_mode<synchronous>, transform_indices = @transform_2, window_bounds = array<i64: 64, 256>}, {pipeline_mode = #tpu.pipeline_mode<synchronous>, transform_indices = @transform_3, window_bounds = array<i64: 128, 64>}, {transform_indices = @transform_4, window_bounds = array<i64: 16, 64>}]} {
    %c0 = arith.constant 0 : index
    %c0_0 = arith.constant 0 : index
    %0 = vector.load %arg1[%c0, %c0_0] : memref<16x64xbf16, #tpu.memory_space<vmem>>, vector<16x64xbf16>
    %1 = arith.extf %0 : vector<16x64xbf16> to vector<16x64xf32>
    %c0_1 = arith.constant 0 : index
    %c0_2 = arith.constant 0 : index
    %2 = vector.load %arg2[%c0_1, %c0_2] : memref<1x64xf32, #tpu.memory_space<vmem>>, vector<1x64xf32>
    %3 = arith.mulf %1, %1 : vector<16x64xf32>
    %cst = arith.constant dense<0.000000e+00> : vector<16xf32>
    %4 = vector.multi_reduction <add>, %3, %cst [1] : vector<16x64xf32> to vector<16xf32>
    %5 = vector.shape_cast %4 : vector<16xf32> to vector<16x1xf32>
    %cst_3 = arith.constant 6.400000e+01 : f32
    %6 = vector.broadcast %cst_3 : f32 to vector<16x1xf32>
    %7 = arith.divf %5, %6 : vector<16x1xf32>
    %cst_4 = arith.constant 9.99999997E-7 : f32
    %8 = vector.broadcast %cst_4 : f32 to vector<16x1xf32>
    %9 = arith.addf %7, %8 : vector<16x1xf32>
    %10 = math.rsqrt %9 : vector<16x1xf32>
    %11 = vector.broadcast %10 : vector<16x1xf32> to vector<16x64xf32>
    %12 = arith.mulf %1, %11 : vector<16x64xf32>
    %13 = vector.broadcast %2 : vector<1x64xf32> to vector<16x64xf32>
    %14 = arith.mulf %12, %13 : vector<16x64xf32>
    %15 = arith.truncf %14 : vector<16x64xf32> to vector<16x64xbf16>
    %c0_5 = arith.constant 0 : index
    %c0_6 = arith.constant 0 : index
    %16 = vector.load %arg3[%c0_5, %c0_6] : memref<64x256xf32, #tpu.memory_space<vmem>>, vector<64x256xf32>
    %17 = arith.truncf %16 : vector<64x256xf32> to vector<64x256xbf16>
    %cst_7 = arith.constant dense<0.000000e+00> : vector<16x256xf32>
    %18 = tpu.matmul %15, %17, %cst_7 {dimension_numbers = #tpu.dot_dimension_numbers<[1], [0], [0], [1], [0, 0, 1, 1], [], []>} : vector<16x64xbf16>, vector<64x256xbf16>, vector<16x256xf32> -> vector<16x256xf32>
    %19 = vector.extract_strided_slice %18 {offsets = [0, 0], sizes = [16, 128], strides = [1, 1]} : vector<16x256xf32> to vector<16x128xf32>
    %20 = vector.extract_strided_slice %18 {offsets = [0, 128], sizes = [16, 128], strides = [1, 1]} : vector<16x256xf32> to vector<16x128xf32>
    %21 = arith.negf %19 : vector<16x128xf32>
    %22 = math.exp %21 : vector<16x128xf32>
    %cst_8 = arith.constant 1.000000e+00 : f32
    %23 = vector.broadcast %cst_8 : f32 to vector<16x128xf32>
    %24 = arith.addf %23, %22 : vector<16x128xf32>
    %25 = arith.divf %23, %24 : vector<16x128xf32>
    %26 = arith.mulf %19, %25 : vector<16x128xf32>
    %27 = arith.mulf %26, %20 : vector<16x128xf32>
    %28 = arith.truncf %27 : vector<16x128xf32> to vector<16x128xbf16>
    %c0_9 = arith.constant 0 : index
    %c0_10 = arith.constant 0 : index
    %29 = vector.load %arg4[%c0_9, %c0_10] : memref<128x64xf32, #tpu.memory_space<vmem>>, vector<128x64xf32>
    %30 = arith.truncf %29 : vector<128x64xf32> to vector<128x64xbf16>
    %cst_11 = arith.constant dense<0.000000e+00> : vector<16x64xf32>
    %31 = tpu.matmul %28, %30, %cst_11 {dimension_numbers = #tpu.dot_dimension_numbers<[1], [0], [0], [1], [0, 0, 1, 1], [], []>} : vector<16x128xbf16>, vector<128x64xbf16>, vector<16x64xf32> -> vector<16x64xf32>
    %32 = arith.addf %1, %31 : vector<16x64xf32>
    %33 = arith.truncf %32 : vector<16x64xf32> to vector<16x64xbf16>
    %c0_12 = arith.constant 0 : index
    %c0_13 = arith.constant 0 : index
    %34 = vector.load %arg5[%c0_12, %c0_13] : memref<16x64xbf16, #tpu.memory_space<vmem>>, vector<16x64xbf16>
    tpu.vector_store %arg5[%c0_12, %c0_13], %33 {strides = array<i32>} : memref<16x64xbf16, #tpu.memory_space<vmem>>, vector<16x64xbf16>,
    return
  }
  func.func @transform_0(%arg0: i32) -> (i32, i32) {
    %c0_i32 = arith.constant 0 : i32
    %c0_i32_0 = arith.constant 0 : i32
    return %arg0, %c0_i32 : i32, i32
  }
  func.func @transform_1(%arg0: i32) -> (i32, i32) {
    %c0_i32 = arith.constant 0 : i32
    %c0_i32_0 = arith.constant 0 : i32
    %c0_i32_1 = arith.constant 0 : i32
    return %c0_i32, %c0_i32_0 : i32, i32
  }
  func.func @transform_2(%arg0: i32) -> (i32, i32) {
    %c0_i32 = arith.constant 0 : i32
    %c0_i32_0 = arith.constant 0 : i32
    %c0_i32_1 = arith.constant 0 : i32
    return %c0_i32, %c0_i32_0 : i32, i32
  }
  func.func @transform_3(%arg0: i32) -> (i32, i32) {
    %c0_i32 = arith.constant 0 : i32
    %c0_i32_0 = arith.constant 0 : i32
    %c0_i32_1 = arith.constant 0 : i32
    return %c0_i32, %c0_i32_0 : i32, i32
  }
  func.func @transform_4(%arg0: i32) -> (i32, i32) {
    %c0_i32 = arith.constant 0 : i32
    %c0_i32_0 = arith.constant 0 : i32
    return %arg0, %c0_i32 : i32, i32
  }
}

module attributes {stable_mosaic.version = 11 : i64} {
  func.func @_moe_kernel(%arg0: i32, %arg1: i32, %arg2: memref<1x4xi32, #tpu.memory_space<smem>>, %arg3: memref<16x64xbf16, #tpu.memory_space<vmem>>, %arg4: memref<1x64xf32, #tpu.memory_space<vmem>>, %arg5: memref<1x64x256xf32, #tpu.memory_space<vmem>>, %arg6: memref<1x128x64xf32, #tpu.memory_space<vmem>>, %arg7: memref<1x16x1xf32, #tpu.memory_space<vmem>>, %arg8: memref<16x64xbf16, #tpu.memory_space<vmem>>, %arg9: memref<16x64xbf16, #tpu.memory_space<vmem>>, %arg10: memref<16x64xf32, #tpu.memory_space<vmem>>) attributes {dimension_semantics = [#tpu.dimension_semantics<parallel>, #tpu.dimension_semantics<arbitrary>], iteration_bounds = array<i64: 1, 4>, scalar_prefetch = 1 : i64, scratch_operands = 2 : i64, tpu.core_type = #tpu.core_type<tc>, window_params = [{transform_indices = @transform_0, window_bounds = array<i64: 16, 64>}, {pipeline_mode = #tpu.pipeline_mode<synchronous>, transform_indices = @transform_1, window_bounds = array<i64: 1, 64>}, {transform_indices = @transform_2, window_bounds = array<i64: 1, 64, 256>}, {transform_indices = @transform_3, window_bounds = array<i64: 1, 128, 64>}, {transform_indices = @transform_4, window_bounds = array<i64: 1, 16, 1>}, {transform_indices = @transform_5, window_bounds = array<i64: 16, 64>}]} {
    %c0_i32 = arith.constant 0 : i32
    %0 = arith.cmpi eq, %arg1, %c0_i32 : i32
    %1 = arith.extui %0 : i1 to i32
    %c0_i32_0 = arith.constant 0 : i32
    %2 = arith.cmpi ne, %1, %c0_i32_0 : i32
    scf.if %2 {
      %c0 = arith.constant 0 : index
      %c0_4 = arith.constant 0 : index
      %12 = vector.load %arg3[%c0, %c0_4] : memref<16x64xbf16, #tpu.memory_space<vmem>>, vector<16x64xbf16>
      %13 = arith.extf %12 : vector<16x64xbf16> to vector<16x64xf32>
      %c0_5 = arith.constant 0 : index
      %c0_6 = arith.constant 0 : index
      %14 = vector.load %arg10[%c0_5, %c0_6] : memref<16x64xf32, #tpu.memory_space<vmem>>, vector<16x64xf32>
      tpu.vector_store %arg10[%c0_5, %c0_6], %13 {strides = array<i32>} : memref<16x64xf32, #tpu.memory_space<vmem>>, vector<16x64xf32>,
      %c0_7 = arith.constant 0 : index
      %c0_8 = arith.constant 0 : index
      %15 = vector.load %arg4[%c0_7, %c0_8] : memref<1x64xf32, #tpu.memory_space<vmem>>, vector<1x64xf32>
      %16 = arith.mulf %13, %13 : vector<16x64xf32>
      %cst = arith.constant dense<0.000000e+00> : vector<16xf32>
      %17 = vector.multi_reduction <add>, %16, %cst [1] : vector<16x64xf32> to vector<16xf32>
      %18 = vector.shape_cast %17 : vector<16xf32> to vector<16x1xf32>
      %cst_9 = arith.constant 6.400000e+01 : f32
      %19 = vector.broadcast %cst_9 : f32 to vector<16x1xf32>
      %20 = arith.divf %18, %19 : vector<16x1xf32>
      %cst_10 = arith.constant 9.99999997E-7 : f32
      %21 = vector.broadcast %cst_10 : f32 to vector<16x1xf32>
      %22 = arith.addf %20, %21 : vector<16x1xf32>
      %23 = math.rsqrt %22 : vector<16x1xf32>
      %24 = vector.broadcast %23 : vector<16x1xf32> to vector<16x64xf32>
      %25 = arith.mulf %13, %24 : vector<16x64xf32>
      %26 = vector.broadcast %15 : vector<1x64xf32> to vector<16x64xf32>
      %27 = arith.mulf %25, %26 : vector<16x64xf32>
      %28 = arith.truncf %27 : vector<16x64xf32> to vector<16x64xbf16>
      %c0_11 = arith.constant 0 : index
      %c0_12 = arith.constant 0 : index
      %29 = vector.load %arg9[%c0_11, %c0_12] : memref<16x64xbf16, #tpu.memory_space<vmem>>, vector<16x64xbf16>
      tpu.vector_store %arg9[%c0_11, %c0_12], %28 {strides = array<i32>} : memref<16x64xbf16, #tpu.memory_space<vmem>>, vector<16x64xbf16>,
    } else {
    }
    %3 = arith.index_cast %arg0 : i32 to index
    %4 = arith.index_cast %arg1 : i32 to index
    %5 = memref.load %arg2[%3, %4] : memref<1x4xi32, #tpu.memory_space<smem>>
    %c0_i32_1 = arith.constant 0 : i32
    %6 = arith.cmpi ne, %5, %c0_i32_1 : i32
    %7 = arith.extui %6 : i1 to i32
    %c0_i32_2 = arith.constant 0 : i32
    %8 = arith.cmpi ne, %7, %c0_i32_2 : i32
    scf.if %8 {
      %c0 = arith.constant 0 : index
      %c0_4 = arith.constant 0 : index
      %12 = vector.load %arg9[%c0, %c0_4] : memref<16x64xbf16, #tpu.memory_space<vmem>>, vector<16x64xbf16>
      %c0_5 = arith.constant 0 : index
      %c0_6 = arith.constant 0 : index
      %c0_7 = arith.constant 0 : index
      %13 = vector.load %arg5[%c0_5, %c0_6, %c0_7] : memref<1x64x256xf32, #tpu.memory_space<vmem>>, vector<1x64x256xf32>
      %14 = vector.shape_cast %13 : vector<1x64x256xf32> to vector<64x256xf32>
      %15 = arith.truncf %14 : vector<64x256xf32> to vector<64x256xbf16>
      %cst = arith.constant dense<0.000000e+00> : vector<16x256xf32>
      %16 = tpu.matmul %12, %15, %cst {dimension_numbers = #tpu.dot_dimension_numbers<[1], [0], [0], [1], [0, 0, 1, 1], [], []>} : vector<16x64xbf16>, vector<64x256xbf16>, vector<16x256xf32> -> vector<16x256xf32>
      %17 = vector.extract_strided_slice %16 {offsets = [0, 0], sizes = [16, 128], strides = [1, 1]} : vector<16x256xf32> to vector<16x128xf32>
      %18 = vector.extract_strided_slice %16 {offsets = [0, 128], sizes = [16, 128], strides = [1, 1]} : vector<16x256xf32> to vector<16x128xf32>
      %19 = arith.negf %17 : vector<16x128xf32>
      %20 = math.exp %19 : vector<16x128xf32>
      %cst_8 = arith.constant 1.000000e+00 : f32
      %21 = vector.broadcast %cst_8 : f32 to vector<16x128xf32>
      %22 = arith.addf %21, %20 : vector<16x128xf32>
      %23 = arith.divf %21, %22 : vector<16x128xf32>
      %24 = arith.mulf %17, %23 : vector<16x128xf32>
      %25 = arith.mulf %24, %18 : vector<16x128xf32>
      %26 = arith.truncf %25 : vector<16x128xf32> to vector<16x128xbf16>
      %c0_9 = arith.constant 0 : index
      %c0_10 = arith.constant 0 : index
      %c0_11 = arith.constant 0 : index
      %27 = vector.load %arg6[%c0_9, %c0_10, %c0_11] : memref<1x128x64xf32, #tpu.memory_space<vmem>>, vector<1x128x64xf32>
      %28 = vector.shape_cast %27 : vector<1x128x64xf32> to vector<128x64xf32>
      %29 = arith.truncf %28 : vector<128x64xf32> to vector<128x64xbf16>
      %cst_12 = arith.constant dense<0.000000e+00> : vector<16x64xf32>
      %30 = tpu.matmul %26, %29, %cst_12 {dimension_numbers = #tpu.dot_dimension_numbers<[1], [0], [0], [1], [0, 0, 1, 1], [], []>} : vector<16x128xbf16>, vector<128x64xbf16>, vector<16x64xf32> -> vector<16x64xf32>
      %c0_13 = arith.constant 0 : index
      %c0_14 = arith.constant 0 : index
      %31 = vector.load %arg10[%c0_13, %c0_14] : memref<16x64xf32, #tpu.memory_space<vmem>>, vector<16x64xf32>
      %c0_15 = arith.constant 0 : index
      %c0_16 = arith.constant 0 : index
      %c0_17 = arith.constant 0 : index
      %32 = vector.load %arg7[%c0_15, %c0_16, %c0_17] : memref<1x16x1xf32, #tpu.memory_space<vmem>>, vector<1x16x1xf32>
      %33 = vector.shape_cast %32 : vector<1x16x1xf32> to vector<16x1xf32>
      %34 = vector.broadcast %33 : vector<16x1xf32> to vector<16x64xf32>
      %35 = arith.mulf %34, %30 : vector<16x64xf32>
      %36 = arith.addf %31, %35 : vector<16x64xf32>
      %c0_18 = arith.constant 0 : index
      %c0_19 = arith.constant 0 : index
      %37 = vector.load %arg10[%c0_18, %c0_19] : memref<16x64xf32, #tpu.memory_space<vmem>>, vector<16x64xf32>
      tpu.vector_store %arg10[%c0_18, %c0_19], %36 {strides = array<i32>} : memref<16x64xf32, #tpu.memory_space<vmem>>, vector<16x64xf32>,
    } else {
    }
    %c3_i32 = arith.constant 3 : i32
    %9 = arith.cmpi eq, %arg1, %c3_i32 : i32
    %10 = arith.extui %9 : i1 to i32
    %c0_i32_3 = arith.constant 0 : i32
    %11 = arith.cmpi ne, %10, %c0_i32_3 : i32
    scf.if %11 {
      %c0 = arith.constant 0 : index
      %c0_4 = arith.constant 0 : index
      %12 = vector.load %arg10[%c0, %c0_4] : memref<16x64xf32, #tpu.memory_space<vmem>>, vector<16x64xf32>
      %13 = arith.truncf %12 : vector<16x64xf32> to vector<16x64xbf16>
      %c0_5 = arith.constant 0 : index
      %c0_6 = arith.constant 0 : index
      %14 = vector.load %arg8[%c0_5, %c0_6] : memref<16x64xbf16, #tpu.memory_space<vmem>>, vector<16x64xbf16>
      tpu.vector_store %arg8[%c0_5, %c0_6], %13 {strides = array<i32>} : memref<16x64xbf16, #tpu.memory_space<vmem>>, vector<16x64xbf16>,
    } else {
    }
    return
  }
  func.func @transform_0(%arg0: i32, %arg1: i32, %arg2: memref<1x4xi32, #tpu.memory_space<smem>>) -> (i32, i32) {
    %c0_i32 = arith.constant 0 : i32
    %c0_i32_0 = arith.constant 0 : i32
    return %arg0, %c0_i32 : i32, i32
  }
  func.func @transform_1(%arg0: i32, %arg1: i32, %arg2: memref<1x4xi32, #tpu.memory_space<smem>>) -> (i32, i32) {
    %c0_i32 = arith.constant 0 : i32
    %c0_i32_0 = arith.constant 0 : i32
    %c0_i32_1 = arith.constant 0 : i32
    return %c0_i32, %c0_i32_0 : i32, i32
  }
  func.func @transform_2(%arg0: i32, %arg1: i32, %arg2: memref<1x4xi32, #tpu.memory_space<smem>>) -> (i32, i32, i32) {
    %c0_i32 = arith.constant 0 : i32
    %c0_i32_0 = arith.constant 0 : i32
    %c0_i32_1 = arith.constant 0 : i32
    return %arg1, %c0_i32, %c0_i32_0 : i32, i32, i32
  }
  func.func @transform_3(%arg0: i32, %arg1: i32, %arg2: memref<1x4xi32, #tpu.memory_space<smem>>) -> (i32, i32, i32) {
    %c0_i32 = arith.constant 0 : i32
    %c0_i32_0 = arith.constant 0 : i32
    %c0_i32_1 = arith.constant 0 : i32
    return %arg1, %c0_i32, %c0_i32_0 : i32, i32, i32
  }
  func.func @transform_4(%arg0: i32, %arg1: i32, %arg2: memref<1x4xi32, #tpu.memory_space<smem>>) -> (i32, i32, i32) {
    %c0_i32 = arith.constant 0 : i32
    %c0_i32_0 = arith.constant 0 : i32
    return %arg1, %arg0, %c0_i32 : i32, i32, i32
  }
  func.func @transform_5(%arg0: i32, %arg1: i32, %arg2: memref<1x4xi32, #tpu.memory_space<smem>>) -> (i32, i32) {
    %c0_i32 = arith.constant 0 : i32
    %c0_i32_0 = arith.constant 0 : i32
    return %arg0, %c0_i32 : i32, i32
  }
}

module attributes {stable_mosaic.version = 11 : i64} {
  func.func @_final_kernel(%arg0: i32, %arg1: memref<16x64xbf16, #tpu.memory_space<vmem>>, %arg2: memref<1x64xf32, #tpu.memory_space<vmem>>, %arg3: memref<64x256xf32, #tpu.memory_space<vmem>>, %arg4: memref<16x64xf32, #tpu.memory_space<vmem>>, %arg5: memref<16x256xf32, #tpu.memory_space<vmem>>) attributes {dimension_semantics = [#tpu.dimension_semantics<parallel>], iteration_bounds = array<i64: 1>, scalar_prefetch = 0 : i64, scratch_operands = 0 : i64, tpu.core_type = #tpu.core_type<tc>, window_params = [{transform_indices = @transform_0, window_bounds = array<i64: 16, 64>}, {pipeline_mode = #tpu.pipeline_mode<synchronous>, transform_indices = @transform_1, window_bounds = array<i64: 1, 64>}, {pipeline_mode = #tpu.pipeline_mode<synchronous>, transform_indices = @transform_2, window_bounds = array<i64: 64, 256>}, {transform_indices = @transform_3, window_bounds = array<i64: 16, 64>}, {transform_indices = @transform_4, window_bounds = array<i64: 16, 256>}]} {
    %c0 = arith.constant 0 : index
    %c0_0 = arith.constant 0 : index
    %0 = vector.load %arg1[%c0, %c0_0] : memref<16x64xbf16, #tpu.memory_space<vmem>>, vector<16x64xbf16>
    %c0_1 = arith.constant 0 : index
    %c0_2 = arith.constant 0 : index
    %1 = vector.load %arg2[%c0_1, %c0_2] : memref<1x64xf32, #tpu.memory_space<vmem>>, vector<1x64xf32>
    %2 = arith.extf %0 : vector<16x64xbf16> to vector<16x64xf32>
    %3 = arith.mulf %2, %2 : vector<16x64xf32>
    %cst = arith.constant dense<0.000000e+00> : vector<16xf32>
    %4 = vector.multi_reduction <add>, %3, %cst [1] : vector<16x64xf32> to vector<16xf32>
    %5 = vector.shape_cast %4 : vector<16xf32> to vector<16x1xf32>
    %cst_3 = arith.constant 6.400000e+01 : f32
    %6 = vector.broadcast %cst_3 : f32 to vector<16x1xf32>
    %7 = arith.divf %5, %6 : vector<16x1xf32>
    %cst_4 = arith.constant 9.99999997E-7 : f32
    %8 = vector.broadcast %cst_4 : f32 to vector<16x1xf32>
    %9 = arith.addf %7, %8 : vector<16x1xf32>
    %10 = math.rsqrt %9 : vector<16x1xf32>
    %11 = vector.broadcast %10 : vector<16x1xf32> to vector<16x64xf32>
    %12 = arith.mulf %2, %11 : vector<16x64xf32>
    %13 = vector.broadcast %1 : vector<1x64xf32> to vector<16x64xf32>
    %14 = arith.mulf %12, %13 : vector<16x64xf32>
    %c0_5 = arith.constant 0 : index
    %c0_6 = arith.constant 0 : index
    %15 = vector.load %arg4[%c0_5, %c0_6] : memref<16x64xf32, #tpu.memory_space<vmem>>, vector<16x64xf32>
    tpu.vector_store %arg4[%c0_5, %c0_6], %14 {strides = array<i32>} : memref<16x64xf32, #tpu.memory_space<vmem>>, vector<16x64xf32>,
    %16 = arith.truncf %14 : vector<16x64xf32> to vector<16x64xbf16>
    %c0_7 = arith.constant 0 : index
    %c0_8 = arith.constant 0 : index
    %17 = vector.load %arg3[%c0_7, %c0_8] : memref<64x256xf32, #tpu.memory_space<vmem>>, vector<64x256xf32>
    %18 = arith.truncf %17 : vector<64x256xf32> to vector<64x256xbf16>
    %cst_9 = arith.constant dense<0.000000e+00> : vector<16x256xf32>
    %19 = tpu.matmul %16, %18, %cst_9 {dimension_numbers = #tpu.dot_dimension_numbers<[1], [0], [0], [1], [0, 0, 1, 1], [], []>} : vector<16x64xbf16>, vector<64x256xbf16>, vector<16x256xf32> -> vector<16x256xf32>
    %c0_10 = arith.constant 0 : index
    %c0_11 = arith.constant 0 : index
    %20 = vector.load %arg5[%c0_10, %c0_11] : memref<16x256xf32, #tpu.memory_space<vmem>>, vector<16x256xf32>
    tpu.vector_store %arg5[%c0_10, %c0_11], %19 {strides = array<i32>} : memref<16x256xf32, #tpu.memory_space<vmem>>, vector<16x256xf32>,
    return
  }
  func.func @transform_0(%arg0: i32) -> (i32, i32) {
    %c0_i32 = arith.constant 0 : i32
    %c0_i32_0 = arith.constant 0 : i32
    return %arg0, %c0_i32 : i32, i32
  }
  func.func @transform_1(%arg0: i32) -> (i32, i32) {
    %c0_i32 = arith.constant 0 : i32
    %c0_i32_0 = arith.constant 0 : i32
    %c0_i32_1 = arith.constant 0 : i32
    return %c0_i32, %c0_i32_0 : i32, i32
  }
  func.func @transform_2(%arg0: i32) -> (i32, i32) {
    %c0_i32 = arith.constant 0 : i32
    %c0_i32_0 = arith.constant 0 : i32
    %c0_i32_1 = arith.constant 0 : i32
    return %c0_i32, %c0_i32_0 : i32, i32
  }
  func.func @transform_3(%arg0: i32) -> (i32, i32) {
    %c0_i32 = arith.constant 0 : i32
    %c0_i32_0 = arith.constant 0 : i32
    return %arg0, %c0_i32 : i32, i32
  }
  func.func @transform_4(%arg0: i32) -> (i32, i32) {
    %c0_i32 = arith.constant 0 : i32
    %c0_i32_0 = arith.constant 0 : i32
    return %arg0, %c0_i32 : i32, i32
  }
}

</mosaic_0001>

<llo_original>
// kernel: tile.49
$region0: #{tile.49}
  %s0 = inlined_call_operand.vmem [shape: f32[8,4,16], index: 0, kind: input, shape index: {}]
  %s1 = inlined_call_operand.vmem [shape: f32[8,64], index: 1, kind: output, shape index: {}]
  $region1: #{tile.49} parent=0
    #allocation0 [shape = 'u8[32768]{0}', space=vmem, size = 0x8000, scoped, tag = 'scoped mem for input reshape']
    %s3 = sshllo.u32 0, 4
    %s4 = smul.addr 4, 7
    %s5 = scalar_lea.vmem %s0, %s4
    %v6 = vld [vmem:[%s5] sm:%s3]
    %s7 = scalar_lea.vmem [#allocation0], 56
    %8 = vst [vmem:[%s7] sm:%s3] %v6
    %s9 = smul.addr 4, 6
    %s10 = scalar_lea.vmem %s0, %s9
    %v11 = vld [vmem:[%s10] sm:%s3]
    %s12 = scalar_lea.vmem [#allocation0], 48
    %13 = vst [vmem:[%s12] sm:%s3] %v11
    %s14 = smul.addr 4, 5
    %s15 = scalar_lea.vmem %s0, %s14
    %v16 = vld [vmem:[%s15] sm:%s3]
    %s17 = scalar_lea.vmem [#allocation0], 40
    %18 = vst [vmem:[%s17] sm:%s3] %v16
    %s19 = smul.addr 4, 4
    %s20 = scalar_lea.vmem %s0, %s19
    %v21 = vld [vmem:[%s20] sm:%s3]
    %s22 = scalar_lea.vmem [#allocation0], 32
    %23 = vst [vmem:[%s22] sm:%s3] %v21
    %s24 = smul.addr 4, 3
    %s25 = scalar_lea.vmem %s0, %s24
    %v26 = vld [vmem:[%s25] sm:%s3]
    %s27 = scalar_lea.vmem [#allocation0], 24
    %28 = vst [vmem:[%s27] sm:%s3] %v26
    %s29 = smul.addr 4, 2
    %s30 = scalar_lea.vmem %s0, %s29
    %v31 = vld [vmem:[%s30] sm:%s3]
    %s32 = scalar_lea.vmem [#allocation0], 16
    %33 = vst [vmem:[%s32] sm:%s3] %v31
    %s34 = scalar_lea.vmem %s0, 4
    %v35 = vld [vmem:[%s34] sm:%s3]
    %s36 = scalar_lea.vmem [#allocation0], 8
    %37 = vst [vmem:[%s36] sm:%s3] %v35
    %v38 = vld [vmem:[%s0] sm:%s3]
    %39 = vst [vmem:[#allocation0] sm:%s3] %v38
    %v40 = vld [vmem:[#allocation0] ss:$8 sm:$0xf]
    %v41 = vld [vmem:[#allocation0] ss:$8 sm:$0xf0]
    %vm42 = vcmask 1047556
    %v43 = vsel %vm42, %v41, %v40
    %vm44 = vcmask 130048
    %45 = vst.msk [vmem:[%s1] sm:$0xff] %vm44, %v43
    %s46 = scalar_lea.vmem [#allocation0], 3
    %v47 = vld [vmem:[%s46] ss:$8 sm:$0xf]
    %s48 = scalar_lea.vmem [#allocation0], 3
    %v49 = vld [vmem:[%s48] ss:$8 sm:$0xf0]
    %vm50 = vcmask 1047556
    %v51 = vsel %vm50, %v49, %v47
    %52 = vrot.lane.b32.xlu0 %v51, 48
    %v53 = vpop.permute.xlu0 %52
    %vm54 = vcmask 523648
    %55 = vst.msk [vmem:[%s1] sm:$0xff] %vm54, %v53
    %s56 = scalar_lea.vmem [#allocation0], 2
    %v57 = vld [vmem:[%s56] ss:$8 sm:$0xf]
    %s58 = scalar_lea.vmem [#allocation0], 2
    %v59 = vld [vmem:[%s58] ss:$8 sm:$0xf0]
    %vm60 = vcmask 1047556
    %v61 = vsel %vm60, %v59, %v57
    %62 = vrot.lane.b32.xlu0 %v61, 32
    %v63 = vpop.permute.xlu0 %62
    %vm64 = vcmask 392448
    %65 = vst.msk [vmem:[%s1] sm:$0xff] %vm64, %v63
    %s66 = scalar_lea.vmem [#allocation0], 1
    %v67 = vld [vmem:[%s66] ss:$8 sm:$0xf]
    %s68 = scalar_lea.vmem [#allocation0], 1
    %v69 = vld [vmem:[%s68] ss:$8 sm:$0xf0]
    %vm70 = vcmask 1047556
    %v71 = vsel %vm70, %v69, %v67
    %72 = vrot.lane.b32.xlu0 %v71, 16
    %v73 = vpop.permute.xlu0 %72
    %vm74 = vcmask 261248
    %75 = vst.msk [vmem:[%s1] sm:$0xff] %vm74, %v73

// kernel: forward.7
$region0: #{forward.7}
  #allocation0 [shape = 'u32[]', space=smem, size = 0x4, offset = 0x4, fixed_abs, tag = 'smem constant byte address 0x4 - core index']
  #allocation1 [shape = 'u32[144,128]{1,0:T(1,128)}', space=vmem, size = 0x12000, scoped, tag = 'internal scratch']
  %s0 = inlined_call_operand.vmem [shape: bf16[16,64], index: 0, kind: input, shape index: {}]
  %s1 = inlined_call_operand.vmem [shape: f32[1,64], index: 1, kind: input, shape index: {}]
  %s2 = inlined_call_operand.vmem [shape: f32[64,192], index: 2, kind: input, shape index: {}]
  %s3 = inlined_call_operand.vmem [shape: f32[16,128], index: 3, kind: input, shape index: {}]
  %s4 = inlined_call_operand.vmem [shape: f32[16,128], index: 4, kind: input, shape index: {}]
  %s5 = inlined_call_operand.vmem [shape: bf16[16,192], index: 5, kind: output, shape index: {}]
  %s6 = sld [smem:[#allocation0]]
  $region30: #{forward.7} parent=0
    _
  %s8 = ssub.s32 1, %s6
  %s9 = scalar_select 0, %s8, %s6
  // Predicated region
  $region2: #{forward.7} parent=0 // pred_check
    _
  $region3: #{forward.7} parent=0 // pred_check_branch
    %11 = sbr.rel (0) target = $region5
  $region4: #{forward.7} parent=0 // pred_region
    _
  $region5: #{forward.7} parent=0 // pred_fallthru
    _
  // Predicated region
  $region6: #{forward.7} parent=0 // pred_check
    _
  $region7: #{forward.7} parent=0 // pred_check_branch
    %13 = sbr.rel (0) target = $region9
  $region8: #{forward.7} parent=0 // pred_region
    _
  $region9: #{forward.7} parent=0 // pred_fallthru
    _
  // Predicated region
  $region10: #{forward.7} parent=0 // pred_check
    _
  $region11: #{forward.7} parent=0 // pred_check_branch
    %15 = sbr.rel (0) target = $region13
  $region12: #{forward.7} parent=0 // pred_region
    _
  $region13: #{forward.7} parent=0 // pred_fallthru
    _
  // Predicated region
  $region14: #{forward.7} parent=0 // pred_check
    _
  $region15: #{forward.7} parent=0 // pred_check_branch
    %17 = sbr.rel (0) target = $region17
  $region16: #{forward.7} parent=0 // pred_region
    _
  $region17: #{forward.7} parent=0 // pred_fallthru
    _
  // Predicated region
  $region18: #{forward.7} parent=0 // pred_check
    _
  $region19: #{forward.7} parent=0 // pred_check_branch
    %19 = sbr.rel (0) target = $region21
  $region20: #{forward.7} parent=0 // pred_region
    _
  $region21: #{forward.7} parent=0 // pred_fallthru
    _
  %v21 = vld [vmem:[%s0] sm:$0xf]
  %v22 = vld [vmem:[%s0 + $0x4] sm:$0xf]
  %v23 = vld [vmem:[%s1] sm:$0x1]
  %v24 = vunpack.c.l.bf16 %v21
  %v25 = vunpack.c.l.bf16 %v22
  %v26 = vmul.f32 %v24, %v24
  %v27 = vmul.f32 %v25, %v25
  %vm28 = vcmask 523264
  %v29 = vsel %vm28, %v26, 0.0
  %30 = vadd.xlane.f32.xlu0 %v29
  %v31 = vpop.xlane.xlu0 %30
  %v32 = vsel %vm28, %v27, 0.0
  %33 = vadd.xlane.f32.xlu0 %v32
  %v34 = vpop.xlane.xlu0 %33
  %v35 = vrcp.pop 64.0
  %v36 = vmul.f32 %v31, %v35
  %v37 = vmul.f32 %v34, %v35
  %v38 = vadd.f32 %v36, 1e-06
  %v39 = vadd.f32 %v37, 1e-06
  %v40 = vrsqrt.pop %v38
  %v41 = vrsqrt.pop %v39
  %v42 = vmul.f32 %v24, %v40
  %v43 = vmul.f32 %v25, %v41
  %v45 = vlaneseq
  %v46 = vshrl.u32 %v45, 7
  %v47 = vsub.s32 0, %v46
  %v48 = vrot.slane %v23, %v47
  %v50 = vmul.f32 %v42, %v48
  %v51 = vmul.f32 %v43, %v48
  %v52 = vpack.c.bf16 %v51, %v50
  %v53 = vld [vmem:[%s2] sm:$0xff]
  %v54 = vld [vmem:[%s2 + $0x8] sm:$0xff]
  %v55 = vld [vmem:[%s2 + $0x10] sm:$0xff]
  %v56 = vld [vmem:[%s2 + $0x18] sm:$0xff]
  %v57 = vld [vmem:[%s2 + $0x20] sm:$0xff]
  %v58 = vld [vmem:[%s2 + $0x28] sm:$0xff]
  %v59 = vld [vmem:[%s2 + $0x30] sm:$0xff]
  %v60 = vld [vmem:[%s2 + $0x38] sm:$0xff]
  %v61 = vld [vmem:[%s2 + $0x40] sm:$0xff]
  %v62 = vld [vmem:[%s2 + $0x48] sm:$0xff]
  %v63 = vld [vmem:[%s2 + $0x50] sm:$0xff]
  %v64 = vld [vmem:[%s2 + $0x58] sm:$0xff]
  %v65 = vld [vmem:[%s2 + $0x60] sm:$0xff]
  %v66 = vld [vmem:[%s2 + $0x68] sm:$0xff]
  %v67 = vld [vmem:[%s2 + $0x70] sm:$0xff]
  %v68 = vld [vmem:[%s2 + $0x78] sm:$0xff]
  %v69 = vpack.c.bf16 %v55, %v53
  %v70 = vpack.c.bf16 %v56, %v54
  %v71 = vpack.c.bf16 %v59, %v57
  %v72 = vpack.c.bf16 %v60, %v58
  %v73 = vpack.c.bf16 %v63, %v61
  %v74 = vpack.c.bf16 %v64, %v62
  %v75 = vpack.c.bf16 %v67, %v65
  %v76 = vpack.c.bf16 %v68, %v66
  %v78 = vsel %vm28, %v52, 0
  %80 = vmatprep.subr.bf16.mxu0 %v70
  %81 = vmatpush1.bf16.msra.mxu0 %v69
  %82 = vmatprep.subr.bf16.mxu0 %v72
  %83 = vmatpush1.bf16.msra.mxu0 %v71
  %84 = vmatprep.subr.bf16.mxu0 %v74
  %85 = vmatpush1.bf16.msra.mxu0 %v73
  %86 = vmatprep.subr.bf16.mxu0 %v76
  %87 = vmatpush1.bf16.msra.mxu0 %v75
  %88 = vmatprep.subr.bf16.mxu0 0
  %89 = vmatpush1.bf16.msra.mxu0 0
  %90 = vmatprep.subr.bf16.mxu0 0
  %91 = vmatpush1.bf16.msra.mxu0 0
  %92 = vmatprep.subr.bf16.mxu0 0
  %93 = vmatpush1.bf16.msra.mxu0 0
  %94 = vmatprep.subr.bf16.mxu0 0
  %95 = vmatpush1.bf16.msra.mxu0 0
  %96 = vmatprep.subr.bf16.mxu0 0
  %97 = vmatpush1.bf16.msra.mxu0 0
  %98 = vmatprep.subr.bf16.mxu0 0
  %99 = vmatpush1.bf16.msra.mxu0 0
  %100 = vmatprep.subr.bf16.mxu0 0
  %101 = vmatpush1.bf16.msra.mxu0 0
  %102 = vmatprep.subr.bf16.mxu0 0
  %103 = vmatpush1.bf16.msra.mxu0 0
  %104 = vmatprep.subr.bf16.mxu0 0
  %105 = vmatpush1.bf16.msra.mxu0 0
  %106 = vmatprep.subr.bf16.mxu0 0
  %107 = vmatpush1.bf16.msra.mxu0 0
  %108 = vmatprep.subr.bf16.mxu0 0
  %109 = vmatpush1.bf16.msra.mxu0 0
  %110 = vmatprep.subr.bf16.mxu0 0
  %111 = vmatpush1.bf16.msra.mxu0 0
  %112 = vmatprep.mubr.bf16.mxu0 0
  %113 = vmatmul.mubr.bf16.gmra.mrb[0].mxu0 %v78
  %v114 = vpop.f32.mrb[0].mxu0
  %v115 = vadd.f32 0.0, %v114
  %v116 = vpop.f32.mrb[0].mxu0
  %v117 = vadd.f32 0.0, %v116
  %v118 = vpop.f32.mrb[0].mxu0
  %v119 = vadd.f32 0.0, %v118
  %v120 = vpop.f32.mrb[0].mxu0
  %v121 = vadd.f32 0.0, %v120
  %122 = vdwg.mxu0
  %123 = vrot.lane.b32.xlu0 %v115, 8
  %v124 = vpop.permute.xlu0 %123
  %125 = vrot.lane.b32.xlu0 %v119, 8
  %v126 = vpop.permute.xlu0 %125
  %127 = vrot.lane.b32.xlu0 %v115, 120
  %v128 = vpop.permute.xlu0 %127
  %129 = vrot.lane.b32.xlu0 %v119, 120
  %v130 = vpop.permute.xlu0 %129
  %v131 = vlaneseq
  %v132 = vand.u32 %v131, 127
  %vm133 = vcmp.lt.s32.totalorder %v132, 0
  %v134 = vsub.s32 0, %v132
  %v135 = vsel %vm133, %v134, %v132
  %v136 = vshrl.u32 %v135, 4
  %v137 = vand.u32 %v135, 15
  %v138 = vsub.s32 0, %v137
  %v139 = vsel %vm133, %v138, %v137
  %vm140 = vcmp.ne.s32.totalorder %v139, 0
  %vm141 = vcmp.lt.s32.totalorder %v139, 0
  %vm142 = vmand %vm141, %vm140
  %v143 = vadd.s32 %v139, 16
  %v144 = vsel %vm142, %v143, %v139
  %vm145 = vcmp.lt.s32.totalorder %v144, 8
  %v146 = vsub.f32 0.0, %v128
  %v147 = vsub.f32 0.0, %v130
  %v148 = vsel %vm145, %v146, %v124
  %v149 = vsel %vm145, %v147, %v126
  %v150 = vld [vmem:[%s3] sm:$0xff]
  %v151 = vld [vmem:[%s3 + $0x8] sm:$0xff]
  %v152 = vmul.f32 %v115, %v150
  %v153 = vmul.f32 %v119, %v151
  %v154 = vld [vmem:[%s4] sm:$0xff]
  %v155 = vld [vmem:[%s4 + $0x8] sm:$0xff]
  %v156 = vmul.f32 %v148, %v154
  %v157 = vmul.f32 %v149, %v155
  %v158 = vadd.f32 %v152, %v156
  %v159 = vadd.f32 %v153, %v157
  %v160 = vpack.c.bf16 %v159, %v158
  %v162 = vunpack.c.l.b16 %v160
  %v163 = vunpack.c.h.b16 %v160
  %v164 = vpack.c.b16 %v162, %v162
  %v165 = vpack.c.b16 %v163, %v163
  %168 = vst [vmem:[%s5] sm:$0xf] %v164
  %169 = vst [vmem:[%s5 + $0x8] sm:$0xf] %v165
  %v170 = vpack.c.bf16 %v121, %v117
  %v172 = vunpack.c.l.b16 %v170
  %v173 = vunpack.c.h.b16 %v170
  %v174 = vpack.c.b16 %v172, %v172
  %v175 = vpack.c.b16 %v173, %v173
  %vm178 = vcmask 519168
  %179 = vst.msk [vmem:[%s5 + $0x4] sm:$0xf] %vm178, %v174
  %180 = vst.msk [vmem:[%s5 + $0xc] sm:$0xf] %vm178, %v175
  // Predicated region
  $region22: #{forward.7} parent=0 // pred_check
    _
  $region23: #{forward.7} parent=0 // pred_check_branch
    %182 = sbr.rel (0) target = $region25
  $region24: #{forward.7} parent=0 // pred_region
    _
  $region25: #{forward.7} parent=0 // pred_fallthru
    _
  // Predicated region
  $region26: #{forward.7} parent=0 // pred_check
    _
  $region27: #{forward.7} parent=0 // pred_check_branch
    %184 = sbr.rel (0) target = $region29
  $region28: #{forward.7} parent=0 // pred_region
    _
  $region29: #{forward.7} parent=0 // pred_fallthru
    _

// kernel: forward.9
$region0: #{forward.9}
  #allocation0 [shape = 'u32[]', space=smem, size = 0x4, offset = 0x4, fixed_abs, tag = 'smem constant byte address 0x4 - core index']
  #allocation1 [shape = 'u32[144,128]{1,0:T(1,128)}', space=vmem, size = 0x12000, scoped, tag = 'internal scratch']
  %s0 = inlined_call_operand.vmem [shape: bf16[16,64], index: 0, kind: input, shape index: {}]
  %s1 = inlined_call_operand.vmem [shape: f32[1,64], index: 1, kind: input, shape index: {}]
  %s2 = inlined_call_operand.vmem [shape: f32[64,256], index: 2, kind: input, shape index: {}]
  %s3 = inlined_call_operand.vmem [shape: f32[128,64], index: 3, kind: input, shape index: {}]
  %s4 = inlined_call_operand.vmem [shape: bf16[16,64], index: 4, kind: output, shape index: {}]
  %s5 = sld [smem:[#allocation0]]
  $region26: #{forward.9} parent=0
    _
  %s7 = ssub.s32 1, %s5
  %s8 = scalar_select 0, %s7, %s5
  // Predicated region
  $region2: #{forward.9} parent=0 // pred_check
    _
  $region3: #{forward.9} parent=0 // pred_check_branch
    %10 = sbr.rel (0) target = $region5
  $region4: #{forward.9} parent=0 // pred_region
    _
  $region5: #{forward.9} parent=0 // pred_fallthru
    _
  // Predicated region
  $region6: #{forward.9} parent=0 // pred_check
    _
  $region7: #{forward.9} parent=0 // pred_check_branch
    %12 = sbr.rel (0) target = $region9
  $region8: #{forward.9} parent=0 // pred_region
    _
  $region9: #{forward.9} parent=0 // pred_fallthru
    _
  // Predicated region
  $region10: #{forward.9} parent=0 // pred_check
    _
  $region11: #{forward.9} parent=0 // pred_check_branch
    %14 = sbr.rel (0) target = $region13
  $region12: #{forward.9} parent=0 // pred_region
    _
  $region13: #{forward.9} parent=0 // pred_fallthru
    _
  // Predicated region
  $region14: #{forward.9} parent=0 // pred_check
    _
  $region15: #{forward.9} parent=0 // pred_check_branch
    %16 = sbr.rel (0) target = $region17
  $region16: #{forward.9} parent=0 // pred_region
    _
  $region17: #{forward.9} parent=0 // pred_fallthru
    _
  %v18 = vld [vmem:[%s0] sm:$0xf]
  %v19 = vld [vmem:[%s0 + $0x4] sm:$0xf]
  %v20 = vunpack.c.l.bf16 %v18
  %v21 = vunpack.c.l.bf16 %v19
  %v22 = vld [vmem:[%s1] sm:$0x1]
  %v23 = vmul.f32 %v20, %v20
  %v24 = vmul.f32 %v21, %v21
  %vm25 = vcmask 523264
  %v26 = vsel %vm25, %v23, 0.0
  %27 = vadd.xlane.f32.xlu0 %v26
  %v28 = vpop.xlane.xlu0 %27
  %v29 = vsel %vm25, %v24, 0.0
  %30 = vadd.xlane.f32.xlu0 %v29
  %v31 = vpop.xlane.xlu0 %30
  %v32 = vrcp.pop 64.0
  %v33 = vmul.f32 %v28, %v32
  %v34 = vmul.f32 %v31, %v32
  %v35 = vadd.f32 %v33, 1e-06
  %v36 = vadd.f32 %v34, 1e-06
  %v37 = vrsqrt.pop %v35
  %v38 = vrsqrt.pop %v36
  %v39 = vmul.f32 %v20, %v37
  %v40 = vmul.f32 %v21, %v38
  %v42 = vlaneseq
  %v43 = vshrl.u32 %v42, 7
  %v44 = vsub.s32 0, %v43
  %v45 = vrot.slane %v22, %v44
  %v47 = vmul.f32 %v39, %v45
  %v48 = vmul.f32 %v40, %v45
  %v49 = vpack.c.bf16 %v48, %v47
  %v50 = vld [vmem:[%s2] sm:$0xff]
  %v51 = vld [vmem:[%s2 + $0x8] sm:$0xff]
  %v52 = vld [vmem:[%s2 + $0x10] sm:$0xff]
  %v53 = vld [vmem:[%s2 + $0x18] sm:$0xff]
  %v54 = vld [vmem:[%s2 + $0x20] sm:$0xff]
  %v55 = vld [vmem:[%s2 + $0x28] sm:$0xff]
  %v56 = vld [vmem:[%s2 + $0x30] sm:$0xff]
  %v57 = vld [vmem:[%s2 + $0x38] sm:$0xff]
  %v58 = vld [vmem:[%s2 + $0x40] sm:$0xff]
  %v59 = vld [vmem:[%s2 + $0x48] sm:$0xff]
  %v60 = vld [vmem:[%s2 + $0x50] sm:$0xff]
  %v61 = vld [vmem:[%s2 + $0x58] sm:$0xff]
  %v62 = vld [vmem:[%s2 + $0x60] sm:$0xff]
  %v63 = vld [vmem:[%s2 + $0x68] sm:$0xff]
  %v64 = vld [vmem:[%s2 + $0x70] sm:$0xff]
  %v65 = vld [vmem:[%s2 + $0x78] sm:$0xff]
  %v66 = vpack.c.bf16 %v52, %v50
  %v67 = vpack.c.bf16 %v53, %v51
  %v68 = vpack.c.bf16 %v56, %v54
  %v69 = vpack.c.bf16 %v57, %v55
  %v70 = vpack.c.bf16 %v60, %v58
  %v71 = vpack.c.bf16 %v61, %v59
  %v72 = vpack.c.bf16 %v64, %v62
  %v73 = vpack.c.bf16 %v65, %v63
  %v75 = vsel %vm25, %v49, 0
  %77 = vmatprep.subr.bf16.mxu0 %v67
  %78 = vmatpush1.bf16.msra.mxu0 %v66
  %79 = vmatprep.subr.bf16.mxu0 %v69
  %80 = vmatpush1.bf16.msra.mxu0 %v68
  %81 = vmatprep.subr.bf16.mxu0 %v71
  %82 = vmatpush1.bf16.msra.mxu0 %v70
  %83 = vmatprep.subr.bf16.mxu0 %v73
  %84 = vmatpush1.bf16.msra.mxu0 %v72
  %85 = vmatprep.subr.bf16.mxu0 0
  %86 = vmatpush1.bf16.msra.mxu0 0
  %87 = vmatprep.subr.bf16.mxu0 0
  %88 = vmatpush1.bf16.msra.mxu0 0
  %89 = vmatprep.subr.bf16.mxu0 0
  %90 = vmatpush1.bf16.msra.mxu0 0
  %91 = vmatprep.subr.bf16.mxu0 0
  %92 = vmatpush1.bf16.msra.mxu0 0
  %93 = vmatprep.subr.bf16.mxu0 0
  %94 = vmatpush1.bf16.msra.mxu0 0
  %95 = vmatprep.subr.bf16.mxu0 0
  %96 = vmatpush1.bf16.msra.mxu0 0
  %97 = vmatprep.subr.bf16.mxu0 0
  %98 = vmatpush1.bf16.msra.mxu0 0
  %99 = vmatprep.subr.bf16.mxu0 0
  %100 = vmatpush1.bf16.msra.mxu0 0
  %101 = vmatprep.subr.bf16.mxu0 0
  %102 = vmatpush1.bf16.msra.mxu0 0
  %103 = vmatprep.subr.bf16.mxu0 0
  %104 = vmatpush1.bf16.msra.mxu0 0
  %105 = vmatprep.subr.bf16.mxu0 0
  %106 = vmatpush1.bf16.msra.mxu0 0
  %107 = vmatprep.subr.bf16.mxu0 0
  %108 = vmatpush1.bf16.msra.mxu0 0
  %109 = vmatprep.mubr.bf16.mxu0 0
  %110 = vmatmul.mubr.bf16.gmra.mrb[0].mxu0 %v75
  %v111 = vpop.f32.mrb[0].mxu0
  %v112 = vadd.f32 0.0, %v111
  %v113 = vpop.f32.mrb[0].mxu0
  %v114 = vadd.f32 0.0, %v113
  %v115 = vpop.f32.mrb[0].mxu0
  %v116 = vadd.f32 0.0, %v115
  %v117 = vpop.f32.mrb[0].mxu0
  %v118 = vadd.f32 0.0, %v117
  %119 = vdwg.mxu0
  %v120 = vxor.u32 %v112, 2147483648
  %v121 = vxor.u32 %v116, 2147483648
  %v122 = vmul.f32 %v120, 1.442695
  %v123 = vpow.pop %v122
  %v124 = vmul.f32 %v121, 1.442695
  %v125 = vpow.pop %v124
  %v126 = vadd.f32 %v123, 1.0
  %v127 = vadd.f32 %v125, 1.0
  %v128 = vrcp.pop %v126
  %v129 = vmul.f32 1.0, %v128
  %v130 = vrcp.pop %v127
  %v131 = vmul.f32 1.0, %v130
  %v132 = vmul.f32 %v112, %v129
  %v133 = vmul.f32 %v116, %v131
  %v134 = vmul.f32 %v132, %v114
  %v135 = vmul.f32 %v133, %v118
  %v136 = vpack.c.bf16 %v135, %v134
  %v137 = vld [vmem:[%s3] sm:$0xff]
  %v138 = vld [vmem:[%s3 + $0x8] sm:$0xff]
  %v139 = vld [vmem:[%s3 + $0x10] sm:$0xff]
  %v140 = vld [vmem:[%s3 + $0x18] sm:$0xff]
  %v141 = vld [vmem:[%s3 + $0x20] sm:$0xff]
  %v142 = vld [vmem:[%s3 + $0x28] sm:$0xff]
  %v143 = vld [vmem:[%s3 + $0x30] sm:$0xff]
  %v144 = vld [vmem:[%s3 + $0x38] sm:$0xff]
  %v145 = vld [vmem:[%s3 + $0x40] sm:$0xff]
  %v146 = vld [vmem:[%s3 + $0x48] sm:$0xff]
  %v147 = vld [vmem:[%s3 + $0x50] sm:$0xff]
  %v148 = vld [vmem:[%s3 + $0x58] sm:$0xff]
  %v149 = vld [vmem:[%s3 + $0x60] sm:$0xff]
  %v150 = vld [vmem:[%s3 + $0x68] sm:$0xff]
  %v151 = vld [vmem:[%s3 + $0x70] sm:$0xff]
  %v152 = vld [vmem:[%s3 + $0x78] sm:$0xff]
  %v153 = vpack.c.bf16 %v138, %v137
  %v154 = vpack.c.bf16 %v140, %v139
  %v155 = vpack.c.bf16 %v142, %v141
  %v156 = vpack.c.bf16 %v144, %v143
  %v157 = vpack.c.bf16 %v146, %v145
  %v158 = vpack.c.bf16 %v148, %v147
  %v159 = vpack.c.bf16 %v150, %v149
  %v160 = vpack.c.bf16 %v152, %v151
  %161 = vmatprep.subr.bf16.mxu0 0
  %162 = vmatpush1.bf16.msra.mxu0 %v153
  %163 = vmatprep.subr.bf16.mxu0 0
  %164 = vmatpush1.bf16.msra.mxu0 %v154
  %165 = vmatprep.subr.bf16.mxu0 0
  %166 = vmatpush1.bf16.msra.mxu0 %v155
  %167 = vmatprep.subr.bf16.mxu0 0
  %168 = vmatpush1.bf16.msra.mxu0 %v156
  %169 = vmatprep.subr.bf16.mxu0 0
  %170 = vmatpush1.bf16.msra.mxu0 %v157
  %171 = vmatprep.subr.bf16.mxu0 0
  %172 = vmatpush1.bf16.msra.mxu0 %v158
  %173 = vmatprep.subr.bf16.mxu0 0
  %174 = vmatpush1.bf16.msra.mxu0 %v159
  %175 = vmatprep.subr.bf16.mxu0 0
  %176 = vmatpush1.bf16.msra.mxu0 %v160
  %177 = vmatprep.subr.bf16.mxu0 0
  %178 = vmatpush1.bf16.msra.mxu0 0
  %179 = vmatprep.subr.bf16.mxu0 0
  %180 = vmatpush1.bf16.msra.mxu0 0
  %181 = vmatprep.subr.bf16.mxu0 0
  %182 = vmatpush1.bf16.msra.mxu0 0
  %183 = vmatprep.subr.bf16.mxu0 0
  %184 = vmatpush1.bf16.msra.mxu0 0
  %185 = vmatprep.subr.bf16.mxu0 0
  %186 = vmatpush1.bf16.msra.mxu0 0
  %187 = vmatprep.subr.bf16.mxu0 0
  %188 = vmatpush1.bf16.msra.mxu0 0
  %189 = vmatprep.subr.bf16.mxu0 0
  %190 = vmatpush1.bf16.msra.mxu0 0
  %191 = vmatprep.subr.bf16.mxu0 0
  %192 = vmatpush1.bf16.msra.mxu0 0
  %193 = vmatprep.mubr.bf16.mxu0 0
  %194 = vmatmul.mubr.bf16.gmra.mrb[0].mxu0 %v136
  %v195 = vpop.f32.mrb[0].mxu0
  %v196 = vadd.f32 0.0, %v195
  %v197 = vpop.f32.mrb[0].mxu0
  %v198 = vpop.f32.mrb[0].mxu0
  %v199 = vadd.f32 0.0, %v198
  %v200 = vpop.f32.mrb[0].mxu0
  %201 = vdwg.mxu0
  %v202 = vadd.f32 %v20, %v196
  %v203 = vadd.f32 %v21, %v199
  %v204 = vpack.c.bf16 %v203, %v202
  %v206 = vunpack.c.l.b16 %v204
  %v207 = vunpack.c.h.b16 %v204
  %v208 = vpack.c.b16 %v206, %v206
  %v209 = vpack.c.b16 %v207, %v207
  %vm212 = vcmask 519168
  %213 = vst.msk [vmem:[%s4] sm:$0xf] %vm212, %v208
  %214 = vst.msk [vmem:[%s4 + $0x4] sm:$0xf] %vm212, %v209
  // Predicated region
  $region18: #{forward.9} parent=0 // pred_check
    _
  $region19: #{forward.9} parent=0 // pred_check_branch
    %216 = sbr.rel (0) target = $region21
  $region20: #{forward.9} parent=0 // pred_region
    _
  $region21: #{forward.9} parent=0 // pred_fallthru
    _
  // Predicated region
  $region22: #{forward.9} parent=0 // pred_check
    _
  $region23: #{forward.9} parent=0 // pred_check_branch
    %218 = sbr.rel (0) target = $region25
  $region24: #{forward.9} parent=0 // pred_region
    _
  $region25: #{forward.9} parent=0 // pred_fallthru
    _

// kernel: forward.8
$region0: #{forward.8}
  #allocation0 [shape = 'u32[]', space=smem, size = 0x4, offset = 0x4, fixed_abs, tag = 'smem constant byte address 0x4 - core index']
  #allocation1 [shape = 'u32[144,128]{1,0:T(1,128)}', space=vmem, size = 0x12000, scoped, tag = 'internal scratch']
  %s0 = inlined_call_operand.vmem [shape: bf16[2,8,64], index: 0, kind: input, shape index: {}]
  %s1 = inlined_call_operand.vmem [shape: bf16[2,4,8,16], index: 1, kind: input, shape index: {}]
  %s2 = inlined_call_operand.vmem [shape: bf16[2,4,8,16], index: 2, kind: input, shape index: {}]
  %s3 = inlined_call_operand.vmem [shape: bf16[2,4,8,16], index: 3, kind: input, shape index: {}]
  %s4 = inlined_call_operand.vmem [shape: f32[4,16,64], index: 4, kind: input, shape index: {}]
  %s5 = inlined_call_operand.vmem [shape: bf16[2,8,64], index: 5, kind: output, shape index: {}]
  %s6 = sld [smem:[#allocation0]]
  $region53: #{forward.8} parent=0
    _
  %s8 = ssub.s32 1, %s6
  %s9 = scalar_select 0, %s8, %s6
  loop: start=0, step=1, limit=4
  $region2: #{forward.8} parent=0 // loop_pre_header
    _
  $region3: #{forward.8} parent=0 // loop_header
    %s11 = sphi 0, %s15
    %p12 = scmp.ge.s32.totalorder %s11, 4
    %s21 = sphi 0, %s23
    %s24 = sphi 0, %s21
    %s25 = sphi 0, %s24
    %s41 = sphi 0, %s25
    %s47 = sphi 0, %s49
    %s50 = sphi 0, %s47
    %s51 = sphi 0, %s50
    %s67 = sphi 0, %s51
    %s73 = sphi 0, %s75
    %s76 = sphi 0, %s73
    %s77 = sphi 0, %s76
    %s93 = sphi 0, %s77
    %s99 = sphi 0, %s101
    %s102 = sphi 0, %s99
    %s103 = sphi 0, %s102
    %s119 = sphi 0, %s103
    %s123 = sphi 0, %s123
    %s125 = sphi 0, %s123
    %s126 = sphi 0, %s125
    %s140 = sphi 0, %s126
    %s146 = sphi 0, %s148
    %s149 = sphi 0, %s146
    %s150 = sphi 0, %s149
    %s166 = sphi 0, %s150
  $region4: #{forward.8} parent=0 // loop_header_branch
    %14 = sbr.rel (%p12) target = $region8
  $region5: #{forward.8} parent=0 // loop_body
    %s16 = ssub.s32 %s11, 1
    %s17 = ssub.s32 %s11, 2
    %s18 = sadd.s32 %s11, 1
    %s19 = ssub.s32 %s11, %s18
    %p20 = scmp.eq.s32.totalorder %s19, 0
    %s22 = sadd.s32 %s21, 1
    %s23 = scalar_select %p20, %s21, %s22
    %p26 = pneg %p20
    %p27 = scmp.eq.s32.totalorder %s11, 1
    %p28 = por %p26, %p27
    %p29 = scmp.ne.s32.totalorder %s21, %s24
    %p30 = scmp.eq.s32.totalorder %s11, 0
    %p31 = por %p29, %p30
    %p32 = scmp.ne.s32.totalorder %s21, %s24
    %p33 = scmp.eq.s32.totalorder %s16, 1
    %p34 = por %p32, %p33
    %p35 = scmp.ne.s32.totalorder %s24, %s25
    %p36 = scmp.eq.s32.totalorder %s16, 0
    %p37 = por %p35, %p36
    %p38 = scmp.ne.s32.totalorder %s24, %s25
    %p39 = scmp.eq.s32.totalorder %s17, 1
    %p40 = por %p38, %p39
    %p42 = scmp.ne.s32.totalorder %s25, %s41
    %p43 = scmp.eq.s32.totalorder %s17, 0
    %p44 = por %p42, %p43
    %s45 = ssub.s32 %s11, %s18
    %p46 = scmp.eq.s32.totalorder %s45, 0
    %s48 = sadd.s32 %s47, 1
    %s49 = scalar_select %p46, %s47, %s48
    %p52 = pneg %p46
    %p53 = scmp.eq.s32.totalorder %s11, 1
    %p54 = por %p52, %p53
    %p55 = scmp.ne.s32.totalorder %s47, %s50
    %p56 = scmp.eq.s32.totalorder %s11, 0
    %p57 = por %p55, %p56
    %p58 = scmp.ne.s32.totalorder %s47, %s50
    %p59 = scmp.eq.s32.totalorder %s16, 1
    %p60 = por %p58, %p59
    %p61 = scmp.ne.s32.totalorder %s50, %s51
    %p62 = scmp.eq.s32.totalorder %s16, 0
    %p63 = por %p61, %p62
    %p64 = scmp.ne.s32.totalorder %s50, %s51
    %p65 = scmp.eq.s32.totalorder %s17, 1
    %p66 = por %p64, %p65
    %p68 = scmp.ne.s32.totalorder %s51, %s67
    %p69 = scmp.eq.s32.totalorder %s17, 0
    %p70 = por %p68, %p69
    %s71 = ssub.s32 %s11, %s18
    %p72 = scmp.eq.s32.totalorder %s71, 0
    %s74 = sadd.s32 %s73, 1
    %s75 = scalar_select %p72, %s73, %s74
    %p78 = pneg %p72
    %p79 = scmp.eq.s32.totalorder %s11, 1
    %p80 = por %p78, %p79
    %p81 = scmp.ne.s32.totalorder %s73, %s76
    %p82 = scmp.eq.s32.totalorder %s11, 0
    %p83 = por %p81, %p82
    %p84 = scmp.ne.s32.totalorder %s73, %s76
    %p85 = scmp.eq.s32.totalorder %s16, 1
    %p86 = por %p84, %p85
    %p87 = scmp.ne.s32.totalorder %s76, %s77
    %p88 = scmp.eq.s32.totalorder %s16, 0
    %p89 = por %p87, %p88
    %p90 = scmp.ne.s32.totalorder %s76, %s77
    %p91 = scmp.eq.s32.totalorder %s17, 1
    %p92 = por %p90, %p91
    %p94 = scmp.ne.s32.totalorder %s77, %s93
    %p95 = scmp.eq.s32.totalorder %s17, 0
    %p96 = por %p94, %p95
    %s97 = ssub.s32 %s11, %s18
    %p98 = scmp.eq.s32.totalorder %s97, 0
    %s100 = sadd.s32 %s99, 1
    %s101 = scalar_select %p98, %s99, %s100
    %p104 = pneg %p98
    %p105 = scmp.eq.s32.totalorder %s11, 1
    %p106 = por %p104, %p105
    %p107 = scmp.ne.s32.totalorder %s99, %s102
    %p108 = scmp.eq.s32.totalorder %s11, 0
    %p109 = por %p107, %p108
    %p110 = scmp.ne.s32.totalorder %s99, %s102
    %p111 = scmp.eq.s32.totalorder %s16, 1
    %p112 = por %p110, %p111
    %p113 = scmp.ne.s32.totalorder %s102, %s103
    %p114 = scmp.eq.s32.totalorder %s16, 0
    %p115 = por %p113, %p114
    %p116 = scmp.ne.s32.totalorder %s102, %s103
    %p117 = scmp.eq.s32.totalorder %s17, 1
    %p118 = por %p116, %p117
    %p120 = scmp.ne.s32.totalorder %s103, %s119
    %p121 = scmp.eq.s32.totalorder %s17, 0
    %p122 = por %p120, %p121
    %s124 = sadd.s32 %s123, 1
    %p127 = scmp.eq.s32.totalorder %s11, 1
    %p128 = scmp.ne.s32.totalorder %s123, %s125
    %p129 = scmp.eq.s32.totalorder %s11, 0
    %p130 = por %p128, %p129
    %p131 = scmp.ne.s32.totalorder %s123, %s125
    %p132 = scmp.eq.s32.totalorder %s16, 1
    %p133 = por %p131, %p132
    %p134 = scmp.ne.s32.totalorder %s125, %s126
    %p135 = scmp.eq.s32.totalorder %s16, 0
    %p136 = por %p134, %p135
    %p137 = scmp.ne.s32.totalorder %s125, %s126
    %p138 = scmp.eq.s32.totalorder %s17, 1
    %p139 = por %p137, %p138
    %p141 = scmp.ne.s32.totalorder %s126, %s140
    %p142 = scmp.eq.s32.totalorder %s17, 0
    %p143 = por %p141, %p142
    %s144 = ssub.s32 %s11, %s18
    %p145 = scmp.eq.s32.totalorder %s144, 0
    %s147 = sadd.s32 %s146, 1
    %s148 = scalar_select %p145, %s146, %s147
    %p151 = pneg %p145
    %p152 = scmp.eq.s32.totalorder %s11, 1
    %p153 = por %p151, %p152
    %p154 = scmp.ne.s32.totalorder %s146, %s149
    %p155 = scmp.eq.s32.totalorder %s11, 0
    %p156 = por %p154, %p155
    %p157 = scmp.ne.s32.totalorder %s146, %s149
    %p158 = scmp.eq.s32.totalorder %s16, 1
    %p159 = por %p157, %p158
    %p160 = scmp.ne.s32.totalorder %s149, %s150
    %p161 = scmp.eq.s32.totalorder %s16, 0
    %p162 = por %p160, %p161
    %p163 = scmp.ne.s32.totalorder %s149, %s150
    %p164 = scmp.eq.s32.totalorder %s17, 1
    %p165 = por %p163, %p164
    %p167 = scmp.ne.s32.totalorder %s150, %s166
    %p168 = scmp.eq.s32.totalorder %s17, 0
    %p169 = por %p167, %p168
    %p170 = scmp.le.s32.totalorder 1, %s11
    %p171 = scmp.lt.s32.totalorder %s11, 3
    %p172 = pnand %p170, %p171
    %p173 = pneg %p172
    // Predicated region
    $region9: #{forward.8} parent=5 // pred_check
      _
    $region10: #{forward.8} parent=5 // pred_check_branch
      %175 = sbr.rel (%p172) target = $region12
    $region11: #{forward.8} parent=5 // pred_region
      %s176 = ssub.s32 %s11, 1
      // Predicated region
      $region13: #{forward.8} parent=11 // pred_check
        %p177 = pneg %p136
      $region14: #{forward.8} parent=11 // pred_check_branch
        %179 = sbr.rel (%p177) target = $region16
      $region15: #{forward.8} parent=11 // pred_region
        _
      $region16: #{forward.8} parent=11 // pred_fallthru
        _
    $region12: #{forward.8} parent=5 // pred_fallthru
      _
    %p180 = scmp.lt.s32.totalorder %s11, 2
    // Predicated region
    $region17: #{forward.8} parent=5 // pred_check
      %p181 = pneg %p180
    $region18: #{forward.8} parent=5 // pred_check_branch
      %183 = sbr.rel (%p181) target = $region20
    $region19: #{forward.8} parent=5 // pred_region
      // Predicated region
      $region21: #{forward.8} parent=19 // pred_check
        %p184 = pneg %p31
      $region22: #{forward.8} parent=19 // pred_check_branch
        %186 = sbr.rel (%p184) target = $region24
      $region23: #{forward.8} parent=19 // pred_region
        %p187 = scmp.lt.s32.totalorder %s11, 1
        %s188 = scalar_select %p187, %s11, 1
        %s189 = smul.addr %s188, 4
        %s190 = scalar_lea.vmem %s0, %s189
      $region24: #{forward.8} parent=19 // pred_fallthru
        _
      // Predicated region
      $region25: #{forward.8} parent=19 // pred_check
        %p191 = pneg %p57
      $region26: #{forward.8} parent=19 // pred_check_branch
        %193 = sbr.rel (%p191) target = $region28
      $region27: #{forward.8} parent=19 // pred_region
        %p194 = scmp.lt.s32.totalorder %s11, 1
        %s195 = scalar_select %p194, %s11, 1
        %s196 = smul.addr %s195, 4
        %s197 = smul.addr %s196, 4
        %s198 = scalar_lea.vmem %s1, %s197
      $region28: #{forward.8} parent=19 // pred_fallthru
        _
      // Predicated region
      $region29: #{forward.8} parent=19 // pred_check
        %p199 = pneg %p83
      $region30: #{forward.8} parent=19 // pred_check_branch
        %201 = sbr.rel (%p199) target = $region32
      $region31: #{forward.8} parent=19 // pred_region
        %p202 = scmp.lt.s32.totalorder %s11, 1
        %s203 = scalar_select %p202, %s11, 1
        %s204 = smul.addr %s203, 4
        %s205 = smul.addr %s204, 4
        %s206 = scalar_lea.vmem %s2, %s205
      $region32: #{forward.8} parent=19 // pred_fallthru
        _
      // Predicated region
      $region33: #{forward.8} parent=19 // pred_check
        %p207 = pneg %p109
      $region34: #{forward.8} parent=19 // pred_check_branch
        %209 = sbr.rel (%p207) target = $region36
      $region35: #{forward.8} parent=19 // pred_region
        %p210 = scmp.lt.s32.totalorder %s11, 1
        %s211 = scalar_select %p210, %s11, 1
        %s212 = smul.addr %s211, 4
        %s213 = smul.addr %s212, 4
        %s214 = scalar_lea.vmem %s3, %s213
      $region36: #{forward.8} parent=19 // pred_fallthru
        _
    $region20: #{forward.8} parent=5 // pred_fallthru
      _
    %p215 = scmp.le.s32.totalorder 1, %s11
    %p216 = scmp.lt.s32.totalorder %s11, 3
    %p217 = pnand %p215, %p216
    %p218 = pneg %p217
    // Predicated region
    $region37: #{forward.8} parent=5 // pred_check
      _
    $region38: #{forward.8} parent=5 // pred_check_branch
      %220 = sbr.rel (%p217) target = $region40
    $region39: #{forward.8} parent=5 // pred_region
      %s221 = ssub.s32 %s11, 1
      %p222 = scmp.lt.s32.totalorder %s16, 1
      %s223 = scalar_select %p222, %s16, 1
      %s224 = smul.addr %s223, 4
      %s225 = scalar_lea.vmem %s0, %s224
      %p226 = pneg %p37
      %p227 = pneg %p34
      %p228 = scmp.lt.s32.totalorder %s16, 1
      %s229 = scalar_select %p228, %s16, 1
      %s230 = smul.addr %s229, 4
      %s231 = smul.addr %s230, 4
      %s232 = scalar_lea.vmem %s1, %s231
      %p233 = pneg %p63
      %p234 = pneg %p60
      %p235 = scmp.lt.s32.totalorder %s16, 1
      %s236 = scalar_select %p235, %s16, 1
      %s237 = smul.addr %s236, 4
      %s238 = smul.addr %s237, 4
      %s239 = scalar_lea.vmem %s2, %s238
      %p240 = pneg %p89
      %p241 = pneg %p86
      %p242 = scmp.lt.s32.totalorder %s16, 1
      %s243 = scalar_select %p242, %s16, 1
      %s244 = smul.addr %s243, 4
      %s245 = smul.addr %s244, 4
      %s246 = scalar_lea.vmem %s3, %s245
      %p247 = pneg %p115
      %p248 = pneg %p112
      %p249 = pneg %p136
      %p250 = pneg %p133
      %p251 = pneg %p162
      %p252 = pneg %p159
      %p253 = scmp.lt.s32.totalorder %s16, 1
      %s254 = scalar_select %p253, %s16, 1
      %s255 = smul.addr %s254, 4
      %s256 = scalar_lea.vmem %s5, %s255
      %p257 = scmp.lt.s32.totalorder %s16, 1
      %s258 = scalar_select %p257, %s16, 1
      %s259 = smul.addr %s258, 4
      %s260 = scalar_lea.vmem %s0, %s259
      %p261 = scmp.lt.s32.totalorder %s16, 1
      %s262 = scalar_select %p261, %s16, 1
      %s263 = smul.addr %s262, 4
      %s264 = smul.addr %s263, 4
      %s265 = scalar_lea.vmem %s1, %s264
      %p266 = scmp.lt.s32.totalorder %s16, 1
      %s267 = scalar_select %p266, %s16, 1
      %s268 = smul.addr %s267, 4
      %s269 = smul.addr %s268, 4
      %s270 = scalar_lea.vmem %s2, %s269
      %p271 = scmp.lt.s32.totalorder %s16, 1
      %s272 = scalar_select %p271, %s16, 1
      %s273 = smul.addr %s272, 4
      %s274 = smul.addr %s273, 4
      %s275 = scalar_lea.vmem %s3, %s274
      %p276 = scmp.lt.s32.totalorder %s16, 1
      %s277 = scalar_select %p276, %s16, 1
      %s278 = smul.addr %s277, 4
      %s279 = scalar_lea.vmem %s5, %s278
      %v281 = vld [vmem:[%s260] sm:$0xf]
      %v282 = vunpack.c.l.bf16 %v281
      %v283 = vld [vmem:[%s265] sm:$0xf]
      %v284 = vld [vmem:[%s265 + $0x4] sm:$0xf]
      %v285 = vld [vmem:[%s265 + $0x8] sm:$0xf]
      %v286 = vld [vmem:[%s265 + $0xc] sm:$0xf]
      %v287 = vld [vmem:[%s270] sm:$0xf]
      %v288 = vld [vmem:[%s270 + $0x4] sm:$0xf]
      %v289 = vld [vmem:[%s270 + $0x8] sm:$0xf]
      %v290 = vld [vmem:[%s270 + $0xc] sm:$0xf]
      %v291 = vld [vmem:[%s275] sm:$0xf]
      %v292 = vld [vmem:[%s275 + $0x4] sm:$0xf]
      %v293 = vld [vmem:[%s275 + $0x8] sm:$0xf]
      %v294 = vld [vmem:[%s275 + $0xc] sm:$0xf]
      %vm295 = vcmask 130048
      %v297 = vsel %vm295, %v283, 0
      %v300 = vsel %vm295, %v287, 0
      %302 = vmatprep.subr.bf16.mxu0 0
      %303 = vmatpush1.bf16.xpose.msra.mxu0 %v300
      %304 = vmatprep.subr.bf16.mxu0 0
      %305 = vmatpush1.bf16.xpose.msra.mxu0 0
      %306 = vmatprep.subr.bf16.mxu0 0
      %307 = vmatpush1.bf16.xpose.msra.mxu0 0
      %308 = vmatprep.subr.bf16.mxu0 0
      %309 = vmatpush1.bf16.xpose.msra.mxu0 0
      %310 = vmatprep.subr.bf16.mxu0 0
      %311 = vmatpush1.bf16.xpose.msra.mxu0 0
      %312 = vmatprep.subr.bf16.mxu0 0
      %313 = vmatpush1.bf16.xpose.msra.mxu0 0
      %314 = vmatprep.subr.bf16.mxu0 0
      %315 = vmatpush1.bf16.xpose.msra.mxu0 0
      %316 = vmatprep.subr.bf16.mxu0 0
      %317 = vmatpush1.bf16.xpose.msra.mxu0 0
      %318 = vmatprep.subr.bf16.mxu0 0
      %319 = vmatpush1.bf16.xpose.msra.mxu0 0
      %320 = vmatprep.subr.bf16.mxu0 0
      %321 = vmatpush1.bf16.xpose.msra.mxu0 0
      %322 = vmatprep.subr.bf16.mxu0 0
      %323 = vmatpush1.bf16.xpose.msra.mxu0 0
      %324 = vmatprep.subr.bf16.mxu0 0
      %325 = vmatpush1.bf16.xpose.msra.mxu0 0
      %326 = vmatprep.subr.bf16.mxu0 0
      %327 = vmatpush1.bf16.xpose.msra.mxu0 0
      %328 = vmatprep.subr.bf16.mxu0 0
      %329 = vmatpush1.bf16.xpose.msra.mxu0 0
      %330 = vmatprep.subr.bf16.mxu0 0
      %331 = vmatpush1.bf16.xpose.msra.mxu0 0
      %332 = vmatprep.subr.bf16.mxu0 0
      %333 = vmatpush1.bf16.xpose.msra.mxu0 0
      %334 = vmatprep.mubr.bf16.mxu0 0
      %335 = vmatmul.mubr.bf16.gmra.mrb[0].mxu0 %v297
      %v336 = vpop.f32.mrb[0].mxu0
      %v337 = vadd.f32 0.0, %v336
      %v338 = vpop.f32.mrb[0].mxu0
      %v339 = vpop.f32.mrb[0].mxu0
      %v340 = vpop.f32.mrb[0].mxu0
      %341 = vdwg.mxu0
      %v343 = vsel %vm295, %v284, 0
      %v346 = vsel %vm295, %v288, 0
      %348 = vmatprep.subr.bf16.mxu0 0
      %349 = vmatpush1.bf16.xpose.msra.mxu0 %v346
      %350 = vmatprep.subr.bf16.mxu0 0
      %351 = vmatpush1.bf16.xpose.msra.mxu0 0
      %352 = vmatprep.subr.bf16.mxu0 0
      %353 = vmatpush1.bf16.xpose.msra.mxu0 0
      %354 = vmatprep.subr.bf16.mxu0 0
      %355 = vmatpush1.bf16.xpose.msra.mxu0 0
      %356 = vmatprep.subr.bf16.mxu0 0
      %357 = vmatpush1.bf16.xpose.msra.mxu0 0
      %358 = vmatprep.subr.bf16.mxu0 0
      %359 = vmatpush1.bf16.xpose.msra.mxu0 0
      %360 = vmatprep.subr.bf16.mxu0 0
      %361 = vmatpush1.bf16.xpose.msra.mxu0 0
      %362 = vmatprep.subr.bf16.mxu0 0
      %363 = vmatpush1.bf16.xpose.msra.mxu0 0
      %364 = vmatprep.subr.bf16.mxu0 0
      %365 = vmatpush1.bf16.xpose.msra.mxu0 0
      %366 = vmatprep.subr.bf16.mxu0 0
      %367 = vmatpush1.bf16.xpose.msra.mxu0 0
      %368 = vmatprep.subr.bf16.mxu0 0
      %369 = vmatpush1.bf16.xpose.msra.mxu0 0
      %370 = vmatprep.subr.bf16.mxu0 0
      %371 = vmatpush1.bf16.xpose.msra.mxu0 0
      %372 = vmatprep.subr.bf16.mxu0 0
      %373 = vmatpush1.bf16.xpose.msra.mxu0 0
      %374 = vmatprep.subr.bf16.mxu0 0
      %375 = vmatpush1.bf16.xpose.msra.mxu0 0
      %376 = vmatprep.subr.bf16.mxu0 0
      %377 = vmatpush1.bf16.xpose.msra.mxu0 0
      %378 = vmatprep.subr.bf16.mxu0 0
      %379 = vmatpush1.bf16.xpose.msra.mxu0 0
      %380 = vmatprep.mubr.bf16.mxu0 0
      %381 = vmatmul.mubr.bf16.gmra.mrb[0].mxu0 %v343
      %v382 = vpop.f32.mrb[0].mxu0
      %v383 = vadd.f32 0.0, %v382
      %v384 = vpop.f32.mrb[0].mxu0
      %v385 = vpop.f32.mrb[0].mxu0
      %v386 = vpop.f32.mrb[0].mxu0
      %387 = vdwg.mxu0
      %v389 = vsel %vm295, %v285, 0
      %v392 = vsel %vm295, %v289, 0
      %394 = vmatprep.subr.bf16.mxu0 0
      %395 = vmatpush1.bf16.xpose.msra.mxu0 %v392
      %396 = vmatprep.subr.bf16.mxu0 0
      %397 = vmatpush1.bf16.xpose.msra.mxu0 0
      %398 = vmatprep.subr.bf16.mxu0 0
      %399 = vmatpush1.bf16.xpose.msra.mxu0 0
      %400 = vmatprep.subr.bf16.mxu0 0
      %401 = vmatpush1.bf16.xpose.msra.mxu0 0
      %402 = vmatprep.subr.bf16.mxu0 0
      %403 = vmatpush1.bf16.xpose.msra.mxu0 0
      %404 = vmatprep.subr.bf16.mxu0 0
      %405 = vmatpush1.bf16.xpose.msra.mxu0 0
      %406 = vmatprep.subr.bf16.mxu0 0
      %407 = vmatpush1.bf16.xpose.msra.mxu0 0
      %408 = vmatprep.subr.bf16.mxu0 0
      %409 = vmatpush1.bf16.xpose.msra.mxu0 0
      %410 = vmatprep.subr.bf16.mxu0 0
      %411 = vmatpush1.bf16.xpose.msra.mxu0 0
      %412 = vmatprep.subr.bf16.mxu0 0
      %413 = vmatpush1.bf16.xpose.msra.mxu0 0
      %414 = vmatprep.subr.bf16.mxu0 0
      %415 = vmatpush1.bf16.xpose.msra.mxu0 0
      %416 = vmatprep.subr.bf16.mxu0 0
      %417 = vmatpush1.bf16.xpose.msra.mxu0 0
      %418 = vmatprep.subr.bf16.mxu0 0
      %419 = vmatpush1.bf16.xpose.msra.mxu0 0
      %420 = vmatprep.subr.bf16.mxu0 0
      %421 = vmatpush1.bf16.xpose.msra.mxu0 0
      %422 = vmatprep.subr.bf16.mxu0 0
      %423 = vmatpush1.bf16.xpose.msra.mxu0 0
      %424 = vmatprep.subr.bf16.mxu0 0
      %425 = vmatpush1.bf16.xpose.msra.mxu0 0
      %426 = vmatprep.mubr.bf16.mxu0 0
      %427 = vmatmul.mubr.bf16.gmra.mrb[0].mxu0 %v389
      %v428 = vpop.f32.mrb[0].mxu0
      %v429 = vadd.f32 0.0, %v428
      %v430 = vpop.f32.mrb[0].mxu0
      %v431 = vpop.f32.mrb[0].mxu0
      %v432 = vpop.f32.mrb[0].mxu0
      %433 = vdwg.mxu0
      %v435 = vsel %vm295, %v286, 0
      %v438 = vsel %vm295, %v290, 0
      %440 = vmatprep.subr.bf16.mxu0 0
      %441 = vmatpush1.bf16.xpose.msra.mxu0 %v438
      %442 = vmatprep.subr.bf16.mxu0 0
      %443 = vmatpush1.bf16.xpose.msra.mxu0 0
      %444 = vmatprep.subr.bf16.mxu0 0
      %445 = vmatpush1.bf16.xpose.msra.mxu0 0
      %446 = vmatprep.subr.bf16.mxu0 0
      %447 = vmatpush1.bf16.xpose.msra.mxu0 0
      %448 = vmatprep.subr.bf16.mxu0 0
      %449 = vmatpush1.bf16.xpose.msra.mxu0 0
      %450 = vmatprep.subr.bf16.mxu0 0
      %451 = vmatpush1.bf16.xpose.msra.mxu0 0
      %452 = vmatprep.subr.bf16.mxu0 0
      %453 = vmatpush1.bf16.xpose.msra.mxu0 0
      %454 = vmatprep.subr.bf16.mxu0 0
      %455 = vmatpush1.bf16.xpose.msra.mxu0 0
      %456 = vmatprep.subr.bf16.mxu0 0
      %457 = vmatpush1.bf16.xpose.msra.mxu0 0
      %458 = vmatprep.subr.bf16.mxu0 0
      %459 = vmatpush1.bf16.xpose.msra.mxu0 0
      %460 = vmatprep.subr.bf16.mxu0 0
      %461 = vmatpush1.bf16.xpose.msra.mxu0 0
      %462 = vmatprep.subr.bf16.mxu0 0
      %463 = vmatpush1.bf16.xpose.msra.mxu0 0
      %464 = vmatprep.subr.bf16.mxu0 0
      %465 = vmatpush1.bf16.xpose.msra.mxu0 0
      %466 = vmatprep.subr.bf16.mxu0 0
      %467 = vmatpush1.bf16.xpose.msra.mxu0 0
      %468 = vmatprep.subr.bf16.mxu0 0
      %469 = vmatpush1.bf16.xpose.msra.mxu0 0
      %470 = vmatprep.subr.bf16.mxu0 0
      %471 = vmatpush1.bf16.xpose.msra.mxu0 0
      %472 = vmatprep.mubr.bf16.mxu0 0
      %473 = vmatmul.mubr.bf16.gmra.mrb[0].mxu0 %v435
      %v474 = vpop.f32.mrb[0].mxu0
      %v475 = vadd.f32 0.0, %v474
      %v476 = vpop.f32.mrb[0].mxu0
      %v477 = vpop.f32.mrb[0].mxu0
      %v478 = vpop.f32.mrb[0].mxu0
      %479 = vdwg.mxu0
      %v480 = vlaneseq
      %v481 = vshrl.u32 %v480, 7
      %v482 = vlaneseq
      %v483 = vand.u32 %v482, 127
      %vm484 = vcmp.le.s32.totalorder %v483, %v481
      %v485 = vsel %vm484, %v337, -1e+30
      %v486 = vsel %vm484, %v383, -1e+30
      %v487 = vsel %vm484, %v429, -1e+30
      %v488 = vsel %vm484, %v475, -1e+30
      %vm489 = vcmask 64512
      %v490 = vsel %vm489, %v485, -inf
      %491 = vmax.xlane.f32.xlu0 %v490
      %v492 = vpop.xlane.xlu0 %491
      %v493 = vsel %vm489, %v486, -inf
      %494 = vmax.xlane.f32.xlu0 %v493
      %v495 = vpop.xlane.xlu0 %494
      %v496 = vsel %vm489, %v487, -inf
      %497 = vmax.xlane.f32.xlu0 %v496
      %v498 = vpop.xlane.xlu0 %497
      %v499 = vsel %vm489, %v488, -inf
      %500 = vmax.xlane.f32.xlu0 %v499
      %v501 = vpop.xlane.xlu0 %500
      %v502 = vsub.f32 %v485, %v492
      %v503 = vsub.f32 %v486, %v495
      %v504 = vsub.f32 %v487, %v498
      %v505 = vsub.f32 %v488, %v501
      %v506 = vmul.f32 %v502, 1.442695
      %v507 = vpow.pop %v506
      %v508 = vmul.f32 %v503, 1.442695
      %v509 = vpow.pop %v508
      %v510 = vmul.f32 %v504, 1.442695
      %v511 = vpow.pop %v510
      %v512 = vmul.f32 %v505, 1.442695
      %v513 = vpow.pop %v512
      %v514 = vsel %vm489, %v507, 0.0
      %515 = vadd.xlane.f32.xlu0 %v514
      %v516 = vpop.xlane.xlu0 %515
      %v517 = vsel %vm489, %v509, 0.0
      %518 = vadd.xlane.f32.xlu0 %v517
      %v519 = vpop.xlane.xlu0 %518
      %v520 = vsel %vm489, %v511, 0.0
      %521 = vadd.xlane.f32.xlu0 %v520
      %v522 = vpop.xlane.xlu0 %521
      %v523 = vsel %vm489, %v513, 0.0
      %524 = vadd.xlane.f32.xlu0 %v523
      %v525 = vpop.xlane.xlu0 %524
      %v526 = vrcp.pop %v516
      %v527 = vmul.f32 %v507, %v526
      %v528 = vrcp.pop %v519
      %v529 = vmul.f32 %v509, %v528
      %v530 = vrcp.pop %v522
      %v531 = vmul.f32 %v511, %v530
      %v532 = vrcp.pop %v525
      %v533 = vmul.f32 %v513, %v532
      %v534 = vpack.c.bf16 %v527, %v527
      %v535 = vpack.c.bf16 %v529, %v529
      %v536 = vpack.c.bf16 %v531, %v531
      %v537 = vpack.c.bf16 %v533, %v533
      %v539 = vsel %vm489, %v534, 0
      %vm541 = vcmask 1043456
      %v543 = vsel %vm541, %v291, 0
      %545 = vmatprep.subr.bf16.mxu0 0
      %546 = vmatpush1.bf16.msra.mxu0 %v543
      %547 = vmatprep.subr.bf16.mxu0 0
      %548 = vmatpush1.bf16.msra.mxu0 0
      %549 = vmatprep.subr.bf16.mxu0 0
      %550 = vmatpush1.bf16.msra.mxu0 0
      %551 = vmatprep.subr.bf16.mxu0 0
      %552 = vmatpush1.bf16.msra.mxu0 0
      %553 = vmatprep.subr.bf16.mxu0 0
      %554 = vmatpush1.bf16.msra.mxu0 0
      %555 = vmatprep.subr.bf16.mxu0 0
      %556 = vmatpush1.bf16.msra.mxu0 0
      %557 = vmatprep.subr.bf16.mxu0 0
      %558 = vmatpush1.bf16.msra.mxu0 0
      %559 = vmatprep.subr.bf16.mxu0 0
      %560 = vmatpush1.bf16.msra.mxu0 0
      %561 = vmatprep.subr.bf16.mxu0 0
      %562 = vmatpush1.bf16.msra.mxu0 0
      %563 = vmatprep.subr.bf16.mxu0 0
      %564 = vmatpush1.bf16.msra.mxu0 0
      %565 = vmatprep.subr.bf16.mxu0 0
      %566 = vmatpush1.bf16.msra.mxu0 0
      %567 = vmatprep.subr.bf16.mxu0 0
      %568 = vmatpush1.bf16.msra.mxu0 0
      %569 = vmatprep.subr.bf16.mxu0 0
      %570 = vmatpush1.bf16.msra.mxu0 0
      %571 = vmatprep.subr.bf16.mxu0 0
      %572 = vmatpush1.bf16.msra.mxu0 0
      %573 = vmatprep.subr.bf16.mxu0 0
      %574 = vmatpush1.bf16.msra.mxu0 0
      %575 = vmatprep.subr.bf16.mxu0 0
      %576 = vmatpush1.bf16.msra.mxu0 0
      %577 = vmatprep.mubr.bf16.mxu0 0
      %578 = vmatmul.mubr.bf16.gmra.mrb[0].mxu0 %v539
      %v579 = vpop.f32.mrb[0].mxu0
      %v580 = vadd.f32 0.0, %v579
      %v581 = vpop.f32.mrb[0].mxu0
      %v582 = vpop.f32.mrb[0].mxu0
      %v583 = vpop.f32.mrb[0].mxu0
      %584 = vdwg.mxu0
      %v586 = vsel %vm489, %v535, 0
      %v589 = vsel %vm541, %v292, 0
      %591 = vmatprep.subr.bf16.mxu0 0
      %592 = vmatpush1.bf16.msra.mxu0 %v589
      %593 = vmatprep.subr.bf16.mxu0 0
      %594 = vmatpush1.bf16.msra.mxu0 0
      %595 = vmatprep.subr.bf16.mxu0 0
      %596 = vmatpush1.bf16.msra.mxu0 0
      %597 = vmatprep.subr.bf16.mxu0 0
      %598 = vmatpush1.bf16.msra.mxu0 0
      %599 = vmatprep.subr.bf16.mxu0 0
      %600 = vmatpush1.bf16.msra.mxu0 0
      %601 = vmatprep.subr.bf16.mxu0 0
      %602 = vmatpush1.bf16.msra.mxu0 0
      %603 = vmatprep.subr.bf16.mxu0 0
      %604 = vmatpush1.bf16.msra.mxu0 0
      %605 = vmatprep.subr.bf16.mxu0 0
      %606 = vmatpush1.bf16.msra.mxu0 0
      %607 = vmatprep.subr.bf16.mxu0 0
      %608 = vmatpush1.bf16.msra.mxu0 0
      %609 = vmatprep.subr.bf16.mxu0 0
      %610 = vmatpush1.bf16.msra.mxu0 0
      %611 = vmatprep.subr.bf16.mxu0 0
      %612 = vmatpush1.bf16.msra.mxu0 0
      %613 = vmatprep.subr.bf16.mxu0 0
      %614 = vmatpush1.bf16.msra.mxu0 0
      %615 = vmatprep.subr.bf16.mxu0 0
      %616 = vmatpush1.bf16.msra.mxu0 0
      %617 = vmatprep.subr.bf16.mxu0 0
      %618 = vmatpush1.bf16.msra.mxu0 0
      %619 = vmatprep.subr.bf16.mxu0 0
      %620 = vmatpush1.bf16.msra.mxu0 0
      %621 = vmatprep.subr.bf16.mxu0 0
      %622 = vmatpush1.bf16.msra.mxu0 0
      %623 = vmatprep.mubr.bf16.mxu0 0
      %624 = vmatmul.mubr.bf16.gmra.mrb[0].mxu0 %v586
      %v625 = vpop.f32.mrb[0].mxu0
      %v626 = vadd.f32 0.0, %v625
      %v627 = vpop.f32.mrb[0].mxu0
      %v628 = vpop.f32.mrb[0].mxu0
      %v629 = vpop.f32.mrb[0].mxu0
      %630 = vdwg.mxu0
      %v632 = vsel %vm489, %v536, 0
      %v635 = vsel %vm541, %v293, 0
      %637 = vmatprep.subr.bf16.mxu0 0
      %638 = vmatpush1.bf16.msra.mxu0 %v635
      %639 = vmatprep.subr.bf16.mxu0 0
      %640 = vmatpush1.bf16.msra.mxu0 0
      %641 = vmatprep.subr.bf16.mxu0 0
      %642 = vmatpush1.bf16.msra.mxu0 0
      %643 = vmatprep.subr.bf16.mxu0 0
      %644 = vmatpush1.bf16.msra.mxu0 0
      %645 = vmatprep.subr.bf16.mxu0 0
      %646 = vmatpush1.bf16.msra.mxu0 0
      %647 = vmatprep.subr.bf16.mxu0 0
      %648 = vmatpush1.bf16.msra.mxu0 0
      %649 = vmatprep.subr.bf16.mxu0 0
      %650 = vmatpush1.bf16.msra.mxu0 0
      %651 = vmatprep.subr.bf16.mxu0 0
      %652 = vmatpush1.bf16.msra.mxu0 0
      %653 = vmatprep.subr.bf16.mxu0 0
      %654 = vmatpush1.bf16.msra.mxu0 0
      %655 = vmatprep.subr.bf16.mxu0 0
      %656 = vmatpush1.bf16.msra.mxu0 0
      %657 = vmatprep.subr.bf16.mxu0 0
      %658 = vmatpush1.bf16.msra.mxu0 0
      %659 = vmatprep.subr.bf16.mxu0 0
      %660 = vmatpush1.bf16.msra.mxu0 0
      %661 = vmatprep.subr.bf16.mxu0 0
      %662 = vmatpush1.bf16.msra.mxu0 0
      %663 = vmatprep.subr.bf16.mxu0 0
      %664 = vmatpush1.bf16.msra.mxu0 0
      %665 = vmatprep.subr.bf16.mxu0 0
      %666 = vmatpush1.bf16.msra.mxu0 0
      %667 = vmatprep.subr.bf16.mxu0 0
      %668 = vmatpush1.bf16.msra.mxu0 0
      %669 = vmatprep.mubr.bf16.mxu0 0
      %670 = vmatmul.mubr.bf16.gmra.mrb[0].mxu0 %v632
      %v671 = vpop.f32.mrb[0].mxu0
      %v672 = vadd.f32 0.0, %v671
      %v673 = vpop.f32.mrb[0].mxu0
      %v674 = vpop.f32.mrb[0].mxu0
      %v675 = vpop.f32.mrb[0].mxu0
      %676 = vdwg.mxu0
      %v678 = vsel %vm489, %v537, 0
      %v681 = vsel %vm541, %v294, 0
      %683 = vmatprep.subr.bf16.mxu0 0
      %684 = vmatpush1.bf16.msra.mxu0 %v681
      %685 = vmatprep.subr.bf16.mxu0 0
      %686 = vmatpush1.bf16.msra.mxu0 0
      %687 = vmatprep.subr.bf16.mxu0 0
      %688 = vmatpush1.bf16.msra.mxu0 0
      %689 = vmatprep.subr.bf16.mxu0 0
      %690 = vmatpush1.bf16.msra.mxu0 0
      %691 = vmatprep.subr.bf16.mxu0 0
      %692 = vmatpush1.bf16.msra.mxu0 0
      %693 = vmatprep.subr.bf16.mxu0 0
      %694 = vmatpush1.bf16.msra.mxu0 0
      %695 = vmatprep.subr.bf16.mxu0 0
      %696 = vmatpush1.bf16.msra.mxu0 0
      %697 = vmatprep.subr.bf16.mxu0 0
      %698 = vmatpush1.bf16.msra.mxu0 0
      %699 = vmatprep.subr.bf16.mxu0 0
      %700 = vmatpush1.bf16.msra.mxu0 0
      %701 = vmatprep.subr.bf16.mxu0 0
      %702 = vmatpush1.bf16.msra.mxu0 0
      %703 = vmatprep.subr.bf16.mxu0 0
      %704 = vmatpush1.bf16.msra.mxu0 0
      %705 = vmatprep.subr.bf16.mxu0 0
      %706 = vmatpush1.bf16.msra.mxu0 0
      %707 = vmatprep.subr.bf16.mxu0 0
      %708 = vmatpush1.bf16.msra.mxu0 0
      %709 = vmatprep.subr.bf16.mxu0 0
      %710 = vmatpush1.bf16.msra.mxu0 0
      %711 = vmatprep.subr.bf16.mxu0 0
      %712 = vmatpush1.bf16.msra.mxu0 0
      %713 = vmatprep.subr.bf16.mxu0 0
      %714 = vmatpush1.bf16.msra.mxu0 0
      %715 = vmatprep.mubr.bf16.mxu0 0
      %716 = vmatmul.mubr.bf16.gmra.mrb[0].mxu0 %v678
      %v717 = vpop.f32.mrb[0].mxu0
      %v718 = vadd.f32 0.0, %v717
      %v719 = vpop.f32.mrb[0].mxu0
      %v720 = vpop.f32.mrb[0].mxu0
      %v721 = vpop.f32.mrb[0].mxu0
      %722 = vdwg.mxu0
      %v723 = vpack.c.bf16 %v580, %v580
      %v724 = vpack.c.bf16 %v626, %v626
      %v725 = vpack.c.bf16 %v672, %v672
      %v726 = vpack.c.bf16 %v718, %v718
      %v727 = vld [vmem:[%s4] sm:$0xff]
      %v728 = vld [vmem:[%s4 + $0x8] sm:$0xff]
      %v729 = vld [vmem:[%s4 + $0x10] sm:$0xff]
      %v730 = vld [vmem:[%s4 + $0x18] sm:$0xff]
      %v731 = vld [vmem:[%s4 + $0x20] sm:$0xff]
      %v732 = vld [vmem:[%s4 + $0x28] sm:$0xff]
      %v733 = vld [vmem:[%s4 + $0x30] sm:$0xff]
      %v734 = vld [vmem:[%s4 + $0x38] sm:$0xff]
      %v735 = vpack.c.bf16 %v728, %v727
      %v736 = vpack.c.bf16 %v730, %v729
      %v737 = vpack.c.bf16 %v732, %v731
      %v738 = vpack.c.bf16 %v734, %v733
      %v740 = vsel %vm295, %v723, 0
      %742 = vmatprep.subr.bf16.mxu0 0
      %743 = vmatpush1.bf16.msra.mxu0 %v735
      %744 = vmatprep.subr.bf16.mxu0 0
      %745 = vmatpush1.bf16.msra.mxu0 0
      %746 = vmatprep.subr.bf16.mxu0 0
      %747 = vmatpush1.bf16.msra.mxu0 0
      %748 = vmatprep.subr.bf16.mxu0 0
      %749 = vmatpush1.bf16.msra.mxu0 0
      %750 = vmatprep.subr.bf16.mxu0 0
      %751 = vmatpush1.bf16.msra.mxu0 0
      %752 = vmatprep.subr.bf16.mxu0 0
      %753 = vmatpush1.bf16.msra.mxu0 0
      %754 = vmatprep.subr.bf16.mxu0 0
      %755 = vmatpush1.bf16.msra.mxu0 0
      %756 = vmatprep.subr.bf16.mxu0 0
      %757 = vmatpush1.bf16.msra.mxu0 0
      %758 = vmatprep.subr.bf16.mxu0 0
      %759 = vmatpush1.bf16.msra.mxu0 0
      %760 = vmatprep.subr.bf16.mxu0 0
      %761 = vmatpush1.bf16.msra.mxu0 0
      %762 = vmatprep.subr.bf16.mxu0 0
      %763 = vmatpush1.bf16.msra.mxu0 0
      %764 = vmatprep.subr.bf16.mxu0 0
      %765 = vmatpush1.bf16.msra.mxu0 0
      %766 = vmatprep.subr.bf16.mxu0 0
      %767 = vmatpush1.bf16.msra.mxu0 0
      %768 = vmatprep.subr.bf16.mxu0 0
      %769 = vmatpush1.bf16.msra.mxu0 0
      %770 = vmatprep.subr.bf16.mxu0 0
      %771 = vmatpush1.bf16.msra.mxu0 0
      %772 = vmatprep.subr.bf16.mxu0 0
      %773 = vmatpush1.bf16.msra.mxu0 0
      %774 = vmatprep.mubr.bf16.mxu0 0
      %775 = vmatmul.mubr.bf16.gmra.mrb[0].mxu0 %v740
      %v776 = vpop.f32.mrb[0].mxu0
      %v777 = vadd.f32 0.0, %v776
      %v778 = vpop.f32.mrb[0].mxu0
      %v779 = vpop.f32.mrb[0].mxu0
      %v780 = vpop.f32.mrb[0].mxu0
      %781 = vdwg.mxu0
      %v783 = vsel %vm295, %v724, 0
      %785 = vmatprep.subr.bf16.mxu0 0
      %786 = vmatpush1.bf16.msra.mxu0 %v736
      %787 = vmatprep.subr.bf16.mxu0 0
      %788 = vmatpush1.bf16.msra.mxu0 0
      %789 = vmatprep.subr.bf16.mxu0 0
      %790 = vmatpush1.bf16.msra.mxu0 0
      %791 = vmatprep.subr.bf16.mxu0 0
      %792 = vmatpush1.bf16.msra.mxu0 0
      %793 = vmatprep.subr.bf16.mxu0 0
      %794 = vmatpush1.bf16.msra.mxu0 0
      %795 = vmatprep.subr.bf16.mxu0 0
      %796 = vmatpush1.bf16.msra.mxu0 0
      %797 = vmatprep.subr.bf16.mxu0 0
      %798 = vmatpush1.bf16.msra.mxu0 0
      %799 = vmatprep.subr.bf16.mxu0 0
      %800 = vmatpush1.bf16.msra.mxu0 0
      %801 = vmatprep.subr.bf16.mxu0 0
      %802 = vmatpush1.bf16.msra.mxu0 0
      %803 = vmatprep.subr.bf16.mxu0 0
      %804 = vmatpush1.bf16.msra.mxu0 0
      %805 = vmatprep.subr.bf16.mxu0 0
      %806 = vmatpush1.bf16.msra.mxu0 0
      %807 = vmatprep.subr.bf16.mxu0 0
      %808 = vmatpush1.bf16.msra.mxu0 0
      %809 = vmatprep.subr.bf16.mxu0 0
      %810 = vmatpush1.bf16.msra.mxu0 0
      %811 = vmatprep.subr.bf16.mxu0 0
      %812 = vmatpush1.bf16.msra.mxu0 0
      %813 = vmatprep.subr.bf16.mxu0 0
      %814 = vmatpush1.bf16.msra.mxu0 0
      %815 = vmatprep.subr.bf16.mxu0 0
      %816 = vmatpush1.bf16.msra.mxu0 0
      %817 = vmatprep.mubr.bf16.mxu0 0
      %818 = vmatmul.mubr.bf16.gmra.mrb[0].mxu0 %v783
      %v819 = vpop.f32.mrb[0].mxu0
      %v820 = vadd.f32 0.0, %v819
      %v821 = vpop.f32.mrb[0].mxu0
      %v822 = vpop.f32.mrb[0].mxu0
      %v823 = vpop.f32.mrb[0].mxu0
      %824 = vdwg.mxu0
      %v826 = vsel %vm295, %v725, 0
      %828 = vmatprep.subr.bf16.mxu0 0
      %829 = vmatpush1.bf16.msra.mxu0 %v737
      %830 = vmatprep.subr.bf16.mxu0 0
      %831 = vmatpush1.bf16.msra.mxu0 0
      %832 = vmatprep.subr.bf16.mxu0 0
      %833 = vmatpush1.bf16.msra.mxu0 0
      %834 = vmatprep.subr.bf16.mxu0 0
      %835 = vmatpush1.bf16.msra.mxu0 0
      %836 = vmatprep.subr.bf16.mxu0 0
      %837 = vmatpush1.bf16.msra.mxu0 0
      %838 = vmatprep.subr.bf16.mxu0 0
      %839 = vmatpush1.bf16.msra.mxu0 0
      %840 = vmatprep.subr.bf16.mxu0 0
      %841 = vmatpush1.bf16.msra.mxu0 0
      %842 = vmatprep.subr.bf16.mxu0 0
      %843 = vmatpush1.bf16.msra.mxu0 0
      %844 = vmatprep.subr.bf16.mxu0 0
      %845 = vmatpush1.bf16.msra.mxu0 0
      %846 = vmatprep.subr.bf16.mxu0 0
      %847 = vmatpush1.bf16.msra.mxu0 0
      %848 = vmatprep.subr.bf16.mxu0 0
      %849 = vmatpush1.bf16.msra.mxu0 0
      %850 = vmatprep.subr.bf16.mxu0 0
      %851 = vmatpush1.bf16.msra.mxu0 0
      %852 = vmatprep.subr.bf16.mxu0 0
      %853 = vmatpush1.bf16.msra.mxu0 0
      %854 = vmatprep.subr.bf16.mxu0 0
      %855 = vmatpush1.bf16.msra.mxu0 0
      %856 = vmatprep.subr.bf16.mxu0 0
      %857 = vmatpush1.bf16.msra.mxu0 0
      %858 = vmatprep.subr.bf16.mxu0 0
      %859 = vmatpush1.bf16.msra.mxu0 0
      %860 = vmatprep.mubr.bf16.mxu0 0
      %861 = vmatmul.mubr.bf16.gmra.mrb[0].mxu0 %v826
      %v862 = vpop.f32.mrb[0].mxu0
      %v863 = vadd.f32 0.0, %v862
      %v864 = vpop.f32.mrb[0].mxu0
      %v865 = vpop.f32.mrb[0].mxu0
      %v866 = vpop.f32.mrb[0].mxu0
      %867 = vdwg.mxu0
      %v869 = vsel %vm295, %v726, 0
      %871 = vmatprep.subr.bf16.mxu0 0
      %872 = vmatpush1.bf16.msra.mxu0 %v738
      %873 = vmatprep.subr.bf16.mxu0 0
      %874 = vmatpush1.bf16.msra.mxu0 0
      %875 = vmatprep.subr.bf16.mxu0 0
      %876 = vmatpush1.bf16.msra.mxu0 0
      %877 = vmatprep.subr.bf16.mxu0 0
      %878 = vmatpush1.bf16.msra.mxu0 0
      %879 = vmatprep.subr.bf16.mxu0 0
      %880 = vmatpush1.bf16.msra.mxu0 0
      %881 = vmatprep.subr.bf16.mxu0 0
      %882 = vmatpush1.bf16.msra.mxu0 0
      %883 = vmatprep.subr.bf16.mxu0 0
      %884 = vmatpush1.bf16.msra.mxu0 0
      %885 = vmatprep.subr.bf16.mxu0 0
      %886 = vmatpush1.bf16.msra.mxu0 0
      %887 = vmatprep.subr.bf16.mxu0 0
      %888 = vmatpush1.bf16.msra.mxu0 0
      %889 = vmatprep.subr.bf16.mxu0 0
      %890 = vmatpush1.bf16.msra.mxu0 0
      %891 = vmatprep.subr.bf16.mxu0 0
      %892 = vmatpush1.bf16.msra.mxu0 0
      %893 = vmatprep.subr.bf16.mxu0 0
      %894 = vmatpush1.bf16.msra.mxu0 0
      %895 = vmatprep.subr.bf16.mxu0 0
      %896 = vmatpush1.bf16.msra.mxu0 0
      %897 = vmatprep.subr.bf16.mxu0 0
      %898 = vmatpush1.bf16.msra.mxu0 0
      %899 = vmatprep.subr.bf16.mxu0 0
      %900 = vmatpush1.bf16.msra.mxu0 0
      %901 = vmatprep.subr.bf16.mxu0 0
      %902 = vmatpush1.bf16.msra.mxu0 0
      %903 = vmatprep.mubr.bf16.mxu0 0
      %904 = vmatmul.mubr.bf16.gmra.mrb[0].mxu0 %v869
      %v905 = vpop.f32.mrb[0].mxu0
      %v906 = vadd.f32 0.0, %v905
      %v907 = vpop.f32.mrb[0].mxu0
      %v908 = vpop.f32.mrb[0].mxu0
      %v909 = vpop.f32.mrb[0].mxu0
      %910 = vdwg.mxu0
      %vm911 = vcmask 523264
      %v912 = vsel %vm911, %v777, 0.0
      %v913 = vsel %vm911, %v820, 0.0
      %v914 = vadd.f32 %v912, %v913
      %v915 = vsel %vm911, %v863, 0.0
      %v916 = vadd.f32 %v914, %v915
      %v917 = vsel %vm911, %v906, 0.0
      %v918 = vadd.f32 %v916, %v917
      %v919 = vadd.f32 %v282, %v918
      %v920 = vpack.c.bf16 %v919, %v919
      %vm921 = vcmask 519168
      %922 = vst.msk [vmem:[%s279] sm:$0xf] %vm921, %v920
      %p923 = scmp.lt.s32.totalorder %s16, 1
      %s924 = scalar_select %p923, %s16, 1
      %s925 = smul.addr %s924, 4
      %s926 = scalar_lea.vmem %s5, %s925
      // Predicated region
      $region41: #{forward.8} parent=39 // pred_check
        %p927 = pneg %p159
      $region42: #{forward.8} parent=39 // pred_check_branch
        %929 = sbr.rel (%p927) target = $region44
      $region43: #{forward.8} parent=39 // pred_region
        _
      $region44: #{forward.8} parent=39 // pred_fallthru
        _
    $region40: #{forward.8} parent=5 // pred_fallthru
      _
    %p930 = scmp.le.s32.totalorder 2, %s11
    // Predicated region
    $region45: #{forward.8} parent=5 // pred_check
      %p931 = pneg %p930
    $region46: #{forward.8} parent=5 // pred_check_branch
      %933 = sbr.rel (%p931) target = $region48
    $region47: #{forward.8} parent=5 // pred_region
      %s934 = ssub.s32 %s11, 2
      // Predicated region
      $region49: #{forward.8} parent=47 // pred_check
        %p935 = pneg %p165
      $region50: #{forward.8} parent=47 // pred_check_branch
        %937 = sbr.rel (%p935) target = $region52
      $region51: #{forward.8} parent=47 // pred_region
        %p938 = scmp.lt.s32.totalorder %s17, 1
        %s939 = scalar_select %p938, %s17, 1
        %s940 = smul.addr %s939, 4
        %s941 = scalar_lea.vmem %s5, %s940
      $region52: #{forward.8} parent=47 // pred_fallthru
        _
    $region48: #{forward.8} parent=5 // pred_fallthru
      _
  $region6: #{forward.8} parent=0 // loop_footer
    %s15 = sadd.s32 1, %s11
  $region7: #{forward.8} parent=0 // loop_footer_branch
    %10 = sbr.rel target = $region3
  $region8: #{forward.8} parent=0 // loop_exit
    _

// kernel: forward.13
$region0: #{forward.13}
  #allocation0 [shape = 'u32[]', space=smem, size = 0x4, offset = 0x4, fixed_abs, tag = 'smem constant byte address 0x4 - core index']
  #allocation1 [shape = 'u32[144,128]{1,0:T(1,128)}', space=vmem, size = 0x12000, scoped, tag = 'internal scratch']
  %s0 = inlined_call_operand.hbm [shape: bf16[16,64], index: 0, kind: input, shape index: {}]
  %s1 = inlined_call_operand.vmem [shape: f32[1,64], index: 1, kind: input, shape index: {}]
  %s2 = inlined_call_operand.hbm [shape: f32[64,256], index: 2, kind: input, shape index: {}]
  %s3 = inlined_call_operand.hbm [shape: f32[16,64], index: 3, kind: output, shape index: {0}]
  %s4 = inlined_call_operand.vmem [shape: f32[16,256], index: 4, kind: output, shape index: {1}]
  %5 = xla_tuple %s3, %s4
  %s6 = sld [smem:[#allocation0]]
  $region38: #{forward.13} parent=0
    _
  %s8 = ssub.s32 1, %s6
  %s9 = scalar_select 0, %s8, %s6
  $region1: #{forward.13} parent=0
    #allocation2 [shape = 'u8[4096]{0}', space=vmem, size = 0x1000, scoped, tag = 'input window, operand 0, single buffered']
    #allocation3 [shape = 's32[1]{0}', space=sflag, size = 0x4, scoped, tag = 'scoped memory for forward.13']
    #allocation4 [shape = 's32[1]{0}', space=sflag, size = 0x4, scoped, tag = 'scoped memory for forward.13']
    #allocation5 [shape = 'u8[65536]{0}', space=vmem, size = 0x10000, scoped, tag = 'input window, operand 2, single buffered']
    #allocation6 [shape = 's32[1]{0}', space=sflag, size = 0x4, scoped, tag = 'scoped memory for forward.13']
    #allocation7 [shape = 'u8[8192]{0}', space=vmem, size = 0x2000, scoped, tag = 'output window, operand 0, single buffered']
    %10 = vsyncpa [#allocation3], 0
    %11 = vsyncpa [#allocation6], 0
    %12 = vsyncpa [#allocation4], 0
    // Predicated region
    $region2: #{forward.13} parent=1 // pred_check
      _
    $region3: #{forward.13} parent=1 // pred_check_branch
      %14 = sbr.rel (0) target = $region5
    $region4: #{forward.13} parent=1 // pred_region
      %s16 = ssub.s32 128, 128
      %17 = vsyncadd [#allocation3], %s16
      %s18 = sshll.u32 [#allocation2], 4
      %s19 = int_to_ptr.vmem [resolvable:$true] %s18
      %24 = dma.hbm_to_vmem [thread:$0]  %s0, 128, %s19, [#allocation3], 64, 64, 4
    $region5: #{forward.13} parent=1 // pred_fallthru
      _
    // Predicated region
    $region6: #{forward.13} parent=1 // pred_check
      _
    $region7: #{forward.13} parent=1 // pred_check_branch
      %26 = sbr.rel (0) target = $region9
    $region8: #{forward.13} parent=1 // pred_region
      _
    $region9: #{forward.13} parent=1 // pred_fallthru
      _
    // Predicated region
    $region10: #{forward.13} parent=1 // pred_check
      _
    $region11: #{forward.13} parent=1 // pred_check_branch
      %28 = sbr.rel (0) target = $region13
    $region12: #{forward.13} parent=1 // pred_region
      %s30 = ssub.s32 2048, 2048
      %31 = vsyncadd [#allocation6], %s30
      %s32 = sshll.u32 [#allocation5], 4
      %s33 = int_to_ptr.vmem [resolvable:$true] %s32
      %38 = dma.hbm_to_vmem [thread:$0]  %s2, 2048, %s33, [#allocation6], 256, 256, 16
    $region13: #{forward.13} parent=1 // pred_fallthru
      _
    // Predicated region
    $region14: #{forward.13} parent=1 // pred_check
      _
    $region15: #{forward.13} parent=1 // pred_check_branch
      %40 = sbr.rel (0) target = $region17
    $region16: #{forward.13} parent=1 // pred_region
      %41 = dma.done [#allocation3], 128
    $region17: #{forward.13} parent=1 // pred_fallthru
      _
    // Predicated region
    $region18: #{forward.13} parent=1 // pred_check
      _
    $region19: #{forward.13} parent=1 // pred_check_branch
      %43 = sbr.rel (0) target = $region21
    $region20: #{forward.13} parent=1 // pred_region
      %44 = dma.done [#allocation6], 2048
    $region21: #{forward.13} parent=1 // pred_fallthru
      _
    %v46 = vld [vmem:[#allocation2] sm:$0xf]
    %v47 = vld [vmem:[#allocation2 + $0x4] sm:$0xf]
    %v48 = vld [vmem:[%s1] sm:$0x1]
    %v49 = vunpack.c.l.bf16 %v46
    %v50 = vunpack.c.l.bf16 %v47
    %v51 = vmul.f32 %v49, %v49
    %v52 = vmul.f32 %v50, %v50
    %vm53 = vcmask 523264
    %v54 = vsel %vm53, %v51, 0.0
    %55 = vadd.xlane.f32.xlu0 %v54
    %v56 = vpop.xlane.xlu0 %55
    %v57 = vsel %vm53, %v52, 0.0
    %58 = vadd.xlane.f32.xlu0 %v57
    %v59 = vpop.xlane.xlu0 %58
    %v60 = vrcp.pop 64.0
    %v61 = vmul.f32 %v56, %v60
    %v62 = vmul.f32 %v59, %v60
    %v63 = vadd.f32 %v61, 1e-06
    %v64 = vadd.f32 %v62, 1e-06
    %v65 = vrsqrt.pop %v63
    %v66 = vrsqrt.pop %v64
    %v67 = vmul.f32 %v49, %v65
    %v68 = vmul.f32 %v50, %v66
    %v70 = vlaneseq
    %v71 = vshrl.u32 %v70, 7
    %v72 = vsub.s32 0, %v71
    %v73 = vrot.slane %v48, %v72
    %v75 = vmul.f32 %v67, %v73
    %v76 = vmul.f32 %v68, %v73
    %77 = vst.msk [vmem:[#allocation7] sm:$0xff] %vm53, %v75
    %78 = vst.msk [vmem:[#allocation7 + $0x8] sm:$0xff] %vm53, %v76
    %v79 = vpack.c.bf16 %v76, %v75
    %v80 = vld [vmem:[#allocation5] sm:$0xff]
    %v81 = vld [vmem:[#allocation5 + $0x8] sm:$0xff]
    %v82 = vld [vmem:[#allocation5 + $0x10] sm:$0xff]
    %v83 = vld [vmem:[#allocation5 + $0x18] sm:$0xff]
    %v84 = vld [vmem:[#allocation5 + $0x20] sm:$0xff]
    %v85 = vld [vmem:[#allocation5 + $0x28] sm:$0xff]
    %v86 = vld [vmem:[#allocation5 + $0x30] sm:$0xff]
    %v87 = vld [vmem:[#allocation5 + $0x38] sm:$0xff]
    %v88 = vld [vmem:[#allocation5 + $0x40] sm:$0xff]
    %v89 = vld [vmem:[#allocation5 + $0x48] sm:$0xff]
    %v90 = vld [vmem:[#allocation5 + $0x50] sm:$0xff]
    %v91 = vld [vmem:[#allocation5 + $0x58] sm:$0xff]
    %v92 = vld [vmem:[#allocation5 + $0x60] sm:$0xff]
    %v93 = vld [vmem:[#allocation5 + $0x68] sm:$0xff]
    %v94 = vld [vmem:[#allocation5 + $0x70] sm:$0xff]
    %v95 = vld [vmem:[#allocation5 + $0x78] sm:$0xff]
    %v96 = vpack.c.bf16 %v82, %v80
    %v97 = vpack.c.bf16 %v83, %v81
    %v98 = vpack.c.bf16 %v86, %v84
    %v99 = vpack.c.bf16 %v87, %v85
    %v100 = vpack.c.bf16 %v90, %v88
    %v101 = vpack.c.bf16 %v91, %v89
    %v102 = vpack.c.bf16 %v94, %v92
    %v103 = vpack.c.bf16 %v95, %v93
    %v105 = vsel %vm53, %v79, 0
    %107 = vmatprep.subr.bf16.mxu0 %v97
    %108 = vmatpush1.bf16.msra.mxu0 %v96
    %109 = vmatprep.subr.bf16.mxu0 %v99
    %110 = vmatpush1.bf16.msra.mxu0 %v98
    %111 = vmatprep.subr.bf16.mxu0 %v101
    %112 = vmatpush1.bf16.msra.mxu0 %v100
    %113 = vmatprep.subr.bf16.mxu0 %v103
    %114 = vmatpush1.bf16.msra.mxu0 %v102
    %115 = vmatprep.subr.bf16.mxu0 0
    %116 = vmatpush1.bf16.msra.mxu0 0
    %117 = vmatprep.subr.bf16.mxu0 0
    %118 = vmatpush1.bf16.msra.mxu0 0
    %119 = vmatprep.subr.bf16.mxu0 0
    %120 = vmatpush1.bf16.msra.mxu0 0
    %121 = vmatprep.subr.bf16.mxu0 0
    %122 = vmatpush1.bf16.msra.mxu0 0
    %123 = vmatprep.subr.bf16.mxu0 0
    %124 = vmatpush1.bf16.msra.mxu0 0
    %125 = vmatprep.subr.bf16.mxu0 0
    %126 = vmatpush1.bf16.msra.mxu0 0
    %127 = vmatprep.subr.bf16.mxu0 0
    %128 = vmatpush1.bf16.msra.mxu0 0
    %129 = vmatprep.subr.bf16.mxu0 0
    %130 = vmatpush1.bf16.msra.mxu0 0
    %131 = vmatprep.subr.bf16.mxu0 0
    %132 = vmatpush1.bf16.msra.mxu0 0
    %133 = vmatprep.subr.bf16.mxu0 0
    %134 = vmatpush1.bf16.msra.mxu0 0
    %135 = vmatprep.subr.bf16.mxu0 0
    %136 = vmatpush1.bf16.msra.mxu0 0
    %137 = vmatprep.subr.bf16.mxu0 0
    %138 = vmatpush1.bf16.msra.mxu0 0
    %139 = vmatprep.mubr.bf16.mxu0 0
    %140 = vmatmul.mubr.bf16.gmra.mrb[0].mxu0 %v105
    %v141 = vpop.f32.mrb[0].mxu0
    %v142 = vadd.f32 0.0, %v141
    %v143 = vpop.f32.mrb[0].mxu0
    %v144 = vadd.f32 0.0, %v143
    %v145 = vpop.f32.mrb[0].mxu0
    %v146 = vadd.f32 0.0, %v145
    %v147 = vpop.f32.mrb[0].mxu0
    %v148 = vadd.f32 0.0, %v147
    %149 = vdwg.mxu0
    %150 = vst [vmem:[%s4] sm:$0xff] %v142
    %151 = vst [vmem:[%s4 + $0x8] sm:$0xff] %v144
    %152 = vst [vmem:[%s4 + $0x10] sm:$0xff] %v146
    %153 = vst [vmem:[%s4 + $0x18] sm:$0xff] %v148
    // Predicated region
    $region22: #{forward.13} parent=1 // pred_check
      _
    $region23: #{forward.13} parent=1 // pred_check_branch
      %155 = sbr.rel (0) target = $region25
    $region24: #{forward.13} parent=1 // pred_region
      %s157 = ssub.s32 256, 256
      %158 = vsyncadd [#allocation4], %s157
      %s159 = sshll.u32 [#allocation7], 4
      %s160 = int_to_ptr.vmem [resolvable:$true] %s159
      %165 = dma.vmem_to_hbm [thread:$0]  %s160, 256, %s3, [#allocation4], 128, 128, 8
    $region25: #{forward.13} parent=1 // pred_fallthru
      _
    // Predicated region
    $region26: #{forward.13} parent=1 // pred_check
      _
    $region27: #{forward.13} parent=1 // pred_check_branch
      %167 = sbr.rel (0) target = $region29
    $region28: #{forward.13} parent=1 // pred_region
      _
    $region29: #{forward.13} parent=1 // pred_fallthru
      _
    // Predicated region
    $region30: #{forward.13} parent=1 // pred_check
      _
    $region31: #{forward.13} parent=1 // pred_check_branch
      %169 = sbr.rel (0) target = $region33
    $region32: #{forward.13} parent=1 // pred_region
      %170 = dma.done [#allocation4], 256
    $region33: #{forward.13} parent=1 // pred_fallthru
      _
    // Predicated region
    $region34: #{forward.13} parent=1 // pred_check
      _
    $region35: #{forward.13} parent=1 // pred_check_branch
      %172 = sbr.rel (0) target = $region37
    $region36: #{forward.13} parent=1 // pred_region
      _
    $region37: #{forward.13} parent=1 // pred_fallthru
      _
    %173 = vsyncpa [#allocation3], 1
    %174 = vsyncpa [#allocation6], 1
    %175 = vsyncpa [#allocation4], 1

// kernel: forward.12
$region0: #{forward.12}
  #allocation0 [shape = 'u32[]', space=smem, size = 0x4, offset = 0x4, fixed_abs, tag = 'smem constant byte address 0x4 - core index']
  #allocation1 [shape = 'u32[144,128]{1,0:T(1,128)}', space=vmem, size = 0x12000, scoped, tag = 'internal scratch']
  #allocation2 [shape = 'bf16[16,64]{1,0:T(16,128)(2,1)}', space=vmem, size = 0x1000, scoped, tag = 'scratch operand']
  #allocation3 [shape = 'f32[16,64]{1,0:T(8,128)}', space=vmem, size = 0x2000, scoped, tag = 'scratch operand']
  #allocation4 [shape = 's32[1]{0}', space=sflag, size = 0x4, scoped, tag = 'scoped memory for forward.12']
  #allocation5 [shape = 'u8[512]{0}', space=smem, size = 0x200, scoped, tag = 'prefetched SMEM operand 0']
  %s0 = inlined_call_operand.hbm [shape: s32[1,4], index: 0, kind: input, shape index: {}]
  %s1 = inlined_call_operand.hbm [shape: bf16[16,64], index: 1, kind: input, shape index: {}]
  %s2 = inlined_call_operand.hbm [shape: f32[1,64], index: 2, kind: input, shape index: {}]
  %s3 = inlined_call_operand.hbm [shape: f32[4,64,256], index: 3, kind: input, shape index: {}]
  %s4 = inlined_call_operand.hbm [shape: f32[4,128,64], index: 4, kind: input, shape index: {}]
  %s5 = inlined_call_operand.hbm [shape: f32[4,16,1], index: 5, kind: input, shape index: {}]
  %s6 = inlined_call_operand.hbm [shape: bf16[16,64], index: 6, kind: output, shape index: {}]
  %s7 = sld [smem:[#allocation0]]
  $region85: #{forward.12} parent=0
    _
  %s9 = ssub.s32 1, %s7
  %s10 = scalar_select 0, %s9, %s7
  %12 = dma.hbm_to_smem %s0, 16, [#allocation5], [#allocation4]
  %13 = dma.done [#allocation4], 16
  %14 = sfence
  $region1: #{forward.12} parent=0
    #allocation6 [shape = 'u8[4096]{0}', space=vmem, size = 0x1000, scoped, tag = 'input window, operand 1, single buffered']
    #allocation7 [shape = 's32[2]{0}', space=sflag, size = 0x8, scoped, tag = 'scoped memory for forward.12']
    #allocation8 [shape = 's32[2]{0}', space=sflag, size = 0x8, scoped, tag = 'scoped memory for forward.12']
    #allocation9 [shape = 'u8[512]{0}', space=vmem, size = 0x400, scoped, tag = 'input window, operand 2, single buffered']
    #allocation10 [shape = 's32[1]{0}', space=sflag, size = 0x4, scoped, tag = 'scoped memory for forward.12']
    #allocation11 [shape = 'u8[131072]{0}', space=vmem, size = 0x20000, scoped, tag = 'input window, operand 3']
    #allocation12 [shape = 'u8[131072]{0}', space=vmem, size = 0x20000, scoped, tag = 'input window, operand 4']
    #allocation13 [shape = 'u8[16384]{0}', space=vmem, size = 0x4000, scoped, tag = 'input window, operand 5']
    #allocation14 [shape = 'u8[4096]{0}', space=vmem, size = 0x1000, scoped, tag = 'output window, operand 0, single buffered']
    %15 = vsyncpa [#allocation7], 0
    %16 = vsyncpa [#allocation10], 0
    %17 = vsyncpa [#allocation8], 0
    loop: start=0, step=1, limit=6
    $region2: #{forward.12} parent=1 // loop_pre_header
      _
    $region3: #{forward.12} parent=1 // loop_header
      %s19 = sphi 0, %s23
      %p20 = scmp.ge.s32.totalorder %s19, 6
      %s26 = sphi 0, %s38
      %s27 = sphi 0, %s34
      %s28 = sphi 0, %s26
      %s29 = sphi 0, %s27
      %s30 = sphi 0, %s28
      %s31 = sphi 0, %s29
      %s41 = sphi 0, %s43
      %s44 = sphi 0, %s41
      %s45 = sphi 0, %s44
      %s61 = sphi 0, %s45
      %s65 = sphi 0, %s65
      %s67 = sphi 0, %s65
      %s68 = sphi 0, %s67
      %s82 = sphi 0, %s68
      %s88 = sphi 0, %s90
      %s91 = sphi 0, %s88
      %s92 = sphi 0, %s91
      %s108 = sphi 0, %s92
      %s114 = sphi 0, %s116
      %s117 = sphi 0, %s114
      %s118 = sphi 0, %s117
      %s134 = sphi 0, %s118
      %s142 = sphi 0, %s144
      %s145 = sphi 0, %s142
      %s146 = sphi 0, %s145
      %s162 = sphi 0, %s146
      %s168 = sphi 0, %s170
      %s171 = sphi 0, %s168
      %s172 = sphi 0, %s171
      %s188 = sphi 0, %s172
    $region4: #{forward.12} parent=1 // loop_header_branch
      %22 = sbr.rel (%p20) target = $region8
    $region5: #{forward.12} parent=1 // loop_body
      %s24 = ssub.s32 %s19, 1
      %s25 = ssub.s32 %s19, 2
      %s32 = sadd.s32 1, %s27
      %p33 = scmp.ge.s32.totalorder %s32, 4
      %s34 = scalar_select %p33, 0, %s32
      %s35 = sadd.s32 1, %s26
      %s36 = scalar_select %p33, %s35, %s26
      %p37 = scmp.ge.s32.totalorder %s36, 1
      %s38 = scalar_select %p37, 0, %s36
      %s39 = ssub.s32 %s26, %s38
      %p40 = scmp.eq.s32.totalorder %s39, 0
      %s42 = sadd.s32 %s41, 1
      %s43 = scalar_select %p40, %s41, %s42
      %p46 = pneg %p40
      %p47 = scmp.eq.s32.totalorder %s19, 3
      %p48 = por %p46, %p47
      %p49 = scmp.ne.s32.totalorder %s41, %s44
      %p50 = scmp.eq.s32.totalorder %s19, 0
      %p51 = por %p49, %p50
      %p52 = scmp.ne.s32.totalorder %s41, %s44
      %p53 = scmp.eq.s32.totalorder %s24, 3
      %p54 = por %p52, %p53
      %p55 = scmp.ne.s32.totalorder %s44, %s45
      %p56 = scmp.eq.s32.totalorder %s24, 0
      %p57 = por %p55, %p56
      %p58 = scmp.ne.s32.totalorder %s44, %s45
      %p59 = scmp.eq.s32.totalorder %s25, 3
      %p60 = por %p58, %p59
      %p62 = scmp.ne.s32.totalorder %s45, %s61
      %p63 = scmp.eq.s32.totalorder %s25, 0
      %p64 = por %p62, %p63
      %s66 = sadd.s32 %s65, 1
      %p69 = scmp.eq.s32.totalorder %s19, 3
      %p70 = scmp.ne.s32.totalorder %s65, %s67
      %p71 = scmp.eq.s32.totalorder %s19, 0
      %p72 = por %p70, %p71
      %p73 = scmp.ne.s32.totalorder %s65, %s67
      %p74 = scmp.eq.s32.totalorder %s24, 3
      %p75 = por %p73, %p74
      %p76 = scmp.ne.s32.totalorder %s67, %s68
      %p77 = scmp.eq.s32.totalorder %s24, 0
      %p78 = por %p76, %p77
      %p79 = scmp.ne.s32.totalorder %s67, %s68
      %p80 = scmp.eq.s32.totalorder %s25, 3
      %p81 = por %p79, %p80
      %p83 = scmp.ne.s32.totalorder %s68, %s82
      %p84 = scmp.eq.s32.totalorder %s25, 0
      %p85 = por %p83, %p84
      %s86 = ssub.s32 %s27, %s34
      %p87 = scmp.eq.s32.totalorder %s86, 0
      %s89 = sadd.s32 %s88, 1
      %s90 = scalar_select %p87, %s88, %s89
      %p93 = pneg %p87
      %p94 = scmp.eq.s32.totalorder %s19, 3
      %p95 = por %p93, %p94
      %p96 = scmp.ne.s32.totalorder %s88, %s91
      %p97 = scmp.eq.s32.totalorder %s19, 0
      %p98 = por %p96, %p97
      %p99 = scmp.ne.s32.totalorder %s88, %s91
      %p100 = scmp.eq.s32.totalorder %s24, 3
      %p101 = por %p99, %p100
      %p102 = scmp.ne.s32.totalorder %s91, %s92
      %p103 = scmp.eq.s32.totalorder %s24, 0
      %p104 = por %p102, %p103
      %p105 = scmp.ne.s32.totalorder %s91, %s92
      %p106 = scmp.eq.s32.totalorder %s25, 3
      %p107 = por %p105, %p106
      %p109 = scmp.ne.s32.totalorder %s92, %s108
      %p110 = scmp.eq.s32.totalorder %s25, 0
      %p111 = por %p109, %p110
      %s112 = ssub.s32 %s27, %s34
      %p113 = scmp.eq.s32.totalorder %s112, 0
      %s115 = sadd.s32 %s114, 1
      %s116 = scalar_select %p113, %s114, %s115
      %p119 = pneg %p113
      %p120 = scmp.eq.s32.totalorder %s19, 3
      %p121 = por %p119, %p120
      %p122 = scmp.ne.s32.totalorder %s114, %s117
      %p123 = scmp.eq.s32.totalorder %s19, 0
      %p124 = por %p122, %p123
      %p125 = scmp.ne.s32.totalorder %s114, %s117
      %p126 = scmp.eq.s32.totalorder %s24, 3
      %p127 = por %p125, %p126
      %p128 = scmp.ne.s32.totalorder %s117, %s118
      %p129 = scmp.eq.s32.totalorder %s24, 0
      %p130 = por %p128, %p129
      %p131 = scmp.ne.s32.totalorder %s117, %s118
      %p132 = scmp.eq.s32.totalorder %s25, 3
      %p133 = por %p131, %p132
      %p135 = scmp.ne.s32.totalorder %s118, %s134
      %p136 = scmp.eq.s32.totalorder %s25, 0
      %p137 = por %p135, %p136
      %s138 = ssub.s32 %s27, %s34
      %s139 = ssub.s32 %s26, %s38
      %s140 = sor.u32 %s138, %s139
      %p141 = scmp.eq.s32.totalorder %s140, 0
      %s143 = sadd.s32 %s142, 1
      %s144 = scalar_select %p141, %s142, %s143
      %p147 = pneg %p141
      %p148 = scmp.eq.s32.totalorder %s19, 3
      %p149 = por %p147, %p148
      %p150 = scmp.ne.s32.totalorder %s142, %s145
      %p151 = scmp.eq.s32.totalorder %s19, 0
      %p152 = por %p150, %p151
      %p153 = scmp.ne.s32.totalorder %s142, %s145
      %p154 = scmp.eq.s32.totalorder %s24, 3
      %p155 = por %p153, %p154
      %p156 = scmp.ne.s32.totalorder %s145, %s146
      %p157 = scmp.eq.s32.totalorder %s24, 0
      %p158 = por %p156, %p157
      %p159 = scmp.ne.s32.totalorder %s145, %s146
      %p160 = scmp.eq.s32.totalorder %s25, 3
      %p161 = por %p159, %p160
      %p163 = scmp.ne.s32.totalorder %s146, %s162
      %p164 = scmp.eq.s32.totalorder %s25, 0
      %p165 = por %p163, %p164
      %s166 = ssub.s32 %s26, %s38
      %p167 = scmp.eq.s32.totalorder %s166, 0
      %s169 = sadd.s32 %s168, 1
      %s170 = scalar_select %p167, %s168, %s169
      %p173 = pneg %p167
      %p174 = scmp.eq.s32.totalorder %s19, 3
      %p175 = por %p173, %p174
      %p176 = scmp.ne.s32.totalorder %s168, %s171
      %p177 = scmp.eq.s32.totalorder %s19, 0
      %p178 = por %p176, %p177
      %p179 = scmp.ne.s32.totalorder %s168, %s171
      %p180 = scmp.eq.s32.totalorder %s24, 3
      %p181 = por %p179, %p180
      %p182 = scmp.ne.s32.totalorder %s171, %s172
      %p183 = scmp.eq.s32.totalorder %s24, 0
      %p184 = por %p182, %p183
      %p185 = scmp.ne.s32.totalorder %s171, %s172
      %p186 = scmp.eq.s32.totalorder %s25, 3
      %p187 = por %p185, %p186
      %p189 = scmp.ne.s32.totalorder %s172, %s188
      %p190 = scmp.eq.s32.totalorder %s25, 0
      %p191 = por %p189, %p190
      %p192 = scmp.le.s32.totalorder 1, %s19
      %p193 = scmp.lt.s32.totalorder %s19, 5
      %p194 = pnand %p192, %p193
      %p195 = pneg %p194
      // Predicated region
      $region9: #{forward.12} parent=5 // pred_check
        _
      $region10: #{forward.12} parent=5 // pred_check_branch
        %197 = sbr.rel (%p194) target = $region12
      $region11: #{forward.12} parent=5 // pred_region
        %s198 = ssub.s32 %s19, 1
        // Predicated region
        $region13: #{forward.12} parent=11 // pred_check
          %p199 = pneg %p57
        $region14: #{forward.12} parent=11 // pred_check_branch
          %201 = sbr.rel (%p199) target = $region16
        $region15: #{forward.12} parent=11 // pred_region
          %s202 = smul.u32 2, %s28
          %s204 = ssub.s32 128, 128
          %205 = vsyncadd [#allocation7], %s204
          %s206 = smul.addr %s202, 64
          %s207 = scalar_lea.hbm %s1, %s206
          %s208 = sshll.u32 [#allocation6], 4
          %s209 = int_to_ptr.vmem [resolvable:$true] %s208
          %214 = dma.hbm_to_vmem [thread:$0]  %s207, 128, %s209, [#allocation7], 64, 64, 4
        $region16: #{forward.12} parent=11 // pred_fallthru
          _
        // Predicated region
        $region17: #{forward.12} parent=11 // pred_check
          %p215 = pneg %p78
        $region18: #{forward.12} parent=11 // pred_check_branch
          %217 = sbr.rel (%p215) target = $region20
        $region19: #{forward.12} parent=11 // pred_region
          %s219 = ssub.s32 16, 16
          %220 = vsyncadd [#allocation10], %s219
          %s222 = sshll.u32 [#allocation9], 4
          %s223 = int_to_ptr.vmem [resolvable:$true] %s222
          %225 = dma.hbm_to_vmem [thread:$0]  %s2, 16, %s223, [#allocation10]
        $region20: #{forward.12} parent=11 // pred_fallthru
          _
      $region12: #{forward.12} parent=5 // pred_fallthru
        _
      %p226 = scmp.lt.s32.totalorder %s19, 4
      // Predicated region
      $region21: #{forward.12} parent=5 // pred_check
        %p227 = pneg %p226
      $region22: #{forward.12} parent=5 // pred_check_branch
        %229 = sbr.rel (%p227) target = $region24
      $region23: #{forward.12} parent=5 // pred_region
        // Predicated region
        $region25: #{forward.12} parent=23 // pred_check
          %p230 = pneg %p98
        $region26: #{forward.12} parent=23 // pred_check_branch
          %232 = sbr.rel (%p230) target = $region28
        $region27: #{forward.12} parent=23 // pred_region
          %s233 = sand.u32 %s19, 1
          %s234 = scalar_lea.sflag [#allocation7], %s233
          %s235 = sand.u32 %s88, 1
          %s236 = smul.addr %s235, 128
          %s237 = scalar_lea.vmem [#allocation11], %s236
          %s239 = ssub.s32 2048, 2048
          %240 = vsyncadd %s234, %s239
          %s241 = smul.addr %s27, 16
          %s242 = smul.addr %s241, 128
          %s243 = scalar_lea.hbm %s3, %s242
          %s244 = sshll.u32 %s237, 4
          %s245 = int_to_ptr.vmem [resolvable:$true] %s244
          %250 = dma.hbm_to_vmem [thread:$0]  %s243, 2048, %s245, %s234, 256, 256, 16
        $region28: #{forward.12} parent=23 // pred_fallthru
          _
        // Predicated region
        $region29: #{forward.12} parent=23 // pred_check
          %p251 = pneg %p124
        $region30: #{forward.12} parent=23 // pred_check_branch
          %253 = sbr.rel (%p251) target = $region32
        $region31: #{forward.12} parent=23 // pred_region
          %s254 = sand.u32 %s19, 1
          %s255 = scalar_lea.sflag [#allocation7], %s254
          %s256 = sand.u32 %s114, 1
          %s257 = smul.addr %s256, 128
          %s258 = scalar_lea.vmem [#allocation12], %s257
          %s260 = ssub.s32 2048, 2048
          %261 = vsyncadd %s255, %s260
          %s262 = smul.addr %s27, 16
          %s263 = smul.addr %s262, 128
          %s264 = scalar_lea.hbm %s4, %s263
          %s265 = sshll.u32 %s258, 4
          %s266 = int_to_ptr.vmem [resolvable:$true] %s265
          %271 = dma.hbm_to_vmem [thread:$0]  %s264, 2048, %s266, %s255, 128, 128, 8
        $region32: #{forward.12} parent=23 // pred_fallthru
          _
        // Predicated region
        $region33: #{forward.12} parent=23 // pred_check
          %p272 = pneg %p152
        $region34: #{forward.12} parent=23 // pred_check_branch
          %274 = sbr.rel (%p272) target = $region36
        $region35: #{forward.12} parent=23 // pred_region
          %s275 = sand.u32 %s19, 1
          %s276 = scalar_lea.sflag [#allocation7], %s275
          %s277 = sand.u32 %s142, 1
          %s278 = smul.addr %s277, 16
          %s279 = scalar_lea.vmem [#allocation13], %s278
          %s280 = smul.u32 2, %s26
          %s282 = ssub.s32 256, 256
          %283 = vsyncadd %s276, %s282
          %s284 = smul.addr %s27, 2
          %s285 = sadd.s32 %s280, %s284
          %s286 = smul.addr %s285, 128
          %s287 = scalar_lea.hbm %s5, %s286
          %s288 = sshll.u32 %s279, 4
          %s289 = int_to_ptr.vmem [resolvable:$true] %s288
          %294 = dma.hbm_to_vmem [thread:$0]  %s287, 256, %s289, %s276, 128, 128, 8
        $region36: #{forward.12} parent=23 // pred_fallthru
          _
      $region24: #{forward.12} parent=5 // pred_fallthru
        _
      %p295 = scmp.le.s32.totalorder 1, %s19
      %p296 = scmp.lt.s32.totalorder %s19, 5
      %p297 = pnand %p295, %p296
      %p298 = pneg %p297
      // Predicated region
      $region37: #{forward.12} parent=5 // pred_check
        _
      $region38: #{forward.12} parent=5 // pred_check_branch
        %300 = sbr.rel (%p297) target = $region40
      $region39: #{forward.12} parent=5 // pred_region
        %s301 = ssub.s32 %s19, 1
        // Predicated region
        $region41: #{forward.12} parent=39 // pred_check
          %p302 = pneg %p57
        $region42: #{forward.12} parent=39 // pred_check_branch
          %304 = sbr.rel (%p302) target = $region44
        $region43: #{forward.12} parent=39 // pred_region
          %305 = dma.done [#allocation7], 128
        $region44: #{forward.12} parent=39 // pred_fallthru
          _
        // Predicated region
        $region45: #{forward.12} parent=39 // pred_check
          %p306 = pneg %p78
        $region46: #{forward.12} parent=39 // pred_check_branch
          %308 = sbr.rel (%p306) target = $region48
        $region47: #{forward.12} parent=39 // pred_region
          %309 = dma.done [#allocation10], 16
        $region48: #{forward.12} parent=39 // pred_fallthru
          _
        %s310 = sand.u32 %s24, 1
        %s311 = scalar_lea.sflag [#allocation7], %s310
        %s312 = sand.u32 %s91, 1
        %s313 = smul.addr %s312, 128
        %s314 = scalar_lea.vmem [#allocation11], %s313
        // Predicated region
        $region49: #{forward.12} parent=39 // pred_check
          %p315 = pneg %p104
        $region50: #{forward.12} parent=39 // pred_check_branch
          %317 = sbr.rel (%p315) target = $region52
        $region51: #{forward.12} parent=39 // pred_region
          %318 = dma.done %s311, 2048
        $region52: #{forward.12} parent=39 // pred_fallthru
          _
        %s319 = sand.u32 %s24, 1
        %s320 = scalar_lea.sflag [#allocation7], %s319
        %s321 = sand.u32 %s117, 1
        %s322 = smul.addr %s321, 128
        %s323 = scalar_lea.vmem [#allocation12], %s322
        // Predicated region
        $region53: #{forward.12} parent=39 // pred_check
          %p324 = pneg %p130
        $region54: #{forward.12} parent=39 // pred_check_branch
          %326 = sbr.rel (%p324) target = $region56
        $region55: #{forward.12} parent=39 // pred_region
          %327 = dma.done %s320, 2048
        $region56: #{forward.12} parent=39 // pred_fallthru
          _
        %s328 = sand.u32 %s24, 1
        %s329 = scalar_lea.sflag [#allocation7], %s328
        %s330 = sand.u32 %s145, 1
        %s331 = smul.addr %s330, 16
        %s332 = scalar_lea.vmem [#allocation13], %s331
        // Predicated region
        $region57: #{forward.12} parent=39 // pred_check
          %p333 = pneg %p158
        $region58: #{forward.12} parent=39 // pred_check_branch
          %335 = sbr.rel (%p333) target = $region60
        $region59: #{forward.12} parent=39 // pred_region
          %336 = dma.done %s329, 256
        $region60: #{forward.12} parent=39 // pred_fallthru
          _
        %p337 = pneg %p57
        %p338 = pneg %p54
        %p339 = pneg %p78
        %p340 = pneg %p75
        %s341 = sand.u32 %s24, 1
        %s342 = scalar_lea.sflag [#allocation7], %s341
        %s343 = sand.u32 %s91, 1
        %s344 = smul.addr %s343, 128
        %s345 = scalar_lea.vmem [#allocation11], %s344
        %p346 = pneg %p104
        %p347 = pneg %p101
        %s348 = sand.u32 %s24, 1
        %s349 = scalar_lea.sflag [#allocation7], %s348
        %s350 = sand.u32 %s117, 1
        %s351 = smul.addr %s350, 128
        %s352 = scalar_lea.vmem [#allocation12], %s351
        %p353 = pneg %p130
        %p354 = pneg %p127
        %s355 = sand.u32 %s24, 1
        %s356 = scalar_lea.sflag [#allocation7], %s355
        %s357 = sand.u32 %s145, 1
        %s358 = smul.addr %s357, 16
        %s359 = scalar_lea.vmem [#allocation13], %s358
        %p360 = pneg %p158
        %p361 = pneg %p155
        %p362 = pneg %p184
        %p363 = pneg %p181
        %s364 = smul.u32 2, %s28
        %s365 = smul.u32 2, %s28
        %s366 = smul.u32 2, %s28
        %p368 = scmp.eq.s32.totalorder %s29, 0
        // Predicated region
        $region61: #{forward.12} parent=39 // pred_check
          %p369 = pneg %p368
        $region62: #{forward.12} parent=39 // pred_check_branch
          %371 = sbr.rel (%p369) target = $region64
        $region63: #{forward.12} parent=39 // pred_region
          %v372 = vld [vmem:[#allocation6] sm:$0xf]
          %v373 = vld [vmem:[#allocation6 + $0x4] sm:$0xf]
          %v374 = vunpack.c.l.bf16 %v372
          %v375 = vunpack.c.l.bf16 %v373
          %vm376 = vcmask 523264
          %377 = vst.msk [vmem:[#allocation3] sm:$0xff] %vm376, %v374
          %378 = vst.msk [vmem:[#allocation3 + $0x8] sm:$0xff] %vm376, %v375
          %v379 = vld [vmem:[#allocation9] sm:$0x1]
          %v380 = vmul.f32 %v374, %v374
          %v381 = vmul.f32 %v375, %v375
          %v382 = vsel %vm376, %v380, 0.0
          %383 = vadd.xlane.f32.xlu0 %v382
          %v384 = vpop.xlane.xlu0 %383
          %v385 = vsel %vm376, %v381, 0.0
          %386 = vadd.xlane.f32.xlu0 %v385
          %v387 = vpop.xlane.xlu0 %386
          %v388 = vrcp.pop 64.0
          %v389 = vmul.f32 %v384, %v388
          %v390 = vmul.f32 %v387, %v388
          %v391 = vadd.f32 %v389, 1e-06
          %v392 = vadd.f32 %v390, 1e-06
          %v393 = vrsqrt.pop %v391
          %v394 = vrsqrt.pop %v392
          %v395 = vmul.f32 %v374, %v393
          %v396 = vmul.f32 %v375, %v394
          %v398 = vlaneseq
          %v399 = vshrl.u32 %v398, 7
          %v400 = vsub.s32 0, %v399
          %v401 = vrot.slane %v379, %v400
          %v403 = vmul.f32 %v395, %v401
          %v404 = vmul.f32 %v396, %v401
          %v405 = vpack.c.bf16 %v404, %v403
          %406 = vst.msk [vmem:[#allocation2] sm:$0xff] %vm376, %v405
        $region64: #{forward.12} parent=39 // pred_fallthru
          _
        %s407 = sshra.s32 %s29, 7
        %s408 = sand.u32 %s29, 127
        %s409 = sadd.s32 %s407, %s28
        %s410 = smul.u32 %s409, 128
        %s411 = sshra.s32 %s29, 7
        %s412 = sand.u32 %s29, 127
        %s413 = sadd.s32 %s410, %s412
        %s414 = sld [smem:[#allocation5 + %s413]]
        %p415 = scmp.ne.s32.totalorder %s414, 0
        // Predicated region
        $region65: #{forward.12} parent=39 // pred_check
          %p416 = pneg %p415
        $region66: #{forward.12} parent=39 // pred_check_branch
          %418 = sbr.rel (%p416) target = $region68
        $region67: #{forward.12} parent=39 // pred_region
          %v419 = vld [vmem:[#allocation2] sm:$0xff]
          %v420 = vld [vmem:[%s314] sm:$0xff]
          %v421 = vld [vmem:[%s314 + $0x8] sm:$0xff]
          %v422 = vld [vmem:[%s314 + $0x10] sm:$0xff]
          %v423 = vld [vmem:[%s314 + $0x18] sm:$0xff]
          %v424 = vld [vmem:[%s314 + $0x20] sm:$0xff]
          %v425 = vld [vmem:[%s314 + $0x28] sm:$0xff]
          %v426 = vld [vmem:[%s314 + $0x30] sm:$0xff]
          %v427 = vld [vmem:[%s314 + $0x38] sm:$0xff]
          %v428 = vld [vmem:[%s314 + $0x40] sm:$0xff]
          %v429 = vld [vmem:[%s314 + $0x48] sm:$0xff]
          %v430 = vld [vmem:[%s314 + $0x50] sm:$0xff]
          %v431 = vld [vmem:[%s314 + $0x58] sm:$0xff]
          %v432 = vld [vmem:[%s314 + $0x60] sm:$0xff]
          %v433 = vld [vmem:[%s314 + $0x68] sm:$0xff]
          %v434 = vld [vmem:[%s314 + $0x70] sm:$0xff]
          %v435 = vld [vmem:[%s314 + $0x78] sm:$0xff]
          %v436 = vpack.c.bf16 %v422, %v420
          %v437 = vpack.c.bf16 %v423, %v421
          %v438 = vpack.c.bf16 %v426, %v424
          %v439 = vpack.c.bf16 %v427, %v425
          %v440 = vpack.c.bf16 %v430, %v428
          %v441 = vpack.c.bf16 %v431, %v429
          %v442 = vpack.c.bf16 %v434, %v432
          %v443 = vpack.c.bf16 %v435, %v433
          %vm444 = vcmask 523264
          %v446 = vsel %vm444, %v419, 0
          %448 = vmatprep.subr.bf16.mxu0 %v437
          %449 = vmatpush1.bf16.msra.mxu0 %v436
          %450 = vmatprep.subr.bf16.mxu0 %v439
          %451 = vmatpush1.bf16.msra.mxu0 %v438
          %452 = vmatprep.subr.bf16.mxu0 %v441
          %453 = vmatpush1.bf16.msra.mxu0 %v440
          %454 = vmatprep.subr.bf16.mxu0 %v443
          %455 = vmatpush1.bf16.msra.mxu0 %v442
          %456 = vmatprep.subr.bf16.mxu0 0
          %457 = vmatpush1.bf16.msra.mxu0 0
          %458 = vmatprep.subr.bf16.mxu0 0
          %459 = vmatpush1.bf16.msra.mxu0 0
          %460 = vmatprep.subr.bf16.mxu0 0
          %461 = vmatpush1.bf16.msra.mxu0 0
          %462 = vmatprep.subr.bf16.mxu0 0
          %463 = vmatpush1.bf16.msra.mxu0 0
          %464 = vmatprep.subr.bf16.mxu0 0
          %465 = vmatpush1.bf16.msra.mxu0 0
          %466 = vmatprep.subr.bf16.mxu0 0
          %467 = vmatpush1.bf16.msra.mxu0 0
          %468 = vmatprep.subr.bf16.mxu0 0
          %469 = vmatpush1.bf16.msra.mxu0 0
          %470 = vmatprep.subr.bf16.mxu0 0
          %471 = vmatpush1.bf16.msra.mxu0 0
          %472 = vmatprep.subr.bf16.mxu0 0
          %473 = vmatpush1.bf16.msra.mxu0 0
          %474 = vmatprep.subr.bf16.mxu0 0
          %475 = vmatpush1.bf16.msra.mxu0 0
          %476 = vmatprep.subr.bf16.mxu0 0
          %477 = vmatpush1.bf16.msra.mxu0 0
          %478 = vmatprep.subr.bf16.mxu0 0
          %479 = vmatpush1.bf16.msra.mxu0 0
          %480 = vmatprep.mubr.bf16.mxu0 0
          %481 = vmatmul.mubr.bf16.gmra.mrb[0].mxu0 %v446
          %v482 = vpop.f32.mrb[0].mxu0
          %v483 = vadd.f32 0.0, %v482
          %v484 = vpop.f32.mrb[0].mxu0
          %v485 = vadd.f32 0.0, %v484
          %v486 = vpop.f32.mrb[0].mxu0
          %v487 = vadd.f32 0.0, %v486
          %v488 = vpop.f32.mrb[0].mxu0
          %v489 = vadd.f32 0.0, %v488
          %490 = vdwg.mxu0
          %v491 = vxor.u32 %v483, 2147483648
          %v492 = vxor.u32 %v487, 2147483648
          %v493 = vmul.f32 %v491, 1.442695
          %v494 = vpow.pop %v493
          %v495 = vmul.f32 %v492, 1.442695
          %v496 = vpow.pop %v495
          %v497 = vadd.f32 %v494, 1.0
          %v498 = vadd.f32 %v496, 1.0
          %v499 = vrcp.pop %v497
          %v500 = vmul.f32 1.0, %v499
          %v501 = vrcp.pop %v498
          %v502 = vmul.f32 1.0, %v501
          %v503 = vmul.f32 %v483, %v500
          %v504 = vmul.f32 %v487, %v502
          %v505 = vmul.f32 %v503, %v485
          %v506 = vmul.f32 %v504, %v489
          %v507 = vpack.c.bf16 %v506, %v505
          %v508 = vld [vmem:[%s323] sm:$0xff]
          %v509 = vld [vmem:[%s323 + $0x8] sm:$0xff]
          %v510 = vld [vmem:[%s323 + $0x10] sm:$0xff]
          %v511 = vld [vmem:[%s323 + $0x18] sm:$0xff]
          %v512 = vld [vmem:[%s323 + $0x20] sm:$0xff]
          %v513 = vld [vmem:[%s323 + $0x28] sm:$0xff]
          %v514 = vld [vmem:[%s323 + $0x30] sm:$0xff]
          %v515 = vld [vmem:[%s323 + $0x38] sm:$0xff]
          %v516 = vld [vmem:[%s323 + $0x40] sm:$0xff]
          %v517 = vld [vmem:[%s323 + $0x48] sm:$0xff]
          %v518 = vld [vmem:[%s323 + $0x50] sm:$0xff]
          %v519 = vld [vmem:[%s323 + $0x58] sm:$0xff]
          %v520 = vld [vmem:[%s323 + $0x60] sm:$0xff]
          %v521 = vld [vmem:[%s323 + $0x68] sm:$0xff]
          %v522 = vld [vmem:[%s323 + $0x70] sm:$0xff]
          %v523 = vld [vmem:[%s323 + $0x78] sm:$0xff]
          %v524 = vpack.c.bf16 %v509, %v508
          %v525 = vpack.c.bf16 %v511, %v510
          %v526 = vpack.c.bf16 %v513, %v512
          %v527 = vpack.c.bf16 %v515, %v514
          %v528 = vpack.c.bf16 %v517, %v516
          %v529 = vpack.c.bf16 %v519, %v518
          %v530 = vpack.c.bf16 %v521, %v520
          %v531 = vpack.c.bf16 %v523, %v522
          %532 = vmatprep.subr.bf16.mxu0 0
          %533 = vmatpush1.bf16.msra.mxu0 %v524
          %534 = vmatprep.subr.bf16.mxu0 0
          %535 = vmatpush1.bf16.msra.mxu0 %v525
          %536 = vmatprep.subr.bf16.mxu0 0
          %537 = vmatpush1.bf16.msra.mxu0 %v526
          %538 = vmatprep.subr.bf16.mxu0 0
          %539 = vmatpush1.bf16.msra.mxu0 %v527
          %540 = vmatprep.subr.bf16.mxu0 0
          %541 = vmatpush1.bf16.msra.mxu0 %v528
          %542 = vmatprep.subr.bf16.mxu0 0
          %543 = vmatpush1.bf16.msra.mxu0 %v529
          %544 = vmatprep.subr.bf16.mxu0 0
          %545 = vmatpush1.bf16.msra.mxu0 %v530
          %546 = vmatprep.subr.bf16.mxu0 0
          %547 = vmatpush1.bf16.msra.mxu0 %v531
          %548 = vmatprep.subr.bf16.mxu0 0
          %549 = vmatpush1.bf16.msra.mxu0 0
          %550 = vmatprep.subr.bf16.mxu0 0
          %551 = vmatpush1.bf16.msra.mxu0 0
          %552 = vmatprep.subr.bf16.mxu0 0
          %553 = vmatpush1.bf16.msra.mxu0 0
          %554 = vmatprep.subr.bf16.mxu0 0
          %555 = vmatpush1.bf16.msra.mxu0 0
          %556 = vmatprep.subr.bf16.mxu0 0
          %557 = vmatpush1.bf16.msra.mxu0 0
          %558 = vmatprep.subr.bf16.mxu0 0
          %559 = vmatpush1.bf16.msra.mxu0 0
          %560 = vmatprep.subr.bf16.mxu0 0
          %561 = vmatpush1.bf16.msra.mxu0 0
          %562 = vmatprep.subr.bf16.mxu0 0
          %563 = vmatpush1.bf16.msra.mxu0 0
          %564 = vmatprep.mubr.bf16.mxu0 0
          %565 = vmatmul.mubr.bf16.gmra.mrb[0].mxu0 %v507
          %v566 = vpop.f32.mrb[0].mxu0
          %v567 = vadd.f32 0.0, %v566
          %v568 = vpop.f32.mrb[0].mxu0
          %v569 = vpop.f32.mrb[0].mxu0
          %v570 = vadd.f32 0.0, %v569
          %v571 = vpop.f32.mrb[0].mxu0
          %572 = vdwg.mxu0
          %v573 = vld [vmem:[#allocation3] sm:$0xff]
          %v574 = vld [vmem:[#allocation3 + $0x8] sm:$0xff]
          %v575 = vld [vmem:[%s332] sm:$0xff]
          %v576 = vld [vmem:[%s332 + $0x8] sm:$0xff]
          %578 = vset.pattern.permute.xlu0 0
          %579 = vperm.xlu0 %578, %v575
          %v580 = vpop.permute.xlu0 %579
          %583 = vset.pattern.permute.xlu0 0
          %584 = vperm.xlu0 %583, %v576
          %v585 = vpop.permute.xlu0 %584
          %v587 = vmul.f32 %v580, %v567
          %v588 = vmul.f32 %v585, %v570
          %v589 = vadd.f32 %v573, %v587
          %v590 = vadd.f32 %v574, %v588
          %591 = vst.msk [vmem:[#allocation3] sm:$0xff] %vm444, %v589
          %592 = vst.msk [vmem:[#allocation3 + $0x8] sm:$0xff] %vm444, %v590
        $region68: #{forward.12} parent=39 // pred_fallthru
          _
        %p593 = scmp.eq.s32.totalorder %s29, 3
        // Predicated region
        $region69: #{forward.12} parent=39 // pred_check
          %p594 = pneg %p593
        $region70: #{forward.12} parent=39 // pred_check_branch
          %596 = sbr.rel (%p594) target = $region72
        $region71: #{forward.12} parent=39 // pred_region
          %v597 = vld [vmem:[#allocation3] sm:$0xff]
          %v598 = vld [vmem:[#allocation3 + $0x8] sm:$0xff]
          %v599 = vpack.c.bf16 %v598, %v597
          %v601 = vunpack.c.l.b16 %v599
          %v602 = vunpack.c.h.b16 %v599
          %v603 = vpack.c.b16 %v601, %v601
          %v604 = vpack.c.b16 %v602, %v602
          %vm607 = vcmask 519168
          %608 = vst.msk [vmem:[#allocation14] sm:$0xf] %vm607, %v603
          %609 = vst.msk [vmem:[#allocation14 + $0x4] sm:$0xf] %vm607, %v604
        $region72: #{forward.12} parent=39 // pred_fallthru
          _
        // Predicated region
        $region73: #{forward.12} parent=39 // pred_check
          %p610 = pneg %p181
        $region74: #{forward.12} parent=39 // pred_check_branch
          %612 = sbr.rel (%p610) target = $region76
        $region75: #{forward.12} parent=39 // pred_region
          %s613 = smul.u32 2, %s28
          %s615 = ssub.s32 128, 128
          %616 = vsyncadd [#allocation8], %s615
          %s617 = smul.addr %s613, 64
          %s618 = scalar_lea.hbm %s6, %s617
          %s619 = sshll.u32 [#allocation14], 4
          %s620 = int_to_ptr.vmem [resolvable:$true] %s619
          %625 = dma.vmem_to_hbm [thread:$0]  %s620, 128, %s618, [#allocation8], 64, 64, 4
        $region76: #{forward.12} parent=39 // pred_fallthru
          _
        // Predicated region
        $region77: #{forward.12} parent=39 // pred_check
          %p626 = pneg %p181
        $region78: #{forward.12} parent=39 // pred_check_branch
          %628 = sbr.rel (%p626) target = $region80
        $region79: #{forward.12} parent=39 // pred_region
          %629 = dma.done [#allocation8], 128
        $region80: #{forward.12} parent=39 // pred_fallthru
          _
      $region40: #{forward.12} parent=5 // pred_fallthru
        _
      %p630 = scmp.le.s32.totalorder 2, %s19
      // Predicated region
      $region81: #{forward.12} parent=5 // pred_check
        %p631 = pneg %p630
      $region82: #{forward.12} parent=5 // pred_check_branch
        %633 = sbr.rel (%p631) target = $region84
      $region83: #{forward.12} parent=5 // pred_region
        %s634 = ssub.s32 %s19, 2
      $region84: #{forward.12} parent=5 // pred_fallthru
        _
    $region6: #{forward.12} parent=1 // loop_footer
      %s23 = sadd.s32 1, %s19
    $region7: #{forward.12} parent=1 // loop_footer_branch
      %18 = sbr.rel target = $region3
    $region8: #{forward.12} parent=1 // loop_exit
      _
    %635 = vsyncpa [#allocation7], 1
    %s636 = scalar_lea.sflag [#allocation7], 1
    %637 = vsyncpa %s636, 1
    %638 = vsyncpa [#allocation10], 1
    %639 = vsyncpa [#allocation8], 1
    %s640 = scalar_lea.sflag [#allocation8], 1
    %641 = vsyncpa %s640, 1

</llo_original>
